<compile_context>
chip_gen: v7x
topology: tpu7x:2x2x1
jax: 0.10.0
libtpu: 0.0.40
codegen_flags: <defaults>
</compile_context>

<pallas_src>
import functools

import jax
import jax.numpy as jnp
from jax.experimental import pallas as pl
from jax.experimental.pallas import tpu as pltpu


def _round_up(x, m):
    return ((x + m - 1) // m) * m


# ----------------------------- Pallas kernels ------------------------------

def _conv_mm_kernel(w_ref, a_ref, shift_ref, o_ref, *, leaky):
    # w_ref: (Cout, K) bf16 with BN scale pre-folded; a_ref: (K, tn) bf16 patches
    # shift_ref: (Cout, 1) f32. Output is lane-dense: (Cout, tn), tn % 128 == 0.
    acc = jnp.dot(w_ref[...], a_ref[...], preferred_element_type=jnp.float32)
    y = acc + shift_ref[...]
    if leaky:
        y = jnp.where(y > 0, y, 0.1 * y)
    o_ref[...] = y


def _conv_mm_res_kernel(w_ref, a_ref, shift_ref, r_ref, o_ref, *, leaky):
    # Same as above, with the residual (shortcut) add fused into the epilogue.
    acc = jnp.dot(w_ref[...], a_ref[...], preferred_element_type=jnp.float32)
    y = acc + shift_ref[...]
    if leaky:
        y = jnp.where(y > 0, y, 0.1 * y)
    o_ref[...] = y + r_ref[...]


def _maxpool4_kernel(x_ref, o_ref):
    # x_ref: (4, tn) -- the 4 elements of every 2x2 window, lane-dense.
    x = x_ref[...]
    o_ref[...] = jnp.maximum(jnp.maximum(x[0:1, :], x[1:2, :]),
                             jnp.maximum(x[2:3, :], x[3:4, :]))


def _yolo_kernel(p_ref, aux_ref, o_ref, *, stride):
    # p_ref: (D, Mp) raw predictions (D = 5 + num_classes, Mp % 128 == 0)
    # aux_ref: (4, Mp) rows = grid_x, grid_y, scaled_anchor_w, scaled_anchor_h
    o_ref[0:2, :] = (jax.nn.sigmoid(p_ref[0:2, :]) + aux_ref[0:2, :]) * stride
    o_ref[2:4, :] = jnp.exp(p_ref[2:4, :]) * aux_ref[2:4, :] * stride
    o_ref[4:, :] = jax.nn.sigmoid(p_ref[4:, :])


# ------------------------------ layer wrappers ------------------------------

def conv_block(x_cm, weight, scale, shift, stride, pad, leaky, residual=None):
    """Conv2d (+folded BN affine) (+LeakyReLU) (+fused residual add).

    x_cm: (Cin, B, H, W) channel-major; weight: (Cout, Cin, k, k);
    residual (optional): (Cout, B, Ho, Wo) channel-major (added post-activation).
    Returns (Cout, B, Ho, Wo) channel-major.
    """
    Cin, B, H, W = x_cm.shape
    Cout, _, k, _ = weight.shape
    Ho = (H + 2 * pad - k) // stride + 1
    Wo = (W + 2 * pad - k) // stride + 1
    M = B * Ho * Wo
    K = Cin * k * k

    # im2col in channel-major layout -> A: (K, M); 1x1/stride-1 is a pure reshape.
    # TODO(synk): for large feature maps, fuse im2col into the kernel
    # (overlapping-window loads) instead of materializing (K, M) in HBM.
    if k == 1 and stride == 1 and pad == 0:
        A = x_cm.reshape(Cin, M)
    else:
        xp = jnp.pad(x_cm, ((0, 0), (0, 0), (pad, pad), (pad, pad)))
        cols = []
        for dh in range(k):
            for dw in range(k):
                cols.append(xp[:, :,
                               dh:dh + stride * (Ho - 1) + 1:stride,
                               dw:dw + stride * (Wo - 1) + 1:stride])
        # (Cin, k*k, B, Ho, Wo) -> (K, M): contiguous reshape, no transpose.
        A = jnp.stack(cols, axis=1).reshape(K, M)

    # Lane tiling: pad M up to a multiple of 128, keep >=2 parallel grid steps
    # when there is enough work (megacore sharding on v7x).
    if M >= 1024:
        tn = 512
    elif M >= 512:
        tn = 256
    else:
        tn = _round_up(M, 128)
    Mp = _round_up(M, tn)
    if Mp != M:
        A = jnp.pad(A, ((0, 0), (0, Mp - M)))

    # Fold BN scale into the weight rows; bf16 MXU operands, f32 accumulation.
    Wmat = (weight.reshape(Cout, K) * scale[:, None]).astype(jnp.bfloat16)
    A = A.astype(jnp.bfloat16)
    shift2 = shift.reshape(Cout, 1).astype(jnp.float32)

    in_specs = [
        pl.BlockSpec((Cout, K), lambda i: (0, 0)),
        pl.BlockSpec((K, tn), lambda i: (0, i)),
        pl.BlockSpec((Cout, 1), lambda i: (0, 0)),
    ]
    args = [Wmat, A, shift2]
    if residual is None:
        kernel = functools.partial(_conv_mm_kernel, leaky=leaky)
    else:
        r = residual.reshape(Cout, M).astype(jnp.float32)
        if Mp != M:
            r = jnp.pad(r, ((0, 0), (0, Mp - M)))
        in_specs.append(pl.BlockSpec((Cout, tn), lambda i: (0, i)))
        args.append(r)
        kernel = functools.partial(_conv_mm_res_kernel, leaky=leaky)

    out = pl.pallas_call(
        kernel,
        out_shape=jax.ShapeDtypeStruct((Cout, Mp), jnp.float32),
        grid=(Mp // tn,),
        in_specs=in_specs,
        out_specs=pl.BlockSpec((Cout, tn), lambda i: (0, i)),
        compiler_params=pltpu.CompilerParams(dimension_semantics=("parallel",)),
    )(*args)
    return out[:, :M].reshape(Cout, B, Ho, Wo)


def maxpool2x2(x_cm):
    # TODO(synk): only the kernel_size=2/stride=2 maxpool variant used by this
    # synthetic cfg is implemented (the size=2/stride=1 ZeroPad2d path is not).
    C, B, H, W = x_cm.shape
    H2, W2 = H // 2, W // 2
    N = C * B * H2 * W2
    xw = x_cm.reshape(C, B, H2, 2, W2, 2)
    xw = jnp.transpose(xw, (3, 5, 0, 1, 2, 4)).reshape(4, N)   # lane-dense windows
    tn = 8192 if N >= 8192 else _round_up(N, 128)
    Np = _round_up(N, tn)
    if Np != N:
        xw = jnp.pad(xw, ((0, 0), (0, Np - N)))
    out = pl.pallas_call(
        _maxpool4_kernel,
        out_shape=jax.ShapeDtypeStruct((1, Np), jnp.float32),
        grid=(Np // tn,),
        in_specs=[pl.BlockSpec((4, tn), lambda i: (0, i))],
        out_specs=pl.BlockSpec((1, tn), lambda i: (0, i)),
        compiler_params=pltpu.CompilerParams(dimension_semantics=("parallel",)),
    )(xw)
    return out[0, :N].reshape(C, B, H2, W2)


def upsample_nearest(x_cm, scale):
    # F.interpolate(..., mode='nearest'): pure data movement -> JAX glue.
    return jnp.repeat(jnp.repeat(x_cm, scale, axis=2), scale, axis=3)


def yolo_head(x_cm, anchors, num_classes, img_dim):
    """YOLOLayer.forward with target=None.
    x_cm: (A*(5+C), B, G, G) channel-major -> (B, A*G*G, 5+C) (PyTorch layout)."""
    _, B, G, _ = x_cm.shape
    A = len(anchors)
    D = 5 + num_classes
    stride = img_dim / G
    M = B * A * G * G
    # channel-major x -> (D, M) with M flattened as (b, a, gi, gj)
    p2d = x_cm.reshape(A, D, B, G, G).transpose(1, 2, 0, 3, 4).reshape(D, M)
    anch = jnp.asarray(anchors, dtype=jnp.float32) / stride      # (A, 2) scaled
    gxv = jnp.broadcast_to(jnp.arange(G, dtype=jnp.float32)[None, None, None, :],
                           (B, A, G, G)).reshape(M)
    gyv = jnp.broadcast_to(jnp.arange(G, dtype=jnp.float32)[None, None, :, None],
                           (B, A, G, G)).reshape(M)
    awv = jnp.broadcast_to(anch[:, 0][None, :, None, None], (B, A, G, G)).reshape(M)
    ahv = jnp.broadcast_to(anch[:, 1][None, :, None, None], (B, A, G, G)).reshape(M)
    aux = jnp.stack([gxv, gyv, awv, ahv], axis=0)                 # (4, M)

    Mp = _round_up(M, 128)                                        # lane-dense stores
    if Mp != M:
        p2d = jnp.pad(p2d, ((0, 0), (0, Mp - M)))
        aux = jnp.pad(aux, ((0, 0), (0, Mp - M)))
    out = pl.pallas_call(
        functools.partial(_yolo_kernel, stride=float(stride)),
        out_shape=jax.ShapeDtypeStruct((D, Mp), jnp.float32),
        in_specs=[pl.BlockSpec(memory_space=pltpu.MemorySpace.VMEM)] * 2,
        out_specs=pl.BlockSpec(memory_space=pltpu.MemorySpace.VMEM),
    )(p2d, aux)
    return out[:, :M].reshape(D, B, A * G * G).transpose(1, 2, 0)


# ------------------------ synthetic cfg (in-script) -------------------------

HYPERPARAMS = {'channels': '3', 'height': '16'}
ANCHORS_STR = '10,14,23,27,37,58,81,82,135,169,344,319'
MODULE_DEFS = [
    {'type': 'convolutional', 'batch_normalize': '1', 'filters': '8',  'size': '3', 'stride': '1', 'activation': 'leaky'},
    {'type': 'convolutional', 'batch_normalize': '1', 'filters': '16', 'size': '3', 'stride': '2', 'activation': 'leaky'},
    {'type': 'convolutional', 'batch_normalize': '1', 'filters': '8',  'size': '1', 'stride': '1', 'activation': 'leaky'},
    {'type': 'convolutional', 'batch_normalize': '1', 'filters': '16', 'size': '3', 'stride': '1', 'activation': 'leaky'},
    {'type': 'shortcut', 'from': '-3', 'activation': 'linear'},
    {'type': 'maxpool', 'size': '2', 'stride': '2'},
    {'type': 'convolutional', 'batch_normalize': '1', 'filters': '32', 'size': '3', 'stride': '1', 'activation': 'leaky'},
    {'type': 'convolutional', 'batch_normalize': '0', 'filters': '21', 'size': '1', 'stride': '1', 'activation': 'linear'},
    {'type': 'yolo', 'mask': '3,4,5', 'anchors': ANCHORS_STR, 'classes': '2'},
    {'type': 'route', 'layers': '-4'},
    {'type': 'convolutional', 'batch_normalize': '1', 'filters': '8',  'size': '1', 'stride': '1', 'activation': 'leaky'},
    {'type': 'upsample', 'stride': '2'},
    {'type': 'route', 'layers': '-1, 4'},
    {'type': 'convolutional', 'batch_normalize': '1', 'filters': '16', 'size': '3', 'stride': '1', 'activation': 'leaky'},
    {'type': 'convolutional', 'batch_normalize': '0', 'filters': '21', 'size': '1', 'stride': '1', 'activation': 'linear'},
    {'type': 'yolo', 'mask': '0,1,2', 'anchors': ANCHORS_STR, 'classes': '2'},
]


def init_params(module_defs, hyperparams, seed=0):
    """Deterministic synthetic params. BN uses eval-mode running stats, folded
    into per-channel (scale, shift)."""
    key = jax.random.PRNGKey(seed)
    params = {}
    output_filters = [int(hyperparams['channels'])]
    for i, mdef in enumerate(module_defs):
        filters = output_filters[-1]
        if mdef['type'] == 'convolutional':
            bn = int(mdef['batch_normalize'])
            filters = int(mdef['filters'])
            k = int(mdef['size'])
            cin = output_filters[-1]
            key, kw, k1, k2, k3 = jax.random.split(key, 5)
            w = 0.1 * jax.random.normal(kw, (filters, cin, k, k), jnp.float32)
            if bn:
                gamma = 1.0 + 0.1 * jax.random.normal(k1, (filters,), jnp.float32)
                beta = 0.1 * jax.random.normal(k2, (filters,), jnp.float32)
                rmean = 0.1 * jax.random.normal(k3, (filters,), jnp.float32)
                rvar = jnp.ones((filters,), jnp.float32)
                scale = gamma / jnp.sqrt(rvar + 1e-5)
                shift = beta - rmean * scale
            else:
                bias = 0.1 * jax.random.normal(k1, (filters,), jnp.float32)
                scale = jnp.ones((filters,), jnp.float32)
                shift = bias
            params[i] = {'w': w, 'scale': scale, 'shift': shift}
        elif mdef['type'] == 'route':
            layers = [int(v) for v in mdef['layers'].split(',')]
            filters = sum(output_filters[1:][li] for li in layers)
        elif mdef['type'] == 'shortcut':
            filters = output_filters[1:][int(mdef['from'])]
        output_filters.append(filters)
    return params


def _referenced_later(module_defs, idx, start):
    """Is layer_outputs[idx] read by any module at position >= start?"""
    for j in range(start, len(module_defs)):
        md = module_defs[j]
        if md['type'] == 'route':
            for li in md['layers'].split(','):
                li = int(li)
                if (li if li >= 0 else j + li) == idx:
                    return True
        elif md['type'] == 'shortcut':
            fr = int(md['from'])
            if (fr if fr >= 0 else j + fr) == idx or (j - 1) == idx:
                return True
    return False


def darknet_forward(x, params, module_defs=MODULE_DEFS):
    """Darknet.forward with target=None (inference path). x: NCHW.
    TODO(synk): training branch (build_targets + MSE/BCE losses) not implemented."""
    img_dim = x.shape[2]
    x = jnp.transpose(x, (1, 0, 2, 3))   # one-time NCHW -> channel-major (C, B, H, W)
    layer_outputs, yolo_outputs = [], []
    fused_shortcut_idx = -1
    for i, mdef in enumerate(module_defs):
        t = mdef['type']
        if t == 'convolutional':
            p = params[i]
            k = int(mdef['size'])
            stride = int(mdef['stride'])
            pad = (k - 1) // 2
            leaky = mdef['activation'] == 'leaky'
            residual = None
            # Fuse a directly-following shortcut into this conv's epilogue when
            # the raw (pre-add) conv output is not needed by any later layer.
            if (i + 1 < len(module_defs)
                    and module_defs[i + 1]['type'] == 'shortcut'
                    and not _referenced_later(module_defs, i, i + 2)):
                fr = int(module_defs[i + 1]['from'])
                res_idx = fr if fr >= 0 else (i + 1) + fr
                residual = layer_outputs[res_idx]
                fused_shortcut_idx = i + 1
            x = conv_block(x, p['w'], p['scale'], p['shift'], stride, pad, leaky,
                           residual=residual)
        elif t == 'maxpool':
            x = maxpool2x2(x)
        elif t == 'upsample':
            x = upsample_nearest(x, int(mdef['stride']))
        elif t == 'route':
            x = jnp.concatenate(
                [layer_outputs[int(li)] for li in mdef['layers'].split(',')], axis=0)
        elif t == 'shortcut':
            if i == fused_shortcut_idx:
                pass   # x already holds conv + residual from the fused epilogue
            else:
                # glue fallback (unexercised by this cfg)
                x = layer_outputs[-1] + layer_outputs[int(mdef['from'])]
        elif t == 'yolo':
            anchor_idxs = [int(v) for v in mdef['mask'].split(',')]
            a_flat = [int(v) for v in mdef['anchors'].split(',')]
            anchors = [(a_flat[j], a_flat[j + 1]) for j in range(0, len(a_flat), 2)]
            anchors = [anchors[j] for j in anchor_idxs]
            x = yolo_head(x, anchors, int(mdef['classes']), img_dim)
            yolo_outputs.append(x)
        layer_outputs.append(x)
    return jnp.concatenate(yolo_outputs, axis=1)


if __name__ == "__main__":
    params = init_params(MODULE_DEFS, HYPERPARAMS, seed=0)
    x = jax.random.normal(jax.random.PRNGKey(0), (2, 3, 16, 16), jnp.float32)
    fwd = jax.jit(darknet_forward)
    out = jax.block_until_ready(fwd(x, params))
    # yolo head 1: 3 anchors * 4*4 grid = 48; yolo head 2: 3 * 8*8 = 192 -> 240
    assert out.shape == (2, 240, 7), out.shape
    assert bool(jnp.all(jnp.isfinite(out)))
    print("KERNEL_OK")
</pallas_src>

<mosaic_0001>
module attributes {stable_mosaic.version = 11 : i64} {
  func.func @_conv_mm_kernel(%arg0: i32, %arg1: memref<8x27xbf16, #tpu.memory_space<vmem>>, %arg2: memref<27x256xbf16, #tpu.memory_space<vmem>>, %arg3: memref<8x1xf32, #tpu.memory_space<vmem>>, %arg4: memref<8x256xf32, #tpu.memory_space<vmem>>) attributes {dimension_semantics = [#tpu.dimension_semantics<parallel>], iteration_bounds = array<i64: 2>, scalar_prefetch = 0 : i64, scratch_operands = 0 : i64, tpu.core_type = #tpu.core_type<tc>, window_params = [{pipeline_mode = #tpu.pipeline_mode<synchronous>, transform_indices = @transform_0, window_bounds = array<i64: 8, 27>}, {transform_indices = @transform_1, window_bounds = array<i64: 27, 256>}, {pipeline_mode = #tpu.pipeline_mode<synchronous>, transform_indices = @transform_2, window_bounds = array<i64: 8, 1>}, {transform_indices = @transform_3, window_bounds = array<i64: 8, 256>}]} {
    %c0 = arith.constant 0 : index
    %c0_0 = arith.constant 0 : index
    %0 = vector.load %arg1[%c0, %c0_0] : memref<8x27xbf16, #tpu.memory_space<vmem>>, vector<8x27xbf16>
    %c0_1 = arith.constant 0 : index
    %c0_2 = arith.constant 0 : index
    %1 = vector.load %arg2[%c0_1, %c0_2] : memref<27x256xbf16, #tpu.memory_space<vmem>>, vector<27x256xbf16>
    %cst = arith.constant dense<0.000000e+00> : vector<8x256xf32>
    %2 = tpu.matmul %0, %1, %cst {dimension_numbers = #tpu.dot_dimension_numbers<[1], [0], [0], [1], [0, 0, 1, 1], [], []>} : vector<8x27xbf16>, vector<27x256xbf16>, vector<8x256xf32> -> vector<8x256xf32>
    %c0_3 = arith.constant 0 : index
    %c0_4 = arith.constant 0 : index
    %3 = vector.load %arg3[%c0_3, %c0_4] : memref<8x1xf32, #tpu.memory_space<vmem>>, vector<8x1xf32>
    %4 = vector.broadcast %3 : vector<8x1xf32> to vector<8x256xf32>
    %5 = arith.addf %2, %4 : vector<8x256xf32>
    %cst_5 = arith.constant 0.000000e+00 : f32
    %6 = vector.broadcast %cst_5 : f32 to vector<8x256xf32>
    %7 = arith.cmpf ogt, %5, %6 : vector<8x256xf32>
    %cst_6 = arith.constant 1.000000e-01 : f32
    %8 = vector.broadcast %cst_6 : f32 to vector<8x256xf32>
    %9 = arith.mulf %8, %5 : vector<8x256xf32>
    %10 = arith.select %7, %5, %9 : vector<8x256xi1>, vector<8x256xf32>
    %c0_7 = arith.constant 0 : index
    %c0_8 = arith.constant 0 : index
    %11 = vector.load %arg4[%c0_7, %c0_8] : memref<8x256xf32, #tpu.memory_space<vmem>>, vector<8x256xf32>
    tpu.vector_store %arg4[%c0_7, %c0_8], %10 {strides = array<i32>} : memref<8x256xf32, #tpu.memory_space<vmem>>, vector<8x256xf32>,
    return
  }
  func.func @transform_0(%arg0: i32) -> (i32, i32) {
    %c0_i32 = arith.constant 0 : i32
    %c0_i32_0 = arith.constant 0 : i32
    %c0_i32_1 = arith.constant 0 : i32
    return %c0_i32, %c0_i32_0 : i32, i32
  }
  func.func @transform_1(%arg0: i32) -> (i32, i32) {
    %c0_i32 = arith.constant 0 : i32
    %c0_i32_0 = arith.constant 0 : i32
    return %c0_i32, %arg0 : i32, i32
  }
  func.func @transform_2(%arg0: i32) -> (i32, i32) {
    %c0_i32 = arith.constant 0 : i32
    %c0_i32_0 = arith.constant 0 : i32
    %c0_i32_1 = arith.constant 0 : i32
    return %c0_i32, %c0_i32_0 : i32, i32
  }
  func.func @transform_3(%arg0: i32) -> (i32, i32) {
    %c0_i32 = arith.constant 0 : i32
    %c0_i32_0 = arith.constant 0 : i32
    return %c0_i32, %arg0 : i32, i32
  }
}

module attributes {stable_mosaic.version = 11 : i64} {
  func.func @_conv_mm_kernel(%arg0: i32, %arg1: memref<8x16xbf16, #tpu.memory_space<vmem>>, %arg2: memref<16x128xbf16, #tpu.memory_space<vmem>>, %arg3: memref<8x1xf32, #tpu.memory_space<vmem>>, %arg4: memref<8x128xf32, #tpu.memory_space<vmem>>) attributes {dimension_semantics = [#tpu.dimension_semantics<parallel>], iteration_bounds = array<i64: 1>, scalar_prefetch = 0 : i64, scratch_operands = 0 : i64, tpu.core_type = #tpu.core_type<tc>, window_params = [{pipeline_mode = #tpu.pipeline_mode<synchronous>, transform_indices = @transform_0, window_bounds = array<i64: 8, 16>}, {transform_indices = @transform_1, window_bounds = array<i64: 16, 128>}, {pipeline_mode = #tpu.pipeline_mode<synchronous>, transform_indices = @transform_2, window_bounds = array<i64: 8, 1>}, {transform_indices = @transform_3, window_bounds = array<i64: 8, 128>}]} {
    %c0 = arith.constant 0 : index
    %c0_0 = arith.constant 0 : index
    %0 = vector.load %arg1[%c0, %c0_0] : memref<8x16xbf16, #tpu.memory_space<vmem>>, vector<8x16xbf16>
    %c0_1 = arith.constant 0 : index
    %c0_2 = arith.constant 0 : index
    %1 = vector.load %arg2[%c0_1, %c0_2] : memref<16x128xbf16, #tpu.memory_space<vmem>>, vector<16x128xbf16>
    %cst = arith.constant dense<0.000000e+00> : vector<8x128xf32>
    %2 = tpu.matmul %0, %1, %cst {dimension_numbers = #tpu.dot_dimension_numbers<[1], [0], [0], [1], [0, 0, 1, 1], [], []>} : vector<8x16xbf16>, vector<16x128xbf16>, vector<8x128xf32> -> vector<8x128xf32>
    %c0_3 = arith.constant 0 : index
    %c0_4 = arith.constant 0 : index
    %3 = vector.load %arg3[%c0_3, %c0_4] : memref<8x1xf32, #tpu.memory_space<vmem>>, vector<8x1xf32>
    %4 = vector.broadcast %3 : vector<8x1xf32> to vector<8x128xf32>
    %5 = arith.addf %2, %4 : vector<8x128xf32>
    %cst_5 = arith.constant 0.000000e+00 : f32
    %6 = vector.broadcast %cst_5 : f32 to vector<8x128xf32>
    %7 = arith.cmpf ogt, %5, %6 : vector<8x128xf32>
    %cst_6 = arith.constant 1.000000e-01 : f32
    %8 = vector.broadcast %cst_6 : f32 to vector<8x128xf32>
    %9 = arith.mulf %8, %5 : vector<8x128xf32>
    %10 = arith.select %7, %5, %9 : vector<8x128xi1>, vector<8x128xf32>
    %c0_7 = arith.constant 0 : index
    %c0_8 = arith.constant 0 : index
    %11 = vector.load %arg4[%c0_7, %c0_8] : memref<8x128xf32, #tpu.memory_space<vmem>>, vector<8x128xf32>
    tpu.vector_store %arg4[%c0_7, %c0_8], %10 {strides = array<i32>} : memref<8x128xf32, #tpu.memory_space<vmem>>, vector<8x128xf32>,
    return
  }
  func.func @transform_0(%arg0: i32) -> (i32, i32) {
    %c0_i32 = arith.constant 0 : i32
    %c0_i32_0 = arith.constant 0 : i32
    %c0_i32_1 = arith.constant 0 : i32
    return %c0_i32, %c0_i32_0 : i32, i32
  }
  func.func @transform_1(%arg0: i32) -> (i32, i32) {
    %c0_i32 = arith.constant 0 : i32
    %c0_i32_0 = arith.constant 0 : i32
    return %c0_i32, %arg0 : i32, i32
  }
  func.func @transform_2(%arg0: i32) -> (i32, i32) {
    %c0_i32 = arith.constant 0 : i32
    %c0_i32_0 = arith.constant 0 : i32
    %c0_i32_1 = arith.constant 0 : i32
    return %c0_i32, %c0_i32_0 : i32, i32
  }
  func.func @transform_3(%arg0: i32) -> (i32, i32) {
    %c0_i32 = arith.constant 0 : i32
    %c0_i32_0 = arith.constant 0 : i32
    return %c0_i32, %arg0 : i32, i32
  }
}

module attributes {stable_mosaic.version = 11 : i64} {
  func.func @_conv_mm_kernel(%arg0: i32, %arg1: memref<16x72xbf16, #tpu.memory_space<vmem>>, %arg2: memref<72x128xbf16, #tpu.memory_space<vmem>>, %arg3: memref<16x1xf32, #tpu.memory_space<vmem>>, %arg4: memref<16x128xf32, #tpu.memory_space<vmem>>) attributes {dimension_semantics = [#tpu.dimension_semantics<parallel>], iteration_bounds = array<i64: 1>, scalar_prefetch = 0 : i64, scratch_operands = 0 : i64, tpu.core_type = #tpu.core_type<tc>, window_params = [{pipeline_mode = #tpu.pipeline_mode<synchronous>, transform_indices = @transform_0, window_bounds = array<i64: 16, 72>}, {transform_indices = @transform_1, window_bounds = array<i64: 72, 128>}, {pipeline_mode = #tpu.pipeline_mode<synchronous>, transform_indices = @transform_2, window_bounds = array<i64: 16, 1>}, {transform_indices = @transform_3, window_bounds = array<i64: 16, 128>}]} {
    %c0 = arith.constant 0 : index
    %c0_0 = arith.constant 0 : index
    %0 = vector.load %arg1[%c0, %c0_0] : memref<16x72xbf16, #tpu.memory_space<vmem>>, vector<16x72xbf16>
    %c0_1 = arith.constant 0 : index
    %c0_2 = arith.constant 0 : index
    %1 = vector.load %arg2[%c0_1, %c0_2] : memref<72x128xbf16, #tpu.memory_space<vmem>>, vector<72x128xbf16>
    %cst = arith.constant dense<0.000000e+00> : vector<16x128xf32>
    %2 = tpu.matmul %0, %1, %cst {dimension_numbers = #tpu.dot_dimension_numbers<[1], [0], [0], [1], [0, 0, 1, 1], [], []>} : vector<16x72xbf16>, vector<72x128xbf16>, vector<16x128xf32> -> vector<16x128xf32>
    %c0_3 = arith.constant 0 : index
    %c0_4 = arith.constant 0 : index
    %3 = vector.load %arg3[%c0_3, %c0_4] : memref<16x1xf32, #tpu.memory_space<vmem>>, vector<16x1xf32>
    %4 = vector.broadcast %3 : vector<16x1xf32> to vector<16x128xf32>
    %5 = arith.addf %2, %4 : vector<16x128xf32>
    %cst_5 = arith.constant 0.000000e+00 : f32
    %6 = vector.broadcast %cst_5 : f32 to vector<16x128xf32>
    %7 = arith.cmpf ogt, %5, %6 : vector<16x128xf32>
    %cst_6 = arith.constant 1.000000e-01 : f32
    %8 = vector.broadcast %cst_6 : f32 to vector<16x128xf32>
    %9 = arith.mulf %8, %5 : vector<16x128xf32>
    %10 = arith.select %7, %5, %9 : vector<16x128xi1>, vector<16x128xf32>
    %c0_7 = arith.constant 0 : index
    %c0_8 = arith.constant 0 : index
    %11 = vector.load %arg4[%c0_7, %c0_8] : memref<16x128xf32, #tpu.memory_space<vmem>>, vector<16x128xf32>
    tpu.vector_store %arg4[%c0_7, %c0_8], %10 {strides = array<i32>} : memref<16x128xf32, #tpu.memory_space<vmem>>, vector<16x128xf32>,
    return
  }
  func.func @transform_0(%arg0: i32) -> (i32, i32) {
    %c0_i32 = arith.constant 0 : i32
    %c0_i32_0 = arith.constant 0 : i32
    %c0_i32_1 = arith.constant 0 : i32
    return %c0_i32, %c0_i32_0 : i32, i32
  }
  func.func @transform_1(%arg0: i32) -> (i32, i32) {
    %c0_i32 = arith.constant 0 : i32
    %c0_i32_0 = arith.constant 0 : i32
    return %c0_i32, %arg0 : i32, i32
  }
  func.func @transform_2(%arg0: i32) -> (i32, i32) {
    %c0_i32 = arith.constant 0 : i32
    %c0_i32_0 = arith.constant 0 : i32
    %c0_i32_1 = arith.constant 0 : i32
    return %c0_i32, %c0_i32_0 : i32, i32
  }
  func.func @transform_3(%arg0: i32) -> (i32, i32) {
    %c0_i32 = arith.constant 0 : i32
    %c0_i32_0 = arith.constant 0 : i32
    return %c0_i32, %arg0 : i32, i32
  }
}

module attributes {stable_mosaic.version = 11 : i64} {
  func.func @_conv_mm_res_kernel(%arg0: i32, %arg1: memref<16x72xbf16, #tpu.memory_space<vmem>>, %arg2: memref<72x128xbf16, #tpu.memory_space<vmem>>, %arg3: memref<16x1xf32, #tpu.memory_space<vmem>>, %arg4: memref<16x128xf32, #tpu.memory_space<vmem>>, %arg5: memref<16x128xf32, #tpu.memory_space<vmem>>) attributes {dimension_semantics = [#tpu.dimension_semantics<parallel>], iteration_bounds = array<i64: 1>, scalar_prefetch = 0 : i64, scratch_operands = 0 : i64, tpu.core_type = #tpu.core_type<tc>, window_params = [{pipeline_mode = #tpu.pipeline_mode<synchronous>, transform_indices = @transform_0, window_bounds = array<i64: 16, 72>}, {transform_indices = @transform_1, window_bounds = array<i64: 72, 128>}, {pipeline_mode = #tpu.pipeline_mode<synchronous>, transform_indices = @transform_2, window_bounds = array<i64: 16, 1>}, {transform_indices = @transform_3, window_bounds = array<i64: 16, 128>}, {transform_indices = @transform_4, window_bounds = array<i64: 16, 128>}]} {
    %c0 = arith.constant 0 : index
    %c0_0 = arith.constant 0 : index
    %0 = vector.load %arg1[%c0, %c0_0] : memref<16x72xbf16, #tpu.memory_space<vmem>>, vector<16x72xbf16>
    %c0_1 = arith.constant 0 : index
    %c0_2 = arith.constant 0 : index
    %1 = vector.load %arg2[%c0_1, %c0_2] : memref<72x128xbf16, #tpu.memory_space<vmem>>, vector<72x128xbf16>
    %cst = arith.constant dense<0.000000e+00> : vector<16x128xf32>
    %2 = tpu.matmul %0, %1, %cst {dimension_numbers = #tpu.dot_dimension_numbers<[1], [0], [0], [1], [0, 0, 1, 1], [], []>} : vector<16x72xbf16>, vector<72x128xbf16>, vector<16x128xf32> -> vector<16x128xf32>
    %c0_3 = arith.constant 0 : index
    %c0_4 = arith.constant 0 : index
    %3 = vector.load %arg3[%c0_3, %c0_4] : memref<16x1xf32, #tpu.memory_space<vmem>>, vector<16x1xf32>
    %4 = vector.broadcast %3 : vector<16x1xf32> to vector<16x128xf32>
    %5 = arith.addf %2, %4 : vector<16x128xf32>
    %cst_5 = arith.constant 0.000000e+00 : f32
    %6 = vector.broadcast %cst_5 : f32 to vector<16x128xf32>
    %7 = arith.cmpf ogt, %5, %6 : vector<16x128xf32>
    %cst_6 = arith.constant 1.000000e-01 : f32
    %8 = vector.broadcast %cst_6 : f32 to vector<16x128xf32>
    %9 = arith.mulf %8, %5 : vector<16x128xf32>
    %10 = arith.select %7, %5, %9 : vector<16x128xi1>, vector<16x128xf32>
    %c0_7 = arith.constant 0 : index
    %c0_8 = arith.constant 0 : index
    %11 = vector.load %arg4[%c0_7, %c0_8] : memref<16x128xf32, #tpu.memory_space<vmem>>, vector<16x128xf32>
    %12 = arith.addf %10, %11 : vector<16x128xf32>
    %c0_9 = arith.constant 0 : index
    %c0_10 = arith.constant 0 : index
    %13 = vector.load %arg5[%c0_9, %c0_10] : memref<16x128xf32, #tpu.memory_space<vmem>>, vector<16x128xf32>
    tpu.vector_store %arg5[%c0_9, %c0_10], %12 {strides = array<i32>} : memref<16x128xf32, #tpu.memory_space<vmem>>, vector<16x128xf32>,
    return
  }
  func.func @transform_0(%arg0: i32) -> (i32, i32) {
    %c0_i32 = arith.constant 0 : i32
    %c0_i32_0 = arith.constant 0 : i32
    %c0_i32_1 = arith.constant 0 : i32
    return %c0_i32, %c0_i32_0 : i32, i32
  }
  func.func @transform_1(%arg0: i32) -> (i32, i32) {
    %c0_i32 = arith.constant 0 : i32
    %c0_i32_0 = arith.constant 0 : i32
    return %c0_i32, %arg0 : i32, i32
  }
  func.func @transform_2(%arg0: i32) -> (i32, i32) {
    %c0_i32 = arith.constant 0 : i32
    %c0_i32_0 = arith.constant 0 : i32
    %c0_i32_1 = arith.constant 0 : i32
    return %c0_i32, %c0_i32_0 : i32, i32
  }
  func.func @transform_3(%arg0: i32) -> (i32, i32) {
    %c0_i32 = arith.constant 0 : i32
    %c0_i32_0 = arith.constant 0 : i32
    return %c0_i32, %arg0 : i32, i32
  }
  func.func @transform_4(%arg0: i32) -> (i32, i32) {
    %c0_i32 = arith.constant 0 : i32
    %c0_i32_0 = arith.constant 0 : i32
    return %c0_i32, %arg0 : i32, i32
  }
}

module attributes {stable_mosaic.version = 11 : i64} {
  func.func @_maxpool4_kernel(%arg0: i32, %arg1: memref<4x512xf32, #tpu.memory_space<vmem>>, %arg2: memref<1x512xf32, #tpu.memory_space<vmem>>) attributes {dimension_semantics = [#tpu.dimension_semantics<parallel>], iteration_bounds = array<i64: 1>, scalar_prefetch = 0 : i64, scratch_operands = 0 : i64, tpu.core_type = #tpu.core_type<tc>, window_params = [{transform_indices = @transform_0, window_bounds = array<i64: 4, 512>}, {transform_indices = @transform_1, window_bounds = array<i64: 1, 512>}]} {
    %c0 = arith.constant 0 : index
    %c0_0 = arith.constant 0 : index
    %0 = vector.load %arg1[%c0, %c0_0] : memref<4x512xf32, #tpu.memory_space<vmem>>, vector<4x512xf32>
    %1 = vector.extract_strided_slice %0 {offsets = [0, 0], sizes = [1, 512], strides = [1, 1]} : vector<4x512xf32> to vector<1x512xf32>
    %2 = vector.extract_strided_slice %0 {offsets = [1, 0], sizes = [1, 512], strides = [1, 1]} : vector<4x512xf32> to vector<1x512xf32>
    %3 = arith.maximumf %1, %2 : vector<1x512xf32>
    %4 = vector.extract_strided_slice %0 {offsets = [2, 0], sizes = [1, 512], strides = [1, 1]} : vector<4x512xf32> to vector<1x512xf32>
    %5 = vector.extract_strided_slice %0 {offsets = [3, 0], sizes = [1, 512], strides = [1, 1]} : vector<4x512xf32> to vector<1x512xf32>
    %6 = arith.maximumf %4, %5 : vector<1x512xf32>
    %7 = arith.maximumf %3, %6 : vector<1x512xf32>
    %c0_1 = arith.constant 0 : index
    %c0_2 = arith.constant 0 : index
    %8 = vector.load %arg2[%c0_1, %c0_2] : memref<1x512xf32, #tpu.memory_space<vmem>>, vector<1x512xf32>
    tpu.vector_store %arg2[%c0_1, %c0_2], %7 {strides = array<i32>} : memref<1x512xf32, #tpu.memory_space<vmem>>, vector<1x512xf32>,
    return
  }
  func.func @transform_0(%arg0: i32) -> (i32, i32) {
    %c0_i32 = arith.constant 0 : i32
    %c0_i32_0 = arith.constant 0 : i32
    return %c0_i32, %arg0 : i32, i32
  }
  func.func @transform_1(%arg0: i32) -> (i32, i32) {
    %c0_i32 = arith.constant 0 : i32
    %c0_i32_0 = arith.constant 0 : i32
    return %c0_i32, %arg0 : i32, i32
  }
}

module attributes {stable_mosaic.version = 11 : i64} {
  func.func @_conv_mm_kernel(%arg0: i32, %arg1: memref<32x144xbf16, #tpu.memory_space<vmem>>, %arg2: memref<144x128xbf16, #tpu.memory_space<vmem>>, %arg3: memref<32x1xf32, #tpu.memory_space<vmem>>, %arg4: memref<32x128xf32, #tpu.memory_space<vmem>>) attributes {dimension_semantics = [#tpu.dimension_semantics<parallel>], iteration_bounds = array<i64: 1>, scalar_prefetch = 0 : i64, scratch_operands = 0 : i64, tpu.core_type = #tpu.core_type<tc>, window_params = [{pipeline_mode = #tpu.pipeline_mode<synchronous>, transform_indices = @transform_0, window_bounds = array<i64: 32, 144>}, {transform_indices = @transform_1, window_bounds = array<i64: 144, 128>}, {pipeline_mode = #tpu.pipeline_mode<synchronous>, transform_indices = @transform_2, window_bounds = array<i64: 32, 1>}, {transform_indices = @transform_3, window_bounds = array<i64: 32, 128>}]} {
    %c0 = arith.constant 0 : index
    %c0_0 = arith.constant 0 : index
    %0 = vector.load %arg1[%c0, %c0_0] : memref<32x144xbf16, #tpu.memory_space<vmem>>, vector<32x144xbf16>
    %c0_1 = arith.constant 0 : index
    %c0_2 = arith.constant 0 : index
    %1 = vector.load %arg2[%c0_1, %c0_2] : memref<144x128xbf16, #tpu.memory_space<vmem>>, vector<144x128xbf16>
    %cst = arith.constant dense<0.000000e+00> : vector<32x128xf32>
    %2 = tpu.matmul %0, %1, %cst {dimension_numbers = #tpu.dot_dimension_numbers<[1], [0], [0], [1], [0, 0, 1, 1], [], []>} : vector<32x144xbf16>, vector<144x128xbf16>, vector<32x128xf32> -> vector<32x128xf32>
    %c0_3 = arith.constant 0 : index
    %c0_4 = arith.constant 0 : index
    %3 = vector.load %arg3[%c0_3, %c0_4] : memref<32x1xf32, #tpu.memory_space<vmem>>, vector<32x1xf32>
    %4 = vector.broadcast %3 : vector<32x1xf32> to vector<32x128xf32>
    %5 = arith.addf %2, %4 : vector<32x128xf32>
    %cst_5 = arith.constant 0.000000e+00 : f32
    %6 = vector.broadcast %cst_5 : f32 to vector<32x128xf32>
    %7 = arith.cmpf ogt, %5, %6 : vector<32x128xf32>
    %cst_6 = arith.constant 1.000000e-01 : f32
    %8 = vector.broadcast %cst_6 : f32 to vector<32x128xf32>
    %9 = arith.mulf %8, %5 : vector<32x128xf32>
    %10 = arith.select %7, %5, %9 : vector<32x128xi1>, vector<32x128xf32>
    %c0_7 = arith.constant 0 : index
    %c0_8 = arith.constant 0 : index
    %11 = vector.load %arg4[%c0_7, %c0_8] : memref<32x128xf32, #tpu.memory_space<vmem>>, vector<32x128xf32>
    tpu.vector_store %arg4[%c0_7, %c0_8], %10 {strides = array<i32>} : memref<32x128xf32, #tpu.memory_space<vmem>>, vector<32x128xf32>,
    return
  }
  func.func @transform_0(%arg0: i32) -> (i32, i32) {
    %c0_i32 = arith.constant 0 : i32
    %c0_i32_0 = arith.constant 0 : i32
    %c0_i32_1 = arith.constant 0 : i32
    return %c0_i32, %c0_i32_0 : i32, i32
  }
  func.func @transform_1(%arg0: i32) -> (i32, i32) {
    %c0_i32 = arith.constant 0 : i32
    %c0_i32_0 = arith.constant 0 : i32
    return %c0_i32, %arg0 : i32, i32
  }
  func.func @transform_2(%arg0: i32) -> (i32, i32) {
    %c0_i32 = arith.constant 0 : i32
    %c0_i32_0 = arith.constant 0 : i32
    %c0_i32_1 = arith.constant 0 : i32
    return %c0_i32, %c0_i32_0 : i32, i32
  }
  func.func @transform_3(%arg0: i32) -> (i32, i32) {
    %c0_i32 = arith.constant 0 : i32
    %c0_i32_0 = arith.constant 0 : i32
    return %c0_i32, %arg0 : i32, i32
  }
}

module attributes {stable_mosaic.version = 11 : i64} {
  func.func @_conv_mm_kernel(%arg0: i32, %arg1: memref<21x32xbf16, #tpu.memory_space<vmem>>, %arg2: memref<32x128xbf16, #tpu.memory_space<vmem>>, %arg3: memref<21x1xf32, #tpu.memory_space<vmem>>, %arg4: memref<21x128xf32, #tpu.memory_space<vmem>>) attributes {dimension_semantics = [#tpu.dimension_semantics<parallel>], iteration_bounds = array<i64: 1>, scalar_prefetch = 0 : i64, scratch_operands = 0 : i64, tpu.core_type = #tpu.core_type<tc>, window_params = [{pipeline_mode = #tpu.pipeline_mode<synchronous>, transform_indices = @transform_0, window_bounds = array<i64: 21, 32>}, {transform_indices = @transform_1, window_bounds = array<i64: 32, 128>}, {pipeline_mode = #tpu.pipeline_mode<synchronous>, transform_indices = @transform_2, window_bounds = array<i64: 21, 1>}, {transform_indices = @transform_3, window_bounds = array<i64: 21, 128>}]} {
    %c0 = arith.constant 0 : index
    %c0_0 = arith.constant 0 : index
    %0 = vector.load %arg1[%c0, %c0_0] : memref<21x32xbf16, #tpu.memory_space<vmem>>, vector<21x32xbf16>
    %c0_1 = arith.constant 0 : index
    %c0_2 = arith.constant 0 : index
    %1 = vector.load %arg2[%c0_1, %c0_2] : memref<32x128xbf16, #tpu.memory_space<vmem>>, vector<32x128xbf16>
    %cst = arith.constant dense<0.000000e+00> : vector<21x128xf32>
    %2 = tpu.matmul %0, %1, %cst {dimension_numbers = #tpu.dot_dimension_numbers<[1], [0], [0], [1], [0, 0, 1, 1], [], []>} : vector<21x32xbf16>, vector<32x128xbf16>, vector<21x128xf32> -> vector<21x128xf32>
    %c0_3 = arith.constant 0 : index
    %c0_4 = arith.constant 0 : index
    %3 = vector.load %arg3[%c0_3, %c0_4] : memref<21x1xf32, #tpu.memory_space<vmem>>, vector<21x1xf32>
    %4 = vector.broadcast %3 : vector<21x1xf32> to vector<21x128xf32>
    %5 = arith.addf %2, %4 : vector<21x128xf32>
    %c0_5 = arith.constant 0 : index
    %c0_6 = arith.constant 0 : index
    %6 = vector.load %arg4[%c0_5, %c0_6] : memref<21x128xf32, #tpu.memory_space<vmem>>, vector<21x128xf32>
    tpu.vector_store %arg4[%c0_5, %c0_6], %5 {strides = array<i32>} : memref<21x128xf32, #tpu.memory_space<vmem>>, vector<21x128xf32>,
    return
  }
  func.func @transform_0(%arg0: i32) -> (i32, i32) {
    %c0_i32 = arith.constant 0 : i32
    %c0_i32_0 = arith.constant 0 : i32
    %c0_i32_1 = arith.constant 0 : i32
    return %c0_i32, %c0_i32_0 : i32, i32
  }
  func.func @transform_1(%arg0: i32) -> (i32, i32) {
    %c0_i32 = arith.constant 0 : i32
    %c0_i32_0 = arith.constant 0 : i32
    return %c0_i32, %arg0 : i32, i32
  }
  func.func @transform_2(%arg0: i32) -> (i32, i32) {
    %c0_i32 = arith.constant 0 : i32
    %c0_i32_0 = arith.constant 0 : i32
    %c0_i32_1 = arith.constant 0 : i32
    return %c0_i32, %c0_i32_0 : i32, i32
  }
  func.func @transform_3(%arg0: i32) -> (i32, i32) {
    %c0_i32 = arith.constant 0 : i32
    %c0_i32_0 = arith.constant 0 : i32
    return %c0_i32, %arg0 : i32, i32
  }
}

module attributes {stable_mosaic.version = 11 : i64} {
  func.func @_yolo_kernel(%arg0: memref<7x128xf32, #tpu.memory_space<vmem>>, %arg1: memref<4x128xf32, #tpu.memory_space<vmem>>, %arg2: memref<7x128xf32, #tpu.memory_space<vmem>>) attributes {dimension_semantics = [], scalar_prefetch = 0 : i64, scratch_operands = 0 : i64, tpu.core_type = #tpu.core_type<tc>} {
    %c0 = arith.constant 0 : index
    %c0_0 = arith.constant 0 : index
    %0 = vector.load %arg0[%c0, %c0_0] : memref<7x128xf32, #tpu.memory_space<vmem>>, vector<2x128xf32>
    %1 = arith.negf %0 : vector<2x128xf32>
    %2 = math.exp %1 : vector<2x128xf32>
    %cst = arith.constant 1.000000e+00 : f32
    %3 = vector.broadcast %cst : f32 to vector<2x128xf32>
    %4 = arith.addf %3, %2 : vector<2x128xf32>
    %5 = arith.divf %3, %4 : vector<2x128xf32>
    %c0_1 = arith.constant 0 : index
    %c0_2 = arith.constant 0 : index
    %6 = vector.load %arg1[%c0_1, %c0_2] : memref<4x128xf32, #tpu.memory_space<vmem>>, vector<2x128xf32>
    %7 = arith.addf %5, %6 : vector<2x128xf32>
    %cst_3 = arith.constant 4.000000e+00 : f32
    %8 = vector.broadcast %cst_3 : f32 to vector<2x128xf32>
    %9 = arith.mulf %7, %8 : vector<2x128xf32>
    %c0_4 = arith.constant 0 : index
    %c0_5 = arith.constant 0 : index
    %10 = vector.load %arg2[%c0_4, %c0_5] : memref<7x128xf32, #tpu.memory_space<vmem>>, vector<2x128xf32>
    tpu.vector_store %arg2[%c0_4, %c0_5], %9 {strides = array<i32>} : memref<7x128xf32, #tpu.memory_space<vmem>>, vector<2x128xf32>,
    %c2 = arith.constant 2 : index
    %c0_6 = arith.constant 0 : index
    %11 = vector.load %arg0[%c2, %c0_6] : memref<7x128xf32, #tpu.memory_space<vmem>>, vector<2x128xf32>
    %12 = math.exp %11 : vector<2x128xf32>
    %c2_7 = arith.constant 2 : index
    %c0_8 = arith.constant 0 : index
    %13 = vector.load %arg1[%c2_7, %c0_8] : memref<4x128xf32, #tpu.memory_space<vmem>>, vector<2x128xf32>
    %14 = arith.mulf %12, %13 : vector<2x128xf32>
    %cst_9 = arith.constant 4.000000e+00 : f32
    %15 = vector.broadcast %cst_9 : f32 to vector<2x128xf32>
    %16 = arith.mulf %14, %15 : vector<2x128xf32>
    %c2_10 = arith.constant 2 : index
    %c0_11 = arith.constant 0 : index
    %17 = vector.load %arg2[%c2_10, %c0_11] : memref<7x128xf32, #tpu.memory_space<vmem>>, vector<2x128xf32>
    tpu.vector_store %arg2[%c2_10, %c0_11], %16 {strides = array<i32>} : memref<7x128xf32, #tpu.memory_space<vmem>>, vector<2x128xf32>,
    %c4 = arith.constant 4 : index
    %c0_12 = arith.constant 0 : index
    %18 = vector.load %arg0[%c4, %c0_12] : memref<7x128xf32, #tpu.memory_space<vmem>>, vector<3x128xf32>
    %19 = arith.negf %18 : vector<3x128xf32>
    %20 = math.exp %19 : vector<3x128xf32>
    %cst_13 = arith.constant 1.000000e+00 : f32
    %21 = vector.broadcast %cst_13 : f32 to vector<3x128xf32>
    %22 = arith.addf %21, %20 : vector<3x128xf32>
    %23 = arith.divf %21, %22 : vector<3x128xf32>
    %c4_14 = arith.constant 4 : index
    %c0_15 = arith.constant 0 : index
    %24 = vector.load %arg2[%c4_14, %c0_15] : memref<7x128xf32, #tpu.memory_space<vmem>>, vector<3x128xf32>
    tpu.vector_store %arg2[%c4_14, %c0_15], %23 {strides = array<i32>} : memref<7x128xf32, #tpu.memory_space<vmem>>, vector<3x128xf32>,
    return
  }
}

module attributes {stable_mosaic.version = 11 : i64} {
  func.func @_conv_mm_kernel(%arg0: i32, %arg1: memref<16x216xbf16, #tpu.memory_space<vmem>>, %arg2: memref<216x128xbf16, #tpu.memory_space<vmem>>, %arg3: memref<16x1xf32, #tpu.memory_space<vmem>>, %arg4: memref<16x128xf32, #tpu.memory_space<vmem>>) attributes {dimension_semantics = [#tpu.dimension_semantics<parallel>], iteration_bounds = array<i64: 1>, scalar_prefetch = 0 : i64, scratch_operands = 0 : i64, tpu.core_type = #tpu.core_type<tc>, window_params = [{pipeline_mode = #tpu.pipeline_mode<synchronous>, transform_indices = @transform_0, window_bounds = array<i64: 16, 216>}, {transform_indices = @transform_1, window_bounds = array<i64: 216, 128>}, {pipeline_mode = #tpu.pipeline_mode<synchronous>, transform_indices = @transform_2, window_bounds = array<i64: 16, 1>}, {transform_indices = @transform_3, window_bounds = array<i64: 16, 128>}]} {
    %c0 = arith.constant 0 : index
    %c0_0 = arith.constant 0 : index
    %0 = vector.load %arg1[%c0, %c0_0] : memref<16x216xbf16, #tpu.memory_space<vmem>>, vector<16x216xbf16>
    %c0_1 = arith.constant 0 : index
    %c0_2 = arith.constant 0 : index
    %1 = vector.load %arg2[%c0_1, %c0_2] : memref<216x128xbf16, #tpu.memory_space<vmem>>, vector<216x128xbf16>
    %cst = arith.constant dense<0.000000e+00> : vector<16x128xf32>
    %2 = tpu.matmul %0, %1, %cst {dimension_numbers = #tpu.dot_dimension_numbers<[1], [0], [0], [1], [0, 0, 1, 1], [], []>} : vector<16x216xbf16>, vector<216x128xbf16>, vector<16x128xf32> -> vector<16x128xf32>
    %c0_3 = arith.constant 0 : index
    %c0_4 = arith.constant 0 : index
    %3 = vector.load %arg3[%c0_3, %c0_4] : memref<16x1xf32, #tpu.memory_space<vmem>>, vector<16x1xf32>
    %4 = vector.broadcast %3 : vector<16x1xf32> to vector<16x128xf32>
    %5 = arith.addf %2, %4 : vector<16x128xf32>
    %cst_5 = arith.constant 0.000000e+00 : f32
    %6 = vector.broadcast %cst_5 : f32 to vector<16x128xf32>
    %7 = arith.cmpf ogt, %5, %6 : vector<16x128xf32>
    %cst_6 = arith.constant 1.000000e-01 : f32
    %8 = vector.broadcast %cst_6 : f32 to vector<16x128xf32>
    %9 = arith.mulf %8, %5 : vector<16x128xf32>
    %10 = arith.select %7, %5, %9 : vector<16x128xi1>, vector<16x128xf32>
    %c0_7 = arith.constant 0 : index
    %c0_8 = arith.constant 0 : index
    %11 = vector.load %arg4[%c0_7, %c0_8] : memref<16x128xf32, #tpu.memory_space<vmem>>, vector<16x128xf32>
    tpu.vector_store %arg4[%c0_7, %c0_8], %10 {strides = array<i32>} : memref<16x128xf32, #tpu.memory_space<vmem>>, vector<16x128xf32>,
    return
  }
  func.func @transform_0(%arg0: i32) -> (i32, i32) {
    %c0_i32 = arith.constant 0 : i32
    %c0_i32_0 = arith.constant 0 : i32
    %c0_i32_1 = arith.constant 0 : i32
    return %c0_i32, %c0_i32_0 : i32, i32
  }
  func.func @transform_1(%arg0: i32) -> (i32, i32) {
    %c0_i32 = arith.constant 0 : i32
    %c0_i32_0 = arith.constant 0 : i32
    return %c0_i32, %arg0 : i32, i32
  }
  func.func @transform_2(%arg0: i32) -> (i32, i32) {
    %c0_i32 = arith.constant 0 : i32
    %c0_i32_0 = arith.constant 0 : i32
    %c0_i32_1 = arith.constant 0 : i32
    return %c0_i32, %c0_i32_0 : i32, i32
  }
  func.func @transform_3(%arg0: i32) -> (i32, i32) {
    %c0_i32 = arith.constant 0 : i32
    %c0_i32_0 = arith.constant 0 : i32
    return %c0_i32, %arg0 : i32, i32
  }
}

module attributes {stable_mosaic.version = 11 : i64} {
  func.func @_conv_mm_kernel(%arg0: i32, %arg1: memref<21x16xbf16, #tpu.memory_space<vmem>>, %arg2: memref<16x128xbf16, #tpu.memory_space<vmem>>, %arg3: memref<21x1xf32, #tpu.memory_space<vmem>>, %arg4: memref<21x128xf32, #tpu.memory_space<vmem>>) attributes {dimension_semantics = [#tpu.dimension_semantics<parallel>], iteration_bounds = array<i64: 1>, scalar_prefetch = 0 : i64, scratch_operands = 0 : i64, tpu.core_type = #tpu.core_type<tc>, window_params = [{pipeline_mode = #tpu.pipeline_mode<synchronous>, transform_indices = @transform_0, window_bounds = array<i64: 21, 16>}, {transform_indices = @transform_1, window_bounds = array<i64: 16, 128>}, {pipeline_mode = #tpu.pipeline_mode<synchronous>, transform_indices = @transform_2, window_bounds = array<i64: 21, 1>}, {transform_indices = @transform_3, window_bounds = array<i64: 21, 128>}]} {
    %c0 = arith.constant 0 : index
    %c0_0 = arith.constant 0 : index
    %0 = vector.load %arg1[%c0, %c0_0] : memref<21x16xbf16, #tpu.memory_space<vmem>>, vector<21x16xbf16>
    %c0_1 = arith.constant 0 : index
    %c0_2 = arith.constant 0 : index
    %1 = vector.load %arg2[%c0_1, %c0_2] : memref<16x128xbf16, #tpu.memory_space<vmem>>, vector<16x128xbf16>
    %cst = arith.constant dense<0.000000e+00> : vector<21x128xf32>
    %2 = tpu.matmul %0, %1, %cst {dimension_numbers = #tpu.dot_dimension_numbers<[1], [0], [0], [1], [0, 0, 1, 1], [], []>} : vector<21x16xbf16>, vector<16x128xbf16>, vector<21x128xf32> -> vector<21x128xf32>
    %c0_3 = arith.constant 0 : index
    %c0_4 = arith.constant 0 : index
    %3 = vector.load %arg3[%c0_3, %c0_4] : memref<21x1xf32, #tpu.memory_space<vmem>>, vector<21x1xf32>
    %4 = vector.broadcast %3 : vector<21x1xf32> to vector<21x128xf32>
    %5 = arith.addf %2, %4 : vector<21x128xf32>
    %c0_5 = arith.constant 0 : index
    %c0_6 = arith.constant 0 : index
    %6 = vector.load %arg4[%c0_5, %c0_6] : memref<21x128xf32, #tpu.memory_space<vmem>>, vector<21x128xf32>
    tpu.vector_store %arg4[%c0_5, %c0_6], %5 {strides = array<i32>} : memref<21x128xf32, #tpu.memory_space<vmem>>, vector<21x128xf32>,
    return
  }
  func.func @transform_0(%arg0: i32) -> (i32, i32) {
    %c0_i32 = arith.constant 0 : i32
    %c0_i32_0 = arith.constant 0 : i32
    %c0_i32_1 = arith.constant 0 : i32
    return %c0_i32, %c0_i32_0 : i32, i32
  }
  func.func @transform_1(%arg0: i32) -> (i32, i32) {
    %c0_i32 = arith.constant 0 : i32
    %c0_i32_0 = arith.constant 0 : i32
    return %c0_i32, %arg0 : i32, i32
  }
  func.func @transform_2(%arg0: i32) -> (i32, i32) {
    %c0_i32 = arith.constant 0 : i32
    %c0_i32_0 = arith.constant 0 : i32
    %c0_i32_1 = arith.constant 0 : i32
    return %c0_i32, %c0_i32_0 : i32, i32
  }
  func.func @transform_3(%arg0: i32) -> (i32, i32) {
    %c0_i32 = arith.constant 0 : i32
    %c0_i32_0 = arith.constant 0 : i32
    return %c0_i32, %arg0 : i32, i32
  }
}

module attributes {stable_mosaic.version = 11 : i64} {
  func.func @_yolo_kernel(%arg0: memref<7x384xf32, #tpu.memory_space<vmem>>, %arg1: memref<4x384xf32, #tpu.memory_space<vmem>>, %arg2: memref<7x384xf32, #tpu.memory_space<vmem>>) attributes {dimension_semantics = [], scalar_prefetch = 0 : i64, scratch_operands = 0 : i64, tpu.core_type = #tpu.core_type<tc>} {
    %c0 = arith.constant 0 : index
    %c0_0 = arith.constant 0 : index
    %0 = vector.load %arg0[%c0, %c0_0] : memref<7x384xf32, #tpu.memory_space<vmem>>, vector<2x384xf32>
    %1 = arith.negf %0 : vector<2x384xf32>
    %2 = math.exp %1 : vector<2x384xf32>
    %cst = arith.constant 1.000000e+00 : f32
    %3 = vector.broadcast %cst : f32 to vector<2x384xf32>
    %4 = arith.addf %3, %2 : vector<2x384xf32>
    %5 = arith.divf %3, %4 : vector<2x384xf32>
    %c0_1 = arith.constant 0 : index
    %c0_2 = arith.constant 0 : index
    %6 = vector.load %arg1[%c0_1, %c0_2] : memref<4x384xf32, #tpu.memory_space<vmem>>, vector<2x384xf32>
    %7 = arith.addf %5, %6 : vector<2x384xf32>
    %cst_3 = arith.constant 2.000000e+00 : f32
    %8 = vector.broadcast %cst_3 : f32 to vector<2x384xf32>
    %9 = arith.mulf %7, %8 : vector<2x384xf32>
    %c0_4 = arith.constant 0 : index
    %c0_5 = arith.constant 0 : index
    %10 = vector.load %arg2[%c0_4, %c0_5] : memref<7x384xf32, #tpu.memory_space<vmem>>, vector<2x384xf32>
    tpu.vector_store %arg2[%c0_4, %c0_5], %9 {strides = array<i32>} : memref<7x384xf32, #tpu.memory_space<vmem>>, vector<2x384xf32>,
    %c2 = arith.constant 2 : index
    %c0_6 = arith.constant 0 : index
    %11 = vector.load %arg0[%c2, %c0_6] : memref<7x384xf32, #tpu.memory_space<vmem>>, vector<2x384xf32>
    %12 = math.exp %11 : vector<2x384xf32>
    %c2_7 = arith.constant 2 : index
    %c0_8 = arith.constant 0 : index
    %13 = vector.load %arg1[%c2_7, %c0_8] : memref<4x384xf32, #tpu.memory_space<vmem>>, vector<2x384xf32>
    %14 = arith.mulf %12, %13 : vector<2x384xf32>
    %cst_9 = arith.constant 2.000000e+00 : f32
    %15 = vector.broadcast %cst_9 : f32 to vector<2x384xf32>
    %16 = arith.mulf %14, %15 : vector<2x384xf32>
    %c2_10 = arith.constant 2 : index
    %c0_11 = arith.constant 0 : index
    %17 = vector.load %arg2[%c2_10, %c0_11] : memref<7x384xf32, #tpu.memory_space<vmem>>, vector<2x384xf32>
    tpu.vector_store %arg2[%c2_10, %c0_11], %16 {strides = array<i32>} : memref<7x384xf32, #tpu.memory_space<vmem>>, vector<2x384xf32>,
    %c4 = arith.constant 4 : index
    %c0_12 = arith.constant 0 : index
    %18 = vector.load %arg0[%c4, %c0_12] : memref<7x384xf32, #tpu.memory_space<vmem>>, vector<3x384xf32>
    %19 = arith.negf %18 : vector<3x384xf32>
    %20 = math.exp %19 : vector<3x384xf32>
    %cst_13 = arith.constant 1.000000e+00 : f32
    %21 = vector.broadcast %cst_13 : f32 to vector<3x384xf32>
    %22 = arith.addf %21, %20 : vector<3x384xf32>
    %23 = arith.divf %21, %22 : vector<3x384xf32>
    %c4_14 = arith.constant 4 : index
    %c0_15 = arith.constant 0 : index
    %24 = vector.load %arg2[%c4_14, %c0_15] : memref<7x384xf32, #tpu.memory_space<vmem>>, vector<3x384xf32>
    tpu.vector_store %arg2[%c4_14, %c0_15], %23 {strides = array<i32>} : memref<7x384xf32, #tpu.memory_space<vmem>>, vector<3x384xf32>,
    return
  }
}

</mosaic_0001>

<llo_original>
// kernel: darknet_forward.12
$region0: #{darknet_forward.12}
  #allocation0 [shape = 'u32[]', space=smem, size = 0x4, offset = 0x4, fixed_abs, tag = 'smem constant byte address 0x4 - core index']
  #allocation1 [shape = 'u32[144,128]{1,0:T(1,128)}', space=vmem, size = 0x12000, scoped, tag = 'internal scratch']
  %s0 = inlined_call_operand.vmem [shape: bf16[8,27], index: 0, kind: input, shape index: {}]
  %s1 = inlined_call_operand.vmem [shape: bf16[27,512], index: 1, kind: input, shape index: {}]
  %s2 = inlined_call_operand.vmem [shape: f32[8,1], index: 2, kind: input, shape index: {}]
  %s3 = inlined_call_operand.vmem [shape: f32[8,512], index: 3, kind: output, shape index: {}]
  %s4 = sld [smem:[#allocation0]]
  $region83: #{darknet_forward.12} parent=0
    _
  %s6 = ssub.s32 1, %s4
  %s7 = scalar_select 0, %s6, %s4
  $region1: #{darknet_forward.12} parent=0
    #allocation2 [shape = 'u8[32768]{0}', space=vmem, size = 0x8000, scoped, tag = 'input window, operand 1']
    loop: start=0, step=1, limit=4
    $region2: #{darknet_forward.12} parent=1 // loop_pre_header
      _
    $region3: #{darknet_forward.12} parent=1 // loop_header
      %s9 = sphi 0, %s13
      %p10 = scmp.ge.s32.totalorder %s9, 4
      %s17 = sphi 0, %s17
      %s19 = sphi 0, %s17
      %s20 = sphi 0, %s19
      %s34 = sphi 0, %s20
      %s40 = sphi 0, %s42
      %s43 = sphi 0, %s40
      %s44 = sphi 0, %s43
      %s60 = sphi 0, %s44
      %s64 = sphi 0, %s64
      %s66 = sphi 0, %s64
      %s67 = sphi 0, %s66
      %s81 = sphi 0, %s67
      %s87 = sphi 0, %s89
      %s90 = sphi 0, %s87
      %s91 = sphi 0, %s90
      %s107 = sphi 0, %s91
    $region4: #{darknet_forward.12} parent=1 // loop_header_branch
      %12 = sbr.rel (%p10) target = $region8
    $region5: #{darknet_forward.12} parent=1 // loop_body
      %s14 = ssub.s32 %s9, 1
      %s15 = ssub.s32 %s9, 2
      %s16 = sadd.s32 %s9, 1
      %s18 = sadd.s32 %s17, 1
      %p21 = scmp.eq.s32.totalorder %s9, 1
      %p22 = scmp.ne.s32.totalorder %s17, %s19
      %p23 = scmp.eq.s32.totalorder %s9, 0
      %p24 = por %p22, %p23
      %p25 = scmp.ne.s32.totalorder %s17, %s19
      %p26 = scmp.eq.s32.totalorder %s14, 1
      %p27 = por %p25, %p26
      %p28 = scmp.ne.s32.totalorder %s19, %s20
      %p29 = scmp.eq.s32.totalorder %s14, 0
      %p30 = por %p28, %p29
      %p31 = scmp.ne.s32.totalorder %s19, %s20
      %p32 = scmp.eq.s32.totalorder %s15, 1
      %p33 = por %p31, %p32
      %p35 = scmp.ne.s32.totalorder %s20, %s34
      %p36 = scmp.eq.s32.totalorder %s15, 0
      %p37 = por %p35, %p36
      %s38 = ssub.s32 %s9, %s16
      %p39 = scmp.eq.s32.totalorder %s38, 0
      %s41 = sadd.s32 %s40, 1
      %s42 = scalar_select %p39, %s40, %s41
      %p45 = pneg %p39
      %p46 = scmp.eq.s32.totalorder %s9, 1
      %p47 = por %p45, %p46
      %p48 = scmp.ne.s32.totalorder %s40, %s43
      %p49 = scmp.eq.s32.totalorder %s9, 0
      %p50 = por %p48, %p49
      %p51 = scmp.ne.s32.totalorder %s40, %s43
      %p52 = scmp.eq.s32.totalorder %s14, 1
      %p53 = por %p51, %p52
      %p54 = scmp.ne.s32.totalorder %s43, %s44
      %p55 = scmp.eq.s32.totalorder %s14, 0
      %p56 = por %p54, %p55
      %p57 = scmp.ne.s32.totalorder %s43, %s44
      %p58 = scmp.eq.s32.totalorder %s15, 1
      %p59 = por %p57, %p58
      %p61 = scmp.ne.s32.totalorder %s44, %s60
      %p62 = scmp.eq.s32.totalorder %s15, 0
      %p63 = por %p61, %p62
      %s65 = sadd.s32 %s64, 1
      %p68 = scmp.eq.s32.totalorder %s9, 1
      %p69 = scmp.ne.s32.totalorder %s64, %s66
      %p70 = scmp.eq.s32.totalorder %s9, 0
      %p71 = por %p69, %p70
      %p72 = scmp.ne.s32.totalorder %s64, %s66
      %p73 = scmp.eq.s32.totalorder %s14, 1
      %p74 = por %p72, %p73
      %p75 = scmp.ne.s32.totalorder %s66, %s67
      %p76 = scmp.eq.s32.totalorder %s14, 0
      %p77 = por %p75, %p76
      %p78 = scmp.ne.s32.totalorder %s66, %s67
      %p79 = scmp.eq.s32.totalorder %s15, 1
      %p80 = por %p78, %p79
      %p82 = scmp.ne.s32.totalorder %s67, %s81
      %p83 = scmp.eq.s32.totalorder %s15, 0
      %p84 = por %p82, %p83
      %s85 = ssub.s32 %s9, %s16
      %p86 = scmp.eq.s32.totalorder %s85, 0
      %s88 = sadd.s32 %s87, 1
      %s89 = scalar_select %p86, %s87, %s88
      %p92 = pneg %p86
      %p93 = scmp.eq.s32.totalorder %s9, 1
      %p94 = por %p92, %p93
      %p95 = scmp.ne.s32.totalorder %s87, %s90
      %p96 = scmp.eq.s32.totalorder %s9, 0
      %p97 = por %p95, %p96
      %p98 = scmp.ne.s32.totalorder %s87, %s90
      %p99 = scmp.eq.s32.totalorder %s14, 1
      %p100 = por %p98, %p99
      %p101 = scmp.ne.s32.totalorder %s90, %s91
      %p102 = scmp.eq.s32.totalorder %s14, 0
      %p103 = por %p101, %p102
      %p104 = scmp.ne.s32.totalorder %s90, %s91
      %p105 = scmp.eq.s32.totalorder %s15, 1
      %p106 = por %p104, %p105
      %p108 = scmp.ne.s32.totalorder %s91, %s107
      %p109 = scmp.eq.s32.totalorder %s15, 0
      %p110 = por %p108, %p109
      %p111 = scmp.le.s32.totalorder 1, %s9
      %p112 = scmp.lt.s32.totalorder %s9, 3
      %p113 = pnand %p111, %p112
      %p114 = pneg %p113
      // Predicated region
      $region9: #{darknet_forward.12} parent=5 // pred_check
        _
      $region10: #{darknet_forward.12} parent=5 // pred_check_branch
        %116 = sbr.rel (%p113) target = $region12
      $region11: #{darknet_forward.12} parent=5 // pred_region
        %s117 = ssub.s32 %s9, 1
        // Predicated region
        $region13: #{darknet_forward.12} parent=11 // pred_check
          %p118 = pneg %p30
        $region14: #{darknet_forward.12} parent=11 // pred_check_branch
          %120 = sbr.rel (%p118) target = $region16
        $region15: #{darknet_forward.12} parent=11 // pred_region
          _
        $region16: #{darknet_forward.12} parent=11 // pred_fallthru
          _
        // Predicated region
        $region17: #{darknet_forward.12} parent=11 // pred_check
          %p121 = pneg %p77
        $region18: #{darknet_forward.12} parent=11 // pred_check_branch
          %123 = sbr.rel (%p121) target = $region20
        $region19: #{darknet_forward.12} parent=11 // pred_region
          _
        $region20: #{darknet_forward.12} parent=11 // pred_fallthru
          _
      $region12: #{darknet_forward.12} parent=5 // pred_fallthru
        _
      %p124 = scmp.lt.s32.totalorder %s9, 2
      // Predicated region
      $region21: #{darknet_forward.12} parent=5 // pred_check
        %p125 = pneg %p124
      $region22: #{darknet_forward.12} parent=5 // pred_check_branch
        %127 = sbr.rel (%p125) target = $region24
      $region23: #{darknet_forward.12} parent=5 // pred_region
        // Predicated region
        $region25: #{darknet_forward.12} parent=23 // pred_check
          %p128 = pneg %p50
        $region26: #{darknet_forward.12} parent=23 // pred_check_branch
          %130 = sbr.rel (%p128) target = $region28
        $region27: #{darknet_forward.12} parent=23 // pred_region
          %s131 = sand.u32 %s40, 1
          %s132 = sand.u32 %s40, 1
          %s133 = smul.addr %s132, 32
          %s134 = scalar_lea.vmem [#allocation2], %s133
          %s135 = smul.u32 2, %s9
          %s136 = smul.addr %s135, 4
          %s137 = scalar_lea.vmem %s1, %s136
          // Predicated region
          $region29: #{darknet_forward.12} parent=27 // pred_check
            _
          $region30: #{darknet_forward.12} parent=27 // pred_check_branch
            %139 = sbr.rel (0) target = $region32
          $region31: #{darknet_forward.12} parent=27 // pred_region
            // Predicated region
            $region33: #{darknet_forward.12} parent=31 // pred_check
              _
            $region34: #{darknet_forward.12} parent=31 // pred_check_branch
              %141 = sbr.rel (0) target = $region36
            $region35: #{darknet_forward.12} parent=31 // pred_region
              // Predicated region
              $region48: #{darknet_forward.12} parent=35 // pred_check
                _
              $region49: #{darknet_forward.12} parent=35 // pred_check_branch
                %162 = sbr.rel (0) target = $region51
              $region50: #{darknet_forward.12} parent=35 // pred_region
                loop: start=0, step=1, limit=1
                $region52: #{darknet_forward.12} parent=50 // loop_pre_header
                  _
                $region53: #{darknet_forward.12} parent=50 // loop_header
                  %s164 = sphi 0, %s168
                  %p165 = scmp.ge.s32.totalorder %s164, 1
                  %s169 = sphi %s137, %s137
                  %s170 = sphi %s134, %s134
                $region54: #{darknet_forward.12} parent=50 // loop_header_branch
                  %167 = sbr.rel (%p165) target = $region58
                $region55: #{darknet_forward.12} parent=50 // loop_body
                  %v171 = vld [vmem:[%s169] sm:$0xff]
                  %172 = vst [vmem:[%s170] sm:$0xff] %v171
                  %v173 = vld [vmem:[%s169 + $0x10] sm:$0xff]
                  %174 = vst [vmem:[%s170 + $0x8] sm:$0xff] %v173
                  %v175 = vld [vmem:[%s169 + $0x20] sm:$0xff]
                  %176 = vst [vmem:[%s170 + $0x10] sm:$0xff] %v175
                  %v177 = vld [vmem:[%s169 + $0x30] sm:$0xff]
                  %178 = vst [vmem:[%s170 + $0x18] sm:$0xff] %v177
                $region56: #{darknet_forward.12} parent=50 // loop_footer
                  %s168 = sadd.s32 1, %s164
                $region57: #{darknet_forward.12} parent=50 // loop_footer_branch
                  %163 = sbr.rel target = $region53
                $region58: #{darknet_forward.12} parent=50 // loop_exit
                  _
              $region51: #{darknet_forward.12} parent=35 // pred_fallthru
                _
              // Predicated region
              $region59: #{darknet_forward.12} parent=35 // pred_check
                _
              $region60: #{darknet_forward.12} parent=35 // pred_check_branch
                %180 = sbr.rel target = $region62
              $region61: #{darknet_forward.12} parent=35 // pred_region
                _
              $region62: #{darknet_forward.12} parent=35 // pred_fallthru
                _
            $region36: #{darknet_forward.12} parent=31 // pred_fallthru
              _
            // Predicated region
            $region37: #{darknet_forward.12} parent=31 // pred_check
              _
            $region38: #{darknet_forward.12} parent=31 // pred_check_branch
              %143 = sbr.rel target = $region40
            $region39: #{darknet_forward.12} parent=31 // pred_region
              loop: start=0, step=1, limit=1
              $region41: #{darknet_forward.12} parent=39 // loop_pre_header
                _
              $region42: #{darknet_forward.12} parent=39 // loop_header
                %s146 = sphi 0, %s150
                %p147 = scmp.ge.s32.totalorder %s146, 1
                %s151 = sphi %s137, %s137
                %s152 = sphi %s134, %s134
              $region43: #{darknet_forward.12} parent=39 // loop_header_branch
                %149 = sbr.rel (%p147) target = $region47
              $region44: #{darknet_forward.12} parent=39 // loop_body
                %v153 = vld [vmem:[%s151] sm:$0xff]
                %154 = vst [vmem:[%s152] sm:$0xff] %v153
                %v155 = vld [vmem:[%s151 + $0x10] sm:$0xff]
                %156 = vst [vmem:[%s152 + $0x8] sm:$0xff] %v155
                %v157 = vld [vmem:[%s151 + $0x20] sm:$0xff]
                %158 = vst [vmem:[%s152 + $0x10] sm:$0xff] %v157
                %v159 = vld [vmem:[%s151 + $0x30] sm:$0xff]
                %160 = vst [vmem:[%s152 + $0x18] sm:$0xff] %v159
              $region45: #{darknet_forward.12} parent=39 // loop_footer
                %s150 = sadd.s32 1, %s146
              $region46: #{darknet_forward.12} parent=39 // loop_footer_branch
                %145 = sbr.rel target = $region42
              $region47: #{darknet_forward.12} parent=39 // loop_exit
                _
            $region40: #{darknet_forward.12} parent=31 // pred_fallthru
              _
          $region32: #{darknet_forward.12} parent=27 // pred_fallthru
            _
          %181 = vnop
        $region28: #{darknet_forward.12} parent=23 // pred_fallthru
          _
      $region24: #{darknet_forward.12} parent=5 // pred_fallthru
        _
      %p182 = scmp.le.s32.totalorder 1, %s9
      %p183 = scmp.lt.s32.totalorder %s9, 3
      %p184 = pnand %p182, %p183
      %p185 = pneg %p184
      // Predicated region
      $region63: #{darknet_forward.12} parent=5 // pred_check
        _
      $region64: #{darknet_forward.12} parent=5 // pred_check_branch
        %187 = sbr.rel (%p184) target = $region66
      $region65: #{darknet_forward.12} parent=5 // pred_region
        %s188 = ssub.s32 %s9, 1
        %s189 = sand.u32 %s43, 1
        %s190 = sand.u32 %s43, 1
        %s191 = smul.addr %s190, 32
        %s192 = scalar_lea.vmem [#allocation2], %s191
        // Predicated region
        $region67: #{darknet_forward.12} parent=65 // pred_check
          %p193 = pneg %p56
        $region68: #{darknet_forward.12} parent=65 // pred_check_branch
          %195 = sbr.rel (%p193) target = $region70
        $region69: #{darknet_forward.12} parent=65 // pred_region
          _
        $region70: #{darknet_forward.12} parent=65 // pred_fallthru
          _
        %p196 = pneg %p30
        %p197 = pneg %p27
        %s198 = sand.u32 %s43, 1
        %s199 = sand.u32 %s43, 1
        %s200 = smul.addr %s199, 32
        %s201 = scalar_lea.vmem [#allocation2], %s200
        %p202 = pneg %p56
        %p203 = pneg %p53
        %p204 = pneg %p77
        %p205 = pneg %p74
        %p206 = pneg %p103
        %p207 = pneg %p100
        %s208 = smul.u32 2, %s14
        %p209 = scmp.lt.s32.totalorder %s208, 3
        %s210 = scalar_select %p209, %s208, 3
        %s211 = smul.addr %s210, 8
        %s212 = scalar_lea.vmem %s3, %s211
        %s213 = smul.u32 2, %s14
        %s214 = smul.u32 2, %s14
        %p215 = scmp.lt.s32.totalorder %s214, 3
        %s216 = scalar_select %p215, %s214, 3
        %s217 = smul.addr %s216, 8
        %s218 = scalar_lea.vmem %s3, %s217
        %s219 = smul.u32 2, %s14
        %v221 = vld [vmem:[%s0] sm:$0xf]
        %v222 = vld [vmem:[%s192] sm:$0xff]
        %v223 = vld [vmem:[%s192 + $0x8] sm:$0xff]
        %v224 = vld [vmem:[%s192 + $0x10] sm:$0xff]
        %v225 = vld [vmem:[%s192 + $0x18] sm:$0x33]
        %v226 = vld [vmem:[%s2] sm:$0xff]
        %228 = vset.pattern.permute.xlu0 0
        %229 = vperm.xlu0 %228, %v226
        %v230 = vpop.permute.xlu0 %229
        %v236 = vunpack.c.l.b16 %v222
        %v237 = vunpack.c.h.b16 %v222
        %v238 = vunpack.c.l.b16 %v223
        %v239 = vunpack.c.h.b16 %v223
        %v240 = vunpack.c.l.b16 %v224
        %v241 = vunpack.c.h.b16 %v224
        %v242 = vunpack.c.l.b16 %v225
        %v243 = vunpack.c.h.b16 %v225
        %v244 = vpack.c.b16 %v238, %v236
        %v245 = vpack.c.b16 %v239, %v237
        %v246 = vpack.c.b16 %v242, %v240
        %v247 = vpack.c.b16 %v243, %v241
        %vm250 = vcmask 220160
        %v252 = vsel %vm250, %v221, 0
        %vm254 = vcmask 1044480
        %vm255 = vcmask 1045504
        %v256 = vsel %vm254, 4294967295, 65535
        %v257 = vsel %vm255, %v256, 0
        %v259 = vand.u32 %v246, %v257
        %v262 = vand.u32 %v247, %v257
        %264 = vmatprep.subr.bf16.mxu0 %v245
        %265 = vmatpush1.bf16.msra.mxu0 %v244
        %266 = vmatprep.subr.bf16.mxu0 %v262
        %267 = vmatpush1.bf16.msra.mxu0 %v259
        %268 = vmatprep.subr.bf16.mxu0 0
        %269 = vmatpush1.bf16.msra.mxu0 0
        %270 = vmatprep.subr.bf16.mxu0 0
        %271 = vmatpush1.bf16.msra.mxu0 0
        %272 = vmatprep.subr.bf16.mxu0 0
        %273 = vmatpush1.bf16.msra.mxu0 0
        %274 = vmatprep.subr.bf16.mxu0 0
        %275 = vmatpush1.bf16.msra.mxu0 0
        %276 = vmatprep.subr.bf16.mxu0 0
        %277 = vmatpush1.bf16.msra.mxu0 0
        %278 = vmatprep.subr.bf16.mxu0 0
        %279 = vmatpush1.bf16.msra.mxu0 0
        %280 = vmatprep.subr.bf16.mxu0 0
        %281 = vmatpush1.bf16.msra.mxu0 0
        %282 = vmatprep.subr.bf16.mxu0 0
        %283 = vmatpush1.bf16.msra.mxu0 0
        %284 = vmatprep.subr.bf16.mxu0 0
        %285 = vmatpush1.bf16.msra.mxu0 0
        %286 = vmatprep.subr.bf16.mxu0 0
        %287 = vmatpush1.bf16.msra.mxu0 0
        %288 = vmatprep.subr.bf16.mxu0 0
        %289 = vmatpush1.bf16.msra.mxu0 0
        %290 = vmatprep.subr.bf16.mxu0 0
        %291 = vmatpush1.bf16.msra.mxu0 0
        %292 = vmatprep.subr.bf16.mxu0 0
        %293 = vmatpush1.bf16.msra.mxu0 0
        %294 = vmatprep.subr.bf16.mxu0 0
        %295 = vmatpush1.bf16.msra.mxu0 0
        %296 = vmatprep.mubr.bf16.mxu0 0
        %297 = vmatmul.mubr.bf16.gmra.mrb[0].mxu0 %v252
        %v298 = vpop.f32.mrb[0].mxu0
        %v299 = vadd.f32 %v230, %v298
        %v300 = vpop.f32.mrb[0].mxu0
        %v301 = vadd.f32 %v230, %v300
        %v302 = vpop.f32.mrb[0].mxu0
        %v303 = vpop.f32.mrb[0].mxu0
        %304 = vdwg.mxu0
        %vm305 = vcmp.gt.f32.partialorder %v299, 0.0
        %vm306 = vcmp.gt.f32.partialorder %v301, 0.0
        %v307 = vmul.f32 %v299, 0.1
        %v308 = vmul.f32 %v301, 0.1
        %v309 = vsel %vm305, %v299, %v307
        %v310 = vsel %vm306, %v301, %v308
        %311 = vst [vmem:[%s218] sm:$0xff] %v309
        %312 = vst [vmem:[%s218 + $0x8] sm:$0xff] %v310
        %s313 = smul.u32 2, %s14
        %p314 = scmp.lt.s32.totalorder %s313, 3
        %s315 = scalar_select %p314, %s313, 3
        %s316 = smul.addr %s315, 8
        %s317 = scalar_lea.vmem %s3, %s316
        // Predicated region
        $region71: #{darknet_forward.12} parent=65 // pred_check
          %p318 = pneg %p100
        $region72: #{darknet_forward.12} parent=65 // pred_check_branch
          %320 = sbr.rel (%p318) target = $region74
        $region73: #{darknet_forward.12} parent=65 // pred_region
          %s321 = smul.u32 2, %s14
        $region74: #{darknet_forward.12} parent=65 // pred_fallthru
          _
      $region66: #{darknet_forward.12} parent=5 // pred_fallthru
        _
      %p322 = scmp.le.s32.totalorder 2, %s9
      // Predicated region
      $region75: #{darknet_forward.12} parent=5 // pred_check
        %p323 = pneg %p322
      $region76: #{darknet_forward.12} parent=5 // pred_check_branch
        %325 = sbr.rel (%p323) target = $region78
      $region77: #{darknet_forward.12} parent=5 // pred_region
        %s326 = ssub.s32 %s9, 2
        // Predicated region
        $region79: #{darknet_forward.12} parent=77 // pred_check
          %p327 = pneg %p106
        $region80: #{darknet_forward.12} parent=77 // pred_check_branch
          %329 = sbr.rel (%p327) target = $region82
        $region81: #{darknet_forward.12} parent=77 // pred_region
          %s330 = smul.u32 2, %s15
          %p331 = scmp.lt.s32.totalorder %s330, 3
          %s332 = scalar_select %p331, %s330, 3
          %s333 = smul.addr %s332, 8
          %s334 = scalar_lea.vmem %s3, %s333
        $region82: #{darknet_forward.12} parent=77 // pred_fallthru
          _
      $region78: #{darknet_forward.12} parent=5 // pred_fallthru
        _
    $region6: #{darknet_forward.12} parent=1 // loop_footer
      %s13 = sadd.s32 1, %s9
    $region7: #{darknet_forward.12} parent=1 // loop_footer_branch
      %8 = sbr.rel target = $region3
    $region8: #{darknet_forward.12} parent=1 // loop_exit
      _

// kernel: darknet_forward.14
$region0: #{darknet_forward.14}
  #allocation0 [shape = 'u32[]', space=smem, size = 0x4, offset = 0x4, fixed_abs, tag = 'smem constant byte address 0x4 - core index']
  #allocation1 [shape = 'u32[144,128]{1,0:T(1,128)}', space=vmem, size = 0x12000, scoped, tag = 'internal scratch']
  %s0 = inlined_call_operand.vmem [shape: bf16[8,16], index: 0, kind: input, shape index: {}]
  %s1 = inlined_call_operand.vmem [shape: bf16[16,128], index: 1, kind: input, shape index: {}]
  %s2 = inlined_call_operand.vmem [shape: f32[8,1], index: 2, kind: input, shape index: {}]
  %s3 = inlined_call_operand.vmem [shape: f32[8,128], index: 3, kind: output, shape index: {}]
  %s4 = sld [smem:[#allocation0]]
  $region22: #{darknet_forward.14} parent=0
    _
  %s6 = ssub.s32 1, %s4
  %s7 = scalar_select 0, %s6, %s4
  // Predicated region
  $region2: #{darknet_forward.14} parent=0 // pred_check
    _
  $region3: #{darknet_forward.14} parent=0 // pred_check_branch
    %9 = sbr.rel (0) target = $region5
  $region4: #{darknet_forward.14} parent=0 // pred_region
    _
  $region5: #{darknet_forward.14} parent=0 // pred_fallthru
    _
  // Predicated region
  $region6: #{darknet_forward.14} parent=0 // pred_check
    _
  $region7: #{darknet_forward.14} parent=0 // pred_check_branch
    %11 = sbr.rel (0) target = $region9
  $region8: #{darknet_forward.14} parent=0 // pred_region
    _
  $region9: #{darknet_forward.14} parent=0 // pred_fallthru
    _
  // Predicated region
  $region10: #{darknet_forward.14} parent=0 // pred_check
    _
  $region11: #{darknet_forward.14} parent=0 // pred_check_branch
    %13 = sbr.rel (0) target = $region13
  $region12: #{darknet_forward.14} parent=0 // pred_region
    _
  $region13: #{darknet_forward.14} parent=0 // pred_fallthru
    _
  %v15 = vld [vmem:[%s0] sm:$0xf]
  %v16 = vld [vmem:[%s1] sm:$0xf]
  %v17 = vld [vmem:[%s1 + $0x4] sm:$0xf]
  %v18 = vld [vmem:[%s2] sm:$0xff]
  %20 = vset.pattern.permute.xlu0 0
  %21 = vperm.xlu0 %20, %v18
  %v22 = vpop.permute.xlu0 %21
  %v26 = vunpack.c.l.b16 %v16
  %v27 = vunpack.c.l.b16 %v17
  %v28 = vpack.c.b16 %v27, %v26
  %vm30 = vcmask 130048
  %v32 = vsel %vm30, %v15, 0
  %34 = vmatprep.subr.bf16.mxu0 0
  %35 = vmatpush1.bf16.msra.mxu0 %v28
  %36 = vmatprep.subr.bf16.mxu0 0
  %37 = vmatpush1.bf16.msra.mxu0 0
  %38 = vmatprep.subr.bf16.mxu0 0
  %39 = vmatpush1.bf16.msra.mxu0 0
  %40 = vmatprep.subr.bf16.mxu0 0
  %41 = vmatpush1.bf16.msra.mxu0 0
  %42 = vmatprep.subr.bf16.mxu0 0
  %43 = vmatpush1.bf16.msra.mxu0 0
  %44 = vmatprep.subr.bf16.mxu0 0
  %45 = vmatpush1.bf16.msra.mxu0 0
  %46 = vmatprep.subr.bf16.mxu0 0
  %47 = vmatpush1.bf16.msra.mxu0 0
  %48 = vmatprep.subr.bf16.mxu0 0
  %49 = vmatpush1.bf16.msra.mxu0 0
  %50 = vmatprep.subr.bf16.mxu0 0
  %51 = vmatpush1.bf16.msra.mxu0 0
  %52 = vmatprep.subr.bf16.mxu0 0
  %53 = vmatpush1.bf16.msra.mxu0 0
  %54 = vmatprep.subr.bf16.mxu0 0
  %55 = vmatpush1.bf16.msra.mxu0 0
  %56 = vmatprep.subr.bf16.mxu0 0
  %57 = vmatpush1.bf16.msra.mxu0 0
  %58 = vmatprep.subr.bf16.mxu0 0
  %59 = vmatpush1.bf16.msra.mxu0 0
  %60 = vmatprep.subr.bf16.mxu0 0
  %61 = vmatpush1.bf16.msra.mxu0 0
  %62 = vmatprep.subr.bf16.mxu0 0
  %63 = vmatpush1.bf16.msra.mxu0 0
  %64 = vmatprep.subr.bf16.mxu0 0
  %65 = vmatpush1.bf16.msra.mxu0 0
  %66 = vmatprep.mubr.bf16.mxu0 0
  %67 = vmatmul.mubr.bf16.gmra.mrb[0].mxu0 %v32
  %v68 = vpop.f32.mrb[0].mxu0
  %v69 = vadd.f32 %v22, %v68
  %v70 = vpop.f32.mrb[0].mxu0
  %v71 = vpop.f32.mrb[0].mxu0
  %v72 = vpop.f32.mrb[0].mxu0
  %73 = vdwg.mxu0
  %vm74 = vcmp.gt.f32.partialorder %v69, 0.0
  %v75 = vmul.f32 %v69, 0.1
  %v76 = vsel %vm74, %v69, %v75
  %77 = vst [vmem:[%s3] sm:$0xff] %v76
  // Predicated region
  $region14: #{darknet_forward.14} parent=0 // pred_check
    _
  $region15: #{darknet_forward.14} parent=0 // pred_check_branch
    %79 = sbr.rel (0) target = $region17
  $region16: #{darknet_forward.14} parent=0 // pred_region
    _
  $region17: #{darknet_forward.14} parent=0 // pred_fallthru
    _
  // Predicated region
  $region18: #{darknet_forward.14} parent=0 // pred_check
    _
  $region19: #{darknet_forward.14} parent=0 // pred_check_branch
    %81 = sbr.rel (0) target = $region21
  $region20: #{darknet_forward.14} parent=0 // pred_region
    _
  $region21: #{darknet_forward.14} parent=0 // pred_fallthru
    _

// kernel: darknet_forward.13
$region0: #{darknet_forward.13}
  #allocation0 [shape = 'u32[]', space=smem, size = 0x4, offset = 0x4, fixed_abs, tag = 'smem constant byte address 0x4 - core index']
  #allocation1 [shape = 'u32[144,128]{1,0:T(1,128)}', space=vmem, size = 0x12000, scoped, tag = 'internal scratch']
  %s0 = inlined_call_operand.vmem [shape: bf16[16,72], index: 0, kind: input, shape index: {}]
  %s1 = inlined_call_operand.vmem [shape: bf16[72,128], index: 1, kind: input, shape index: {}]
  %s2 = inlined_call_operand.vmem [shape: f32[16,1], index: 2, kind: input, shape index: {}]
  %s3 = inlined_call_operand.vmem [shape: f32[16,128], index: 3, kind: output, shape index: {}]
  %s4 = sld [smem:[#allocation0]]
  $region22: #{darknet_forward.13} parent=0
    _
  %s6 = ssub.s32 1, %s4
  %s7 = scalar_select 0, %s6, %s4
  // Predicated region
  $region2: #{darknet_forward.13} parent=0 // pred_check
    _
  $region3: #{darknet_forward.13} parent=0 // pred_check_branch
    %9 = sbr.rel (0) target = $region5
  $region4: #{darknet_forward.13} parent=0 // pred_region
    _
  $region5: #{darknet_forward.13} parent=0 // pred_fallthru
    _
  // Predicated region
  $region6: #{darknet_forward.13} parent=0 // pred_check
    _
  $region7: #{darknet_forward.13} parent=0 // pred_check_branch
    %11 = sbr.rel (0) target = $region9
  $region8: #{darknet_forward.13} parent=0 // pred_region
    _
  $region9: #{darknet_forward.13} parent=0 // pred_fallthru
    _
  // Predicated region
  $region10: #{darknet_forward.13} parent=0 // pred_check
    _
  $region11: #{darknet_forward.13} parent=0 // pred_check_branch
    %13 = sbr.rel (0) target = $region13
  $region12: #{darknet_forward.13} parent=0 // pred_region
    _
  $region13: #{darknet_forward.13} parent=0 // pred_fallthru
    _
  %v15 = vld [vmem:[%s0] sm:$0xf]
  %v16 = vld [vmem:[%s0 + $0x4] sm:$0xf]
  %v17 = vld [vmem:[%s1] sm:$0xf]
  %v18 = vld [vmem:[%s1 + $0x4] sm:$0xf]
  %v19 = vld [vmem:[%s1 + $0x8] sm:$0xf]
  %v20 = vld [vmem:[%s1 + $0xc] sm:$0xf]
  %v21 = vld [vmem:[%s1 + $0x10] sm:$0xf]
  %v22 = vld [vmem:[%s1 + $0x14] sm:$0xf]
  %v23 = vld [vmem:[%s1 + $0x18] sm:$0xf]
  %v24 = vld [vmem:[%s1 + $0x1c] sm:$0xf]
  %v25 = vld [vmem:[%s1 + $0x20] sm:$0xf]
  %v26 = vld [vmem:[%s2] sm:$0xff]
  %v27 = vld [vmem:[%s2 + $0x8] sm:$0xff]
  %29 = vset.pattern.permute.xlu0 0
  %30 = vperm.xlu0 %29, %v26
  %v31 = vpop.permute.xlu0 %30
  %34 = vset.pattern.permute.xlu0 0
  %35 = vperm.xlu0 %34, %v27
  %v36 = vpop.permute.xlu0 %35
  %v40 = vunpack.c.l.b16 %v15
  %v41 = vunpack.c.l.b16 %v16
  %v42 = vpack.c.b16 %v41, %v40
  %v52 = vunpack.c.l.b16 %v17
  %v53 = vunpack.c.l.b16 %v18
  %v54 = vunpack.c.l.b16 %v19
  %v55 = vunpack.c.l.b16 %v20
  %v56 = vunpack.c.l.b16 %v21
  %v57 = vunpack.c.l.b16 %v22
  %v58 = vunpack.c.l.b16 %v23
  %v59 = vunpack.c.l.b16 %v24
  %v60 = vunpack.c.l.b16 %v25
  %v61 = vpack.c.b16 %v53, %v52
  %v62 = vpack.c.b16 %v55, %v54
  %v63 = vpack.c.b16 %v57, %v56
  %v64 = vpack.c.b16 %v59, %v58
  %v65 = vpack.c.b16 %v60, %v60
  %vm70 = vcmask 588800
  %v72 = vsel %vm70, %v42, 0
  %vm74 = vcmask 1043456
  %v76 = vsel %vm74, %v65, 0
  %78 = vmatprep.subr.bf16.mxu0 0
  %79 = vmatpush1.bf16.msra.mxu0 %v61
  %80 = vmatprep.subr.bf16.mxu0 0
  %81 = vmatpush1.bf16.msra.mxu0 %v62
  %82 = vmatprep.subr.bf16.mxu0 0
  %83 = vmatpush1.bf16.msra.mxu0 %v63
  %84 = vmatprep.subr.bf16.mxu0 0
  %85 = vmatpush1.bf16.msra.mxu0 %v64
  %86 = vmatprep.subr.bf16.mxu0 0
  %87 = vmatpush1.bf16.msra.mxu0 %v76
  %88 = vmatprep.subr.bf16.mxu0 0
  %89 = vmatpush1.bf16.msra.mxu0 0
  %90 = vmatprep.subr.bf16.mxu0 0
  %91 = vmatpush1.bf16.msra.mxu0 0
  %92 = vmatprep.subr.bf16.mxu0 0
  %93 = vmatpush1.bf16.msra.mxu0 0
  %94 = vmatprep.subr.bf16.mxu0 0
  %95 = vmatpush1.bf16.msra.mxu0 0
  %96 = vmatprep.subr.bf16.mxu0 0
  %97 = vmatpush1.bf16.msra.mxu0 0
  %98 = vmatprep.subr.bf16.mxu0 0
  %99 = vmatpush1.bf16.msra.mxu0 0
  %100 = vmatprep.subr.bf16.mxu0 0
  %101 = vmatpush1.bf16.msra.mxu0 0
  %102 = vmatprep.subr.bf16.mxu0 0
  %103 = vmatpush1.bf16.msra.mxu0 0
  %104 = vmatprep.subr.bf16.mxu0 0
  %105 = vmatpush1.bf16.msra.mxu0 0
  %106 = vmatprep.subr.bf16.mxu0 0
  %107 = vmatpush1.bf16.msra.mxu0 0
  %108 = vmatprep.subr.bf16.mxu0 0
  %109 = vmatpush1.bf16.msra.mxu0 0
  %110 = vmatprep.mubr.bf16.mxu0 0
  %111 = vmatmul.mubr.bf16.gmra.mrb[0].mxu0 %v72
  %v112 = vpop.f32.mrb[0].mxu0
  %v113 = vadd.f32 %v31, %v112
  %v114 = vpop.f32.mrb[0].mxu0
  %v115 = vpop.f32.mrb[0].mxu0
  %v116 = vadd.f32 %v36, %v115
  %v117 = vpop.f32.mrb[0].mxu0
  %118 = vdwg.mxu0
  %vm119 = vcmp.gt.f32.partialorder %v113, 0.0
  %vm120 = vcmp.gt.f32.partialorder %v116, 0.0
  %v121 = vmul.f32 %v113, 0.1
  %v122 = vmul.f32 %v116, 0.1
  %v123 = vsel %vm119, %v113, %v121
  %v124 = vsel %vm120, %v116, %v122
  %125 = vst [vmem:[%s3] sm:$0xff] %v123
  %126 = vst [vmem:[%s3 + $0x8] sm:$0xff] %v124
  // Predicated region
  $region14: #{darknet_forward.13} parent=0 // pred_check
    _
  $region15: #{darknet_forward.13} parent=0 // pred_check_branch
    %128 = sbr.rel (0) target = $region17
  $region16: #{darknet_forward.13} parent=0 // pred_region
    _
  $region17: #{darknet_forward.13} parent=0 // pred_fallthru
    _
  // Predicated region
  $region18: #{darknet_forward.13} parent=0 // pred_check
    _
  $region19: #{darknet_forward.13} parent=0 // pred_check_branch
    %130 = sbr.rel (0) target = $region21
  $region20: #{darknet_forward.13} parent=0 // pred_region
    _
  $region21: #{darknet_forward.13} parent=0 // pred_fallthru
    _

// kernel: darknet_forward.15
$region0: #{darknet_forward.15}
  #allocation0 [shape = 'u32[]', space=smem, size = 0x4, offset = 0x4, fixed_abs, tag = 'smem constant byte address 0x4 - core index']
  #allocation1 [shape = 'u32[144,128]{1,0:T(1,128)}', space=vmem, size = 0x12000, scoped, tag = 'internal scratch']
  %s0 = inlined_call_operand.vmem [shape: bf16[16,72], index: 0, kind: input, shape index: {}]
  %s1 = inlined_call_operand.vmem [shape: bf16[72,128], index: 1, kind: input, shape index: {}]
  %s2 = inlined_call_operand.vmem [shape: f32[16,1], index: 2, kind: input, shape index: {}]
  %s3 = inlined_call_operand.vmem [shape: f32[16,128], index: 3, kind: input, shape index: {}]
  %s4 = inlined_call_operand.vmem [shape: f32[16,128], index: 4, kind: output, shape index: {}]
  %s5 = sld [smem:[#allocation0]]
  $region26: #{darknet_forward.15} parent=0
    _
  %s7 = ssub.s32 1, %s5
  %s8 = scalar_select 0, %s7, %s5
  // Predicated region
  $region2: #{darknet_forward.15} parent=0 // pred_check
    _
  $region3: #{darknet_forward.15} parent=0 // pred_check_branch
    %10 = sbr.rel (0) target = $region5
  $region4: #{darknet_forward.15} parent=0 // pred_region
    _
  $region5: #{darknet_forward.15} parent=0 // pred_fallthru
    _
  // Predicated region
  $region6: #{darknet_forward.15} parent=0 // pred_check
    _
  $region7: #{darknet_forward.15} parent=0 // pred_check_branch
    %12 = sbr.rel (0) target = $region9
  $region8: #{darknet_forward.15} parent=0 // pred_region
    _
  $region9: #{darknet_forward.15} parent=0 // pred_fallthru
    _
  // Predicated region
  $region10: #{darknet_forward.15} parent=0 // pred_check
    _
  $region11: #{darknet_forward.15} parent=0 // pred_check_branch
    %14 = sbr.rel (0) target = $region13
  $region12: #{darknet_forward.15} parent=0 // pred_region
    _
  $region13: #{darknet_forward.15} parent=0 // pred_fallthru
    _
  // Predicated region
  $region14: #{darknet_forward.15} parent=0 // pred_check
    _
  $region15: #{darknet_forward.15} parent=0 // pred_check_branch
    %16 = sbr.rel (0) target = $region17
  $region16: #{darknet_forward.15} parent=0 // pred_region
    _
  $region17: #{darknet_forward.15} parent=0 // pred_fallthru
    _
  %v18 = vld [vmem:[%s0] sm:$0xf]
  %v19 = vld [vmem:[%s0 + $0x4] sm:$0xf]
  %v20 = vld [vmem:[%s1] sm:$0xf]
  %v21 = vld [vmem:[%s1 + $0x4] sm:$0xf]
  %v22 = vld [vmem:[%s1 + $0x8] sm:$0xf]
  %v23 = vld [vmem:[%s1 + $0xc] sm:$0xf]
  %v24 = vld [vmem:[%s1 + $0x10] sm:$0xf]
  %v25 = vld [vmem:[%s1 + $0x14] sm:$0xf]
  %v26 = vld [vmem:[%s1 + $0x18] sm:$0xf]
  %v27 = vld [vmem:[%s1 + $0x1c] sm:$0xf]
  %v28 = vld [vmem:[%s1 + $0x20] sm:$0xf]
  %v29 = vld [vmem:[%s2] sm:$0xff]
  %v30 = vld [vmem:[%s2 + $0x8] sm:$0xff]
  %32 = vset.pattern.permute.xlu0 0
  %33 = vperm.xlu0 %32, %v29
  %v34 = vpop.permute.xlu0 %33
  %37 = vset.pattern.permute.xlu0 0
  %38 = vperm.xlu0 %37, %v30
  %v39 = vpop.permute.xlu0 %38
  %v43 = vunpack.c.l.b16 %v18
  %v44 = vunpack.c.l.b16 %v19
  %v45 = vpack.c.b16 %v44, %v43
  %v55 = vunpack.c.l.b16 %v20
  %v56 = vunpack.c.l.b16 %v21
  %v57 = vunpack.c.l.b16 %v22
  %v58 = vunpack.c.l.b16 %v23
  %v59 = vunpack.c.l.b16 %v24
  %v60 = vunpack.c.l.b16 %v25
  %v61 = vunpack.c.l.b16 %v26
  %v62 = vunpack.c.l.b16 %v27
  %v63 = vunpack.c.l.b16 %v28
  %v64 = vpack.c.b16 %v56, %v55
  %v65 = vpack.c.b16 %v58, %v57
  %v66 = vpack.c.b16 %v60, %v59
  %v67 = vpack.c.b16 %v62, %v61
  %v68 = vpack.c.b16 %v63, %v63
  %vm73 = vcmask 588800
  %v75 = vsel %vm73, %v45, 0
  %vm77 = vcmask 1043456
  %v79 = vsel %vm77, %v68, 0
  %81 = vmatprep.subr.bf16.mxu0 0
  %82 = vmatpush1.bf16.msra.mxu0 %v64
  %83 = vmatprep.subr.bf16.mxu0 0
  %84 = vmatpush1.bf16.msra.mxu0 %v65
  %85 = vmatprep.subr.bf16.mxu0 0
  %86 = vmatpush1.bf16.msra.mxu0 %v66
  %87 = vmatprep.subr.bf16.mxu0 0
  %88 = vmatpush1.bf16.msra.mxu0 %v67
  %89 = vmatprep.subr.bf16.mxu0 0
  %90 = vmatpush1.bf16.msra.mxu0 %v79
  %91 = vmatprep.subr.bf16.mxu0 0
  %92 = vmatpush1.bf16.msra.mxu0 0
  %93 = vmatprep.subr.bf16.mxu0 0
  %94 = vmatpush1.bf16.msra.mxu0 0
  %95 = vmatprep.subr.bf16.mxu0 0
  %96 = vmatpush1.bf16.msra.mxu0 0
  %97 = vmatprep.subr.bf16.mxu0 0
  %98 = vmatpush1.bf16.msra.mxu0 0
  %99 = vmatprep.subr.bf16.mxu0 0
  %100 = vmatpush1.bf16.msra.mxu0 0
  %101 = vmatprep.subr.bf16.mxu0 0
  %102 = vmatpush1.bf16.msra.mxu0 0
  %103 = vmatprep.subr.bf16.mxu0 0
  %104 = vmatpush1.bf16.msra.mxu0 0
  %105 = vmatprep.subr.bf16.mxu0 0
  %106 = vmatpush1.bf16.msra.mxu0 0
  %107 = vmatprep.subr.bf16.mxu0 0
  %108 = vmatpush1.bf16.msra.mxu0 0
  %109 = vmatprep.subr.bf16.mxu0 0
  %110 = vmatpush1.bf16.msra.mxu0 0
  %111 = vmatprep.subr.bf16.mxu0 0
  %112 = vmatpush1.bf16.msra.mxu0 0
  %113 = vmatprep.mubr.bf16.mxu0 0
  %114 = vmatmul.mubr.bf16.gmra.mrb[0].mxu0 %v75
  %v115 = vpop.f32.mrb[0].mxu0
  %v116 = vadd.f32 %v34, %v115
  %v117 = vpop.f32.mrb[0].mxu0
  %v118 = vpop.f32.mrb[0].mxu0
  %v119 = vadd.f32 %v39, %v118
  %v120 = vpop.f32.mrb[0].mxu0
  %121 = vdwg.mxu0
  %vm122 = vcmp.gt.f32.partialorder %v116, 0.0
  %vm123 = vcmp.gt.f32.partialorder %v119, 0.0
  %v124 = vmul.f32 %v116, 0.1
  %v125 = vmul.f32 %v119, 0.1
  %v126 = vsel %vm122, %v116, %v124
  %v127 = vsel %vm123, %v119, %v125
  %v128 = vld [vmem:[%s3] sm:$0xff]
  %v129 = vld [vmem:[%s3 + $0x8] sm:$0xff]
  %v130 = vadd.f32 %v126, %v128
  %v131 = vadd.f32 %v127, %v129
  %132 = vst [vmem:[%s4] sm:$0xff] %v130
  %133 = vst [vmem:[%s4 + $0x8] sm:$0xff] %v131
  // Predicated region
  $region18: #{darknet_forward.15} parent=0 // pred_check
    _
  $region19: #{darknet_forward.15} parent=0 // pred_check_branch
    %135 = sbr.rel (0) target = $region21
  $region20: #{darknet_forward.15} parent=0 // pred_region
    _
  $region21: #{darknet_forward.15} parent=0 // pred_fallthru
    _
  // Predicated region
  $region22: #{darknet_forward.15} parent=0 // pred_check
    _
  $region23: #{darknet_forward.15} parent=0 // pred_check_branch
    %137 = sbr.rel (0) target = $region25
  $region24: #{darknet_forward.15} parent=0 // pred_region
    _
  $region25: #{darknet_forward.15} parent=0 // pred_fallthru
    _

// kernel: squeeze.2
$region0: #{squeeze.2}
  %s0 = inlined_call_operand.vmem [shape: bf16[512], index: 0, kind: input, shape index: {}]
  %s1 = inlined_call_operand.vmem [shape: bf16[16,2,4,4], index: 1, kind: output, shape index: {}]
  $region1: #{squeeze.2} parent=0
    #allocation0 [shape = 'u8[131072]{0}', space=vmem, size = 0x20000, scoped, tag = 'scoped mem for output reshape']
    #allocation1 [shape = 'u8[4096]{0}', space=vmem, size = 0x1000, scoped, tag = 'scoped mem for input reshape']
    %s3 = smul.u32 2, 2
    %s4 = sshllo.u32 0, %s3
    %s5 = sshrl.u32 %s4, 1
    %s6 = sor.u32 %s4, %s5
    %s7 = sand.u32 %s6, 85
    %s8 = sshrl.u32 %s7, 1
    %s9 = sor.u32 %s7, %s8
    %s10 = sand.u32 51, %s9
    %s11 = sshrl.u32 %s10, 2
    %s12 = sor.u32 %s10, %s11
    %s13 = sand.u32 15, %s12
    %v14 = vld [vmem:[%s0] sm:%s13]
    %v15 = vunpack.c.l.bf16 %v14
    %v16 = vunpack.c.h.bf16 %v14
    %17 = vst [vmem:[#allocation1] sm:%s4] %v15
    %v18 = vld [vmem:[#allocation1] sm:$0xf]
    %vm19 = vcmask 31744
    %20 = vst.msk [vmem:[#allocation0] sm:$0x1] %vm19, %v18
    %s21 = scalar_lea.vmem [#allocation0], 63
    %22 = vst.msk [vmem:[%s21] sm:$0x2] %vm19, %v18
    %s23 = scalar_lea.vmem [#allocation0], 126
    %24 = vst.msk [vmem:[%s23] sm:$0x4] %vm19, %v18
    %s25 = scalar_lea.vmem [#allocation0], 189
    %26 = vst.msk [vmem:[%s25] sm:$0x8] %vm19, %v18
    %v27 = vld [vmem:[#allocation1] sm:$0xf]
    %28 = vrot.lane.b32.xlu0 %v27, 124
    %v29 = vpop.permute.xlu0 %28
    %vm30 = vcmask 31744
    %s31 = scalar_lea.vmem [#allocation0], 1
    %32 = vst.msk [vmem:[%s31] sm:$0x1] %vm30, %v29
    %s33 = scalar_lea.vmem [#allocation0], 64
    %34 = vst.msk [vmem:[%s33] sm:$0x2] %vm30, %v29
    %s35 = scalar_lea.vmem [#allocation0], 127
    %36 = vst.msk [vmem:[%s35] sm:$0x4] %vm30, %v29
    %s37 = scalar_lea.vmem [#allocation0], 190
    %38 = vst.msk [vmem:[%s37] sm:$0x8] %vm30, %v29
    %v39 = vld [vmem:[#allocation1] sm:$0xf]
    %40 = vrot.lane.b32.xlu0 %v39, 120
    %v41 = vpop.permute.xlu0 %40
    %vm42 = vcmask 31744
    %s43 = scalar_lea.vmem [#allocation0], 2
    %44 = vst.msk [vmem:[%s43] sm:$0x1] %vm42, %v41
    %s45 = scalar_lea.vmem [#allocation0], 65
    %46 = vst.msk [vmem:[%s45] sm:$0x2] %vm42, %v41
    %s47 = scalar_lea.vmem [#allocation0], 128
    %48 = vst.msk [vmem:[%s47] sm:$0x4] %vm42, %v41
    %s49 = scalar_lea.vmem [#allocation0], 191
    %50 = vst.msk [vmem:[%s49] sm:$0x8] %vm42, %v41
    %v51 = vld [vmem:[#allocation1] sm:$0xf]
    %52 = vrot.lane.b32.xlu0 %v51, 116
    %v53 = vpop.permute.xlu0 %52
    %vm54 = vcmask 31744
    %s55 = scalar_lea.vmem [#allocation0], 3
    %56 = vst.msk [vmem:[%s55] sm:$0x1] %vm54, %v53
    %s57 = scalar_lea.vmem [#allocation0], 66
    %58 = vst.msk [vmem:[%s57] sm:$0x2] %vm54, %v53
    %s59 = scalar_lea.vmem [#allocation0], 129
    %60 = vst.msk [vmem:[%s59] sm:$0x4] %vm54, %v53
    %s61 = scalar_lea.vmem [#allocation0], 192
    %62 = vst.msk [vmem:[%s61] sm:$0x8] %vm54, %v53
    %v63 = vld [vmem:[#allocation1] sm:$0xf]
    %64 = vrot.lane.b32.xlu0 %v63, 112
    %v65 = vpop.permute.xlu0 %64
    %vm66 = vcmask 31744
    %s67 = scalar_lea.vmem [#allocation0], 8
    %68 = vst.msk [vmem:[%s67] sm:$0x1] %vm66, %v65
    %s69 = scalar_lea.vmem [#allocation0], 71
    %70 = vst.msk [vmem:[%s69] sm:$0x2] %vm66, %v65
    %s71 = scalar_lea.vmem [#allocation0], 134
    %72 = vst.msk [vmem:[%s71] sm:$0x4] %vm66, %v65
    %s73 = scalar_lea.vmem [#allocation0], 197
    %74 = vst.msk [vmem:[%s73] sm:$0x8] %vm66, %v65
    %v75 = vld [vmem:[#allocation1] sm:$0xf]
    %76 = vrot.lane.b32.xlu0 %v75, 108
    %v77 = vpop.permute.xlu0 %76
    %vm78 = vcmask 31744
    %s79 = scalar_lea.vmem [#allocation0], 9
    %80 = vst.msk [vmem:[%s79] sm:$0x1] %vm78, %v77
    %s81 = scalar_lea.vmem [#allocation0], 72
    %82 = vst.msk [vmem:[%s81] sm:$0x2] %vm78, %v77
    %s83 = scalar_lea.vmem [#allocation0], 135
    %84 = vst.msk [vmem:[%s83] sm:$0x4] %vm78, %v77
    %s85 = scalar_lea.vmem [#allocation0], 198
    %86 = vst.msk [vmem:[%s85] sm:$0x8] %vm78, %v77
    %v87 = vld [vmem:[#allocation1] sm:$0xf]
    %88 = vrot.lane.b32.xlu0 %v87, 104
    %v89 = vpop.permute.xlu0 %88
    %vm90 = vcmask 31744
    %s91 = scalar_lea.vmem [#allocation0], 10
    %92 = vst.msk [vmem:[%s91] sm:$0x1] %vm90, %v89
    %s93 = scalar_lea.vmem [#allocation0], 73
    %94 = vst.msk [vmem:[%s93] sm:$0x2] %vm90, %v89
    %s95 = scalar_lea.vmem [#allocation0], 136
    %96 = vst.msk [vmem:[%s95] sm:$0x4] %vm90, %v89
    %s97 = scalar_lea.vmem [#allocation0], 199
    %98 = vst.msk [vmem:[%s97] sm:$0x8] %vm90, %v89
    %v99 = vld [vmem:[#allocation1] sm:$0xf]
    %100 = vrot.lane.b32.xlu0 %v99, 100
    %v101 = vpop.permute.xlu0 %100
    %vm102 = vcmask 31744
    %s103 = scalar_lea.vmem [#allocation0], 11
    %104 = vst.msk [vmem:[%s103] sm:$0x1] %vm102, %v101
    %s105 = scalar_lea.vmem [#allocation0], 74
    %106 = vst.msk [vmem:[%s105] sm:$0x2] %vm102, %v101
    %s107 = scalar_lea.vmem [#allocation0], 137
    %108 = vst.msk [vmem:[%s107] sm:$0x4] %vm102, %v101
    %s109 = scalar_lea.vmem [#allocation0], 200
    %110 = vst.msk [vmem:[%s109] sm:$0x8] %vm102, %v101
    %v111 = vld [vmem:[#allocation1] sm:$0xf]
    %112 = vrot.lane.b32.xlu0 %v111, 96
    %v113 = vpop.permute.xlu0 %112
    %vm114 = vcmask 31744
    %s115 = scalar_lea.vmem [#allocation0], 16
    %116 = vst.msk [vmem:[%s115] sm:$0x1] %vm114, %v113
    %s117 = scalar_lea.vmem [#allocation0], 79
    %118 = vst.msk [vmem:[%s117] sm:$0x2] %vm114, %v113
    %s119 = scalar_lea.vmem [#allocation0], 142
    %120 = vst.msk [vmem:[%s119] sm:$0x4] %vm114, %v113
    %s121 = scalar_lea.vmem [#allocation0], 205
    %122 = vst.msk [vmem:[%s121] sm:$0x8] %vm114, %v113
    %v123 = vld [vmem:[#allocation1] sm:$0xf]
    %124 = vrot.lane.b32.xlu0 %v123, 92
    %v125 = vpop.permute.xlu0 %124
    %vm126 = vcmask 31744
    %s127 = scalar_lea.vmem [#allocation0], 17
    %128 = vst.msk [vmem:[%s127] sm:$0x1] %vm126, %v125
    %s129 = scalar_lea.vmem [#allocation0], 80
    %130 = vst.msk [vmem:[%s129] sm:$0x2] %vm126, %v125
    %s131 = scalar_lea.vmem [#allocation0], 143
    %132 = vst.msk [vmem:[%s131] sm:$0x4] %vm126, %v125
    %s133 = scalar_lea.vmem [#allocation0], 206
    %134 = vst.msk [vmem:[%s133] sm:$0x8] %vm126, %v125
    %v135 = vld [vmem:[#allocation1] sm:$0xf]
    %136 = vrot.lane.b32.xlu0 %v135, 88
    %v137 = vpop.permute.xlu0 %136
    %vm138 = vcmask 31744
    %s139 = scalar_lea.vmem [#allocation0], 18
    %140 = vst.msk [vmem:[%s139] sm:$0x1] %vm138, %v137
    %s141 = scalar_lea.vmem [#allocation0], 81
    %142 = vst.msk [vmem:[%s141] sm:$0x2] %vm138, %v137
    %s143 = scalar_lea.vmem [#allocation0], 144
    %144 = vst.msk [vmem:[%s143] sm:$0x4] %vm138, %v137
    %s145 = scalar_lea.vmem [#allocation0], 207
    %146 = vst.msk [vmem:[%s145] sm:$0x8] %vm138, %v137
    %v147 = vld [vmem:[#allocation1] sm:$0xf]
    %148 = vrot.lane.b32.xlu0 %v147, 84
    %v149 = vpop.permute.xlu0 %148
    %vm150 = vcmask 31744
    %s151 = scalar_lea.vmem [#allocation0], 19
    %152 = vst.msk [vmem:[%s151] sm:$0x1] %vm150, %v149
    %s153 = scalar_lea.vmem [#allocation0], 82
    %154 = vst.msk [vmem:[%s153] sm:$0x2] %vm150, %v149
    %s155 = scalar_lea.vmem [#allocation0], 145
    %156 = vst.msk [vmem:[%s155] sm:$0x4] %vm150, %v149
    %s157 = scalar_lea.vmem [#allocation0], 208
    %158 = vst.msk [vmem:[%s157] sm:$0x8] %vm150, %v149
    %v159 = vld [vmem:[#allocation1] sm:$0xf]
    %160 = vrot.lane.b32.xlu0 %v159, 80
    %v161 = vpop.permute.xlu0 %160
    %vm162 = vcmask 31744
    %s163 = scalar_lea.vmem [#allocation0], 24
    %164 = vst.msk [vmem:[%s163] sm:$0x1] %vm162, %v161
    %s165 = scalar_lea.vmem [#allocation0], 87
    %166 = vst.msk [vmem:[%s165] sm:$0x2] %vm162, %v161
    %s167 = scalar_lea.vmem [#allocation0], 150
    %168 = vst.msk [vmem:[%s167] sm:$0x4] %vm162, %v161
    %s169 = scalar_lea.vmem [#allocation0], 213
    %170 = vst.msk [vmem:[%s169] sm:$0x8] %vm162, %v161
    %v171 = vld [vmem:[#allocation1] sm:$0xf]
    %172 = vrot.lane.b32.xlu0 %v171, 76
    %v173 = vpop.permute.xlu0 %172
    %vm174 = vcmask 31744
    %s175 = scalar_lea.vmem [#allocation0], 25
    %176 = vst.msk [vmem:[%s175] sm:$0x1] %vm174, %v173
    %s177 = scalar_lea.vmem [#allocation0], 88
    %178 = vst.msk [vmem:[%s177] sm:$0x2] %vm174, %v173
    %s179 = scalar_lea.vmem [#allocation0], 151
    %180 = vst.msk [vmem:[%s179] sm:$0x4] %vm174, %v173
    %s181 = scalar_lea.vmem [#allocation0], 214
    %182 = vst.msk [vmem:[%s181] sm:$0x8] %vm174, %v173
    %v183 = vld [vmem:[#allocation1] sm:$0xf]
    %184 = vrot.lane.b32.xlu0 %v183, 72
    %v185 = vpop.permute.xlu0 %184
    %vm186 = vcmask 31744
    %s187 = scalar_lea.vmem [#allocation0], 26
    %188 = vst.msk [vmem:[%s187] sm:$0x1] %vm186, %v185
    %s189 = scalar_lea.vmem [#allocation0], 89
    %190 = vst.msk [vmem:[%s189] sm:$0x2] %vm186, %v185
    %s191 = scalar_lea.vmem [#allocation0], 152
    %192 = vst.msk [vmem:[%s191] sm:$0x4] %vm186, %v185
    %s193 = scalar_lea.vmem [#allocation0], 215
    %194 = vst.msk [vmem:[%s193] sm:$0x8] %vm186, %v185
    %v195 = vld [vmem:[#allocation1] sm:$0xf]
    %196 = vrot.lane.b32.xlu0 %v195, 68
    %v197 = vpop.permute.xlu0 %196
    %vm198 = vcmask 31744
    %s199 = scalar_lea.vmem [#allocation0], 27
    %200 = vst.msk [vmem:[%s199] sm:$0x1] %vm198, %v197
    %s201 = scalar_lea.vmem [#allocation0], 90
    %202 = vst.msk [vmem:[%s201] sm:$0x2] %vm198, %v197
    %s203 = scalar_lea.vmem [#allocation0], 153
    %204 = vst.msk [vmem:[%s203] sm:$0x4] %vm198, %v197
    %s205 = scalar_lea.vmem [#allocation0], 216
    %206 = vst.msk [vmem:[%s205] sm:$0x8] %vm198, %v197
    %v207 = vld [vmem:[#allocation1] sm:$0xf]
    %208 = vrot.lane.b32.xlu0 %v207, 64
    %v209 = vpop.permute.xlu0 %208
    %vm210 = vcmask 31744
    %s211 = scalar_lea.vmem [#allocation0], 32
    %212 = vst.msk [vmem:[%s211] sm:$0x1] %vm210, %v209
    %s213 = scalar_lea.vmem [#allocation0], 95
    %214 = vst.msk [vmem:[%s213] sm:$0x2] %vm210, %v209
    %s215 = scalar_lea.vmem [#allocation0], 158
    %216 = vst.msk [vmem:[%s215] sm:$0x4] %vm210, %v209
    %s217 = scalar_lea.vmem [#allocation0], 221
    %218 = vst.msk [vmem:[%s217] sm:$0x8] %vm210, %v209
    %v219 = vld [vmem:[#allocation1] sm:$0xf]
    %220 = vrot.lane.b32.xlu0 %v219, 60
    %v221 = vpop.permute.xlu0 %220
    %vm222 = vcmask 31744
    %s223 = scalar_lea.vmem [#allocation0], 33
    %224 = vst.msk [vmem:[%s223] sm:$0x1] %vm222, %v221
    %s225 = scalar_lea.vmem [#allocation0], 96
    %226 = vst.msk [vmem:[%s225] sm:$0x2] %vm222, %v221
    %s227 = scalar_lea.vmem [#allocation0], 159
    %228 = vst.msk [vmem:[%s227] sm:$0x4] %vm222, %v221
    %s229 = scalar_lea.vmem [#allocation0], 222
    %230 = vst.msk [vmem:[%s229] sm:$0x8] %vm222, %v221
    %v231 = vld [vmem:[#allocation1] sm:$0xf]
    %232 = vrot.lane.b32.xlu0 %v231, 56
    %v233 = vpop.permute.xlu0 %232
    %vm234 = vcmask 31744
    %s235 = scalar_lea.vmem [#allocation0], 34
    %236 = vst.msk [vmem:[%s235] sm:$0x1] %vm234, %v233
    %s237 = scalar_lea.vmem [#allocation0], 97
    %238 = vst.msk [vmem:[%s237] sm:$0x2] %vm234, %v233
    %s239 = scalar_lea.vmem [#allocation0], 160
    %240 = vst.msk [vmem:[%s239] sm:$0x4] %vm234, %v233
    %s241 = scalar_lea.vmem [#allocation0], 223
    %242 = vst.msk [vmem:[%s241] sm:$0x8] %vm234, %v233
    %v243 = vld [vmem:[#allocation1] sm:$0xf]
    %244 = vrot.lane.b32.xlu0 %v243, 52
    %v245 = vpop.permute.xlu0 %244
    %vm246 = vcmask 31744
    %s247 = scalar_lea.vmem [#allocation0], 35
    %248 = vst.msk [vmem:[%s247] sm:$0x1] %vm246, %v245
    %s249 = scalar_lea.vmem [#allocation0], 98
    %250 = vst.msk [vmem:[%s249] sm:$0x2] %vm246, %v245
    %s251 = scalar_lea.vmem [#allocation0], 161
    %252 = vst.msk [vmem:[%s251] sm:$0x4] %vm246, %v245
    %s253 = scalar_lea.vmem [#allocation0], 224
    %254 = vst.msk [vmem:[%s253] sm:$0x8] %vm246, %v245
    %v255 = vld [vmem:[#allocation1] sm:$0xf]
    %256 = vrot.lane.b32.xlu0 %v255, 48
    %v257 = vpop.permute.xlu0 %256
    %vm258 = vcmask 31744
    %s259 = scalar_lea.vmem [#allocation0], 40
    %260 = vst.msk [vmem:[%s259] sm:$0x1] %vm258, %v257
    %s261 = scalar_lea.vmem [#allocation0], 103
    %262 = vst.msk [vmem:[%s261] sm:$0x2] %vm258, %v257
    %s263 = scalar_lea.vmem [#allocation0], 166
    %264 = vst.msk [vmem:[%s263] sm:$0x4] %vm258, %v257
    %s265 = scalar_lea.vmem [#allocation0], 229
    %266 = vst.msk [vmem:[%s265] sm:$0x8] %vm258, %v257
    %v267 = vld [vmem:[#allocation1] sm:$0xf]
    %268 = vrot.lane.b32.xlu0 %v267, 44
    %v269 = vpop.permute.xlu0 %268
    %vm270 = vcmask 31744
    %s271 = scalar_lea.vmem [#allocation0], 41
    %272 = vst.msk [vmem:[%s271] sm:$0x1] %vm270, %v269
    %s273 = scalar_lea.vmem [#allocation0], 104
    %274 = vst.msk [vmem:[%s273] sm:$0x2] %vm270, %v269
    %s275 = scalar_lea.vmem [#allocation0], 167
    %276 = vst.msk [vmem:[%s275] sm:$0x4] %vm270, %v269
    %s277 = scalar_lea.vmem [#allocation0], 230
    %278 = vst.msk [vmem:[%s277] sm:$0x8] %vm270, %v269
    %v279 = vld [vmem:[#allocation1] sm:$0xf]
    %280 = vrot.lane.b32.xlu0 %v279, 40
    %v281 = vpop.permute.xlu0 %280
    %vm282 = vcmask 31744
    %s283 = scalar_lea.vmem [#allocation0], 42
    %284 = vst.msk [vmem:[%s283] sm:$0x1] %vm282, %v281
    %s285 = scalar_lea.vmem [#allocation0], 105
    %286 = vst.msk [vmem:[%s285] sm:$0x2] %vm282, %v281
    %s287 = scalar_lea.vmem [#allocation0], 168
    %288 = vst.msk [vmem:[%s287] sm:$0x4] %vm282, %v281
    %s289 = scalar_lea.vmem [#allocation0], 231
    %290 = vst.msk [vmem:[%s289] sm:$0x8] %vm282, %v281
    %v291 = vld [vmem:[#allocation1] sm:$0xf]
    %292 = vrot.lane.b32.xlu0 %v291, 36
    %v293 = vpop.permute.xlu0 %292
    %vm294 = vcmask 31744
    %s295 = scalar_lea.vmem [#allocation0], 43
    %296 = vst.msk [vmem:[%s295] sm:$0x1] %vm294, %v293
    %s297 = scalar_lea.vmem [#allocation0], 106
    %298 = vst.msk [vmem:[%s297] sm:$0x2] %vm294, %v293
    %s299 = scalar_lea.vmem [#allocation0], 169
    %300 = vst.msk [vmem:[%s299] sm:$0x4] %vm294, %v293
    %s301 = scalar_lea.vmem [#allocation0], 232
    %302 = vst.msk [vmem:[%s301] sm:$0x8] %vm294, %v293
    %v303 = vld [vmem:[#allocation1] sm:$0xf]
    %304 = vrot.lane.b32.xlu0 %v303, 32
    %v305 = vpop.permute.xlu0 %304
    %vm306 = vcmask 31744
    %s307 = scalar_lea.vmem [#allocation0], 48
    %308 = vst.msk [vmem:[%s307] sm:$0x1] %vm306, %v305
    %s309 = scalar_lea.vmem [#allocation0], 111
    %310 = vst.msk [vmem:[%s309] sm:$0x2] %vm306, %v305
    %s311 = scalar_lea.vmem [#allocation0], 174
    %312 = vst.msk [vmem:[%s311] sm:$0x4] %vm306, %v305
    %s313 = scalar_lea.vmem [#allocation0], 237
    %314 = vst.msk [vmem:[%s313] sm:$0x8] %vm306, %v305
    %v315 = vld [vmem:[#allocation1] sm:$0xf]
    %316 = vrot.lane.b32.xlu0 %v315, 28
    %v317 = vpop.permute.xlu0 %316
    %vm318 = vcmask 31744
    %s319 = scalar_lea.vmem [#allocation0], 49
    %320 = vst.msk [vmem:[%s319] sm:$0x1] %vm318, %v317
    %s321 = scalar_lea.vmem [#allocation0], 112
    %322 = vst.msk [vmem:[%s321] sm:$0x2] %vm318, %v317
    %s323 = scalar_lea.vmem [#allocation0], 175
    %324 = vst.msk [vmem:[%s323] sm:$0x4] %vm318, %v317
    %s325 = scalar_lea.vmem [#allocation0], 238
    %326 = vst.msk [vmem:[%s325] sm:$0x8] %vm318, %v317
    %v327 = vld [vmem:[#allocation1] sm:$0xf]
    %328 = vrot.lane.b32.xlu0 %v327, 24
    %v329 = vpop.permute.xlu0 %328
    %vm330 = vcmask 31744
    %s331 = scalar_lea.vmem [#allocation0], 50
    %332 = vst.msk [vmem:[%s331] sm:$0x1] %vm330, %v329
    %s333 = scalar_lea.vmem [#allocation0], 113
    %334 = vst.msk [vmem:[%s333] sm:$0x2] %vm330, %v329
    %s335 = scalar_lea.vmem [#allocation0], 176
    %336 = vst.msk [vmem:[%s335] sm:$0x4] %vm330, %v329
    %s337 = scalar_lea.vmem [#allocation0], 239
    %338 = vst.msk [vmem:[%s337] sm:$0x8] %vm330, %v329
    %v339 = vld [vmem:[#allocation1] sm:$0xf]
    %340 = vrot.lane.b32.xlu0 %v339, 20
    %v341 = vpop.permute.xlu0 %340
    %vm342 = vcmask 31744
    %s343 = scalar_lea.vmem [#allocation0], 51
    %344 = vst.msk [vmem:[%s343] sm:$0x1] %vm342, %v341
    %s345 = scalar_lea.vmem [#allocation0], 114
    %346 = vst.msk [vmem:[%s345] sm:$0x2] %vm342, %v341
    %s347 = scalar_lea.vmem [#allocation0], 177
    %348 = vst.msk [vmem:[%s347] sm:$0x4] %vm342, %v341
    %s349 = scalar_lea.vmem [#allocation0], 240
    %350 = vst.msk [vmem:[%s349] sm:$0x8] %vm342, %v341
    %v351 = vld [vmem:[#allocation1] sm:$0xf]
    %352 = vrot.lane.b32.xlu0 %v351, 16
    %v353 = vpop.permute.xlu0 %352
    %vm354 = vcmask 31744
    %s355 = scalar_lea.vmem [#allocation0], 56
    %356 = vst.msk [vmem:[%s355] sm:$0x1] %vm354, %v353
    %s357 = scalar_lea.vmem [#allocation0], 119
    %358 = vst.msk [vmem:[%s357] sm:$0x2] %vm354, %v353
    %s359 = scalar_lea.vmem [#allocation0], 182
    %360 = vst.msk [vmem:[%s359] sm:$0x4] %vm354, %v353
    %s361 = scalar_lea.vmem [#allocation0], 245
    %362 = vst.msk [vmem:[%s361] sm:$0x8] %vm354, %v353
    %v363 = vld [vmem:[#allocation1] sm:$0xf]
    %364 = vrot.lane.b32.xlu0 %v363, 12
    %v365 = vpop.permute.xlu0 %364
    %vm366 = vcmask 31744
    %s367 = scalar_lea.vmem [#allocation0], 57
    %368 = vst.msk [vmem:[%s367] sm:$0x1] %vm366, %v365
    %s369 = scalar_lea.vmem [#allocation0], 120
    %370 = vst.msk [vmem:[%s369] sm:$0x2] %vm366, %v365
    %s371 = scalar_lea.vmem [#allocation0], 183
    %372 = vst.msk [vmem:[%s371] sm:$0x4] %vm366, %v365
    %s373 = scalar_lea.vmem [#allocation0], 246
    %374 = vst.msk [vmem:[%s373] sm:$0x8] %vm366, %v365
    %v375 = vld [vmem:[#allocation1] sm:$0xf]
    %376 = vrot.lane.b32.xlu0 %v375, 8
    %v377 = vpop.permute.xlu0 %376
    %vm378 = vcmask 31744
    %s379 = scalar_lea.vmem [#allocation0], 58
    %380 = vst.msk [vmem:[%s379] sm:$0x1] %vm378, %v377
    %s381 = scalar_lea.vmem [#allocation0], 121
    %382 = vst.msk [vmem:[%s381] sm:$0x2] %vm378, %v377
    %s383 = scalar_lea.vmem [#allocation0], 184
    %384 = vst.msk [vmem:[%s383] sm:$0x4] %vm378, %v377
    %s385 = scalar_lea.vmem [#allocation0], 247
    %386 = vst.msk [vmem:[%s385] sm:$0x8] %vm378, %v377
    %v387 = vld [vmem:[#allocation1] sm:$0xf]
    %388 = vrot.lane.b32.xlu0 %v387, 4
    %v389 = vpop.permute.xlu0 %388
    %vm390 = vcmask 31744
    %s391 = scalar_lea.vmem [#allocation0], 59
    %392 = vst.msk [vmem:[%s391] sm:$0x1] %vm390, %v389
    %s393 = scalar_lea.vmem [#allocation0], 122
    %394 = vst.msk [vmem:[%s393] sm:$0x2] %vm390, %v389
    %s395 = scalar_lea.vmem [#allocation0], 185
    %396 = vst.msk [vmem:[%s395] sm:$0x4] %vm390, %v389
    %s397 = scalar_lea.vmem [#allocation0], 248
    %398 = vst.msk [vmem:[%s397] sm:$0x8] %vm390, %v389
    %s400 = smul.u32 2, 2
    %s401 = sshllo.u32 0, %s400
    %s402 = sshrl.u32 %s400, 1
    %v403 = vld [vmem:[#allocation0] sm:%s401]
    %v404 = vpack.c.bf16 0.0, %v403
    %s405 = sshllo.u32 0, %s402
    %406 = vst [vmem:[%s1] sm:%s405] %v404
    %s407 = scalar_lea.vmem [#allocation0], 8
    %v408 = vld [vmem:[%s407] sm:%s401]
    %v409 = vpack.c.bf16 0.0, %v408
    %s410 = sshllo.u32 0, %s402
    %s411 = scalar_lea.vmem %s1, 2
    %412 = vst [vmem:[%s411] sm:%s410] %v409
    %s413 = scalar_lea.vmem [#allocation0], 16
    %v414 = vld [vmem:[%s413] sm:%s401]
    %v415 = vpack.c.bf16 0.0, %v414
    %s416 = sshllo.u32 0, %s402
    %s417 = smul.addr 2, 2
    %s418 = scalar_lea.vmem %s1, %s417
    %419 = vst [vmem:[%s418] sm:%s416] %v415
    %s420 = scalar_lea.vmem [#allocation0], 24
    %v421 = vld [vmem:[%s420] sm:%s401]
    %v422 = vpack.c.bf16 0.0, %v421
    %s423 = sshllo.u32 0, %s402
    %s424 = smul.addr 2, 3
    %s425 = scalar_lea.vmem %s1, %s424
    %426 = vst [vmem:[%s425] sm:%s423] %v422
    %s427 = scalar_lea.vmem [#allocation0], 32
    %v428 = vld [vmem:[%s427] sm:%s401]
    %v429 = vpack.c.bf16 0.0, %v428
    %s430 = sshllo.u32 0, %s402
    %s431 = smul.addr 2, 4
    %s432 = scalar_lea.vmem %s1, %s431
    %433 = vst [vmem:[%s432] sm:%s430] %v429
    %s434 = scalar_lea.vmem [#allocation0], 40
    %v435 = vld [vmem:[%s434] sm:%s401]
    %v436 = vpack.c.bf16 0.0, %v435
    %s437 = sshllo.u32 0, %s402
    %s438 = smul.addr 2, 5
    %s439 = scalar_lea.vmem %s1, %s438
    %440 = vst [vmem:[%s439] sm:%s437] %v436
    %s441 = scalar_lea.vmem [#allocation0], 48
    %v442 = vld [vmem:[%s441] sm:%s401]
    %v443 = vpack.c.bf16 0.0, %v442
    %s444 = sshllo.u32 0, %s402
    %s445 = smul.addr 2, 6
    %s446 = scalar_lea.vmem %s1, %s445
    %447 = vst [vmem:[%s446] sm:%s444] %v443
    %s448 = scalar_lea.vmem [#allocation0], 56
    %v449 = vld [vmem:[%s448] sm:%s401]
    %v450 = vpack.c.bf16 0.0, %v449
    %s451 = sshllo.u32 0, %s402
    %s452 = smul.addr 2, 7
    %s453 = scalar_lea.vmem %s1, %s452
    %454 = vst [vmem:[%s453] sm:%s451] %v450
    %s455 = scalar_lea.vmem [#allocation0], 64
    %v456 = vld [vmem:[%s455] sm:%s401]
    %v457 = vpack.c.bf16 0.0, %v456
    %s458 = sshllo.u32 0, %s402
    %s459 = smul.addr 2, 8
    %s460 = scalar_lea.vmem %s1, %s459
    %461 = vst [vmem:[%s460] sm:%s458] %v457
    %s462 = scalar_lea.vmem [#allocation0], 72
    %v463 = vld [vmem:[%s462] sm:%s401]
    %v464 = vpack.c.bf16 0.0, %v463
    %s465 = sshllo.u32 0, %s402
    %s466 = smul.addr 2, 9
    %s467 = scalar_lea.vmem %s1, %s466
    %468 = vst [vmem:[%s467] sm:%s465] %v464
    %s469 = scalar_lea.vmem [#allocation0], 80
    %v470 = vld [vmem:[%s469] sm:%s401]
    %v471 = vpack.c.bf16 0.0, %v470
    %s472 = sshllo.u32 0, %s402
    %s473 = smul.addr 2, 10
    %s474 = scalar_lea.vmem %s1, %s473
    %475 = vst [vmem:[%s474] sm:%s472] %v471
    %s476 = scalar_lea.vmem [#allocation0], 88
    %v477 = vld [vmem:[%s476] sm:%s401]
    %v478 = vpack.c.bf16 0.0, %v477
    %s479 = sshllo.u32 0, %s402
    %s480 = smul.addr 2, 11
    %s481 = scalar_lea.vmem %s1, %s480
    %482 = vst [vmem:[%s481] sm:%s479] %v478
    %s483 = scalar_lea.vmem [#allocation0], 96
    %v484 = vld [vmem:[%s483] sm:%s401]
    %v485 = vpack.c.bf16 0.0, %v484
    %s486 = sshllo.u32 0, %s402
    %s487 = smul.addr 2, 12
    %s488 = scalar_lea.vmem %s1, %s487
    %489 = vst [vmem:[%s488] sm:%s486] %v485
    %s490 = scalar_lea.vmem [#allocation0], 104
    %v491 = vld [vmem:[%s490] sm:%s401]
    %v492 = vpack.c.bf16 0.0, %v491
    %s493 = sshllo.u32 0, %s402
    %s494 = smul.addr 2, 13
    %s495 = scalar_lea.vmem %s1, %s494
    %496 = vst [vmem:[%s495] sm:%s493] %v492
    %s497 = scalar_lea.vmem [#allocation0], 112
    %v498 = vld [vmem:[%s497] sm:%s401]
    %v499 = vpack.c.bf16 0.0, %v498
    %s500 = sshllo.u32 0, %s402
    %s501 = smul.addr 2, 14
    %s502 = scalar_lea.vmem %s1, %s501
    %503 = vst [vmem:[%s502] sm:%s500] %v499
    %s504 = scalar_lea.vmem [#allocation0], 120
    %v505 = vld [vmem:[%s504] sm:%s401]
    %v506 = vpack.c.bf16 0.0, %v505
    %s507 = sshllo.u32 0, %s402
    %s508 = smul.addr 2, 15
    %s509 = scalar_lea.vmem %s1, %s508
    %510 = vst [vmem:[%s509] sm:%s507] %v506
    %s511 = scalar_lea.vmem [#allocation0], 128
    %v512 = vld [vmem:[%s511] sm:%s401]
    %v513 = vpack.c.bf16 0.0, %v512
    %s514 = sshllo.u32 0, %s402
    %s515 = smul.addr 2, 16
    %s516 = scalar_lea.vmem %s1, %s515
    %517 = vst [vmem:[%s516] sm:%s514] %v513
    %s518 = scalar_lea.vmem [#allocation0], 136
    %v519 = vld [vmem:[%s518] sm:%s401]
    %v520 = vpack.c.bf16 0.0, %v519
    %s521 = sshllo.u32 0, %s402
    %s522 = smul.addr 2, 17
    %s523 = scalar_lea.vmem %s1, %s522
    %524 = vst [vmem:[%s523] sm:%s521] %v520
    %s525 = scalar_lea.vmem [#allocation0], 144
    %v526 = vld [vmem:[%s525] sm:%s401]
    %v527 = vpack.c.bf16 0.0, %v526
    %s528 = sshllo.u32 0, %s402
    %s529 = smul.addr 2, 18
    %s530 = scalar_lea.vmem %s1, %s529
    %531 = vst [vmem:[%s530] sm:%s528] %v527
    %s532 = scalar_lea.vmem [#allocation0], 152
    %v533 = vld [vmem:[%s532] sm:%s401]
    %v534 = vpack.c.bf16 0.0, %v533
    %s535 = sshllo.u32 0, %s402
    %s536 = smul.addr 2, 19
    %s537 = scalar_lea.vmem %s1, %s536
    %538 = vst [vmem:[%s537] sm:%s535] %v534
    %s539 = scalar_lea.vmem [#allocation0], 160
    %v540 = vld [vmem:[%s539] sm:%s401]
    %v541 = vpack.c.bf16 0.0, %v540
    %s542 = sshllo.u32 0, %s402
    %s543 = smul.addr 2, 20
    %s544 = scalar_lea.vmem %s1, %s543
    %545 = vst [vmem:[%s544] sm:%s542] %v541
    %s546 = scalar_lea.vmem [#allocation0], 168
    %v547 = vld [vmem:[%s546] sm:%s401]
    %v548 = vpack.c.bf16 0.0, %v547
    %s549 = sshllo.u32 0, %s402
    %s550 = smul.addr 2, 21
    %s551 = scalar_lea.vmem %s1, %s550
    %552 = vst [vmem:[%s551] sm:%s549] %v548
    %s553 = scalar_lea.vmem [#allocation0], 176
    %v554 = vld [vmem:[%s553] sm:%s401]
    %v555 = vpack.c.bf16 0.0, %v554
    %s556 = sshllo.u32 0, %s402
    %s557 = smul.addr 2, 22
    %s558 = scalar_lea.vmem %s1, %s557
    %559 = vst [vmem:[%s558] sm:%s556] %v555
    %s560 = scalar_lea.vmem [#allocation0], 184
    %v561 = vld [vmem:[%s560] sm:%s401]
    %v562 = vpack.c.bf16 0.0, %v561
    %s563 = sshllo.u32 0, %s402
    %s564 = smul.addr 2, 23
    %s565 = scalar_lea.vmem %s1, %s564
    %566 = vst [vmem:[%s565] sm:%s563] %v562
    %s567 = scalar_lea.vmem [#allocation0], 192
    %v568 = vld [vmem:[%s567] sm:%s401]
    %v569 = vpack.c.bf16 0.0, %v568
    %s570 = sshllo.u32 0, %s402
    %s571 = smul.addr 2, 24
    %s572 = scalar_lea.vmem %s1, %s571
    %573 = vst [vmem:[%s572] sm:%s570] %v569
    %s574 = scalar_lea.vmem [#allocation0], 200
    %v575 = vld [vmem:[%s574] sm:%s401]
    %v576 = vpack.c.bf16 0.0, %v575
    %s577 = sshllo.u32 0, %s402
    %s578 = smul.addr 2, 25
    %s579 = scalar_lea.vmem %s1, %s578
    %580 = vst [vmem:[%s579] sm:%s577] %v576
    %s581 = scalar_lea.vmem [#allocation0], 208
    %v582 = vld [vmem:[%s581] sm:%s401]
    %v583 = vpack.c.bf16 0.0, %v582
    %s584 = sshllo.u32 0, %s402
    %s585 = smul.addr 2, 26
    %s586 = scalar_lea.vmem %s1, %s585
    %587 = vst [vmem:[%s586] sm:%s584] %v583
    %s588 = scalar_lea.vmem [#allocation0], 216
    %v589 = vld [vmem:[%s588] sm:%s401]
    %v590 = vpack.c.bf16 0.0, %v589
    %s591 = sshllo.u32 0, %s402
    %s592 = smul.addr 2, 27
    %s593 = scalar_lea.vmem %s1, %s592
    %594 = vst [vmem:[%s593] sm:%s591] %v590
    %s595 = scalar_lea.vmem [#allocation0], 224
    %v596 = vld [vmem:[%s595] sm:%s401]
    %v597 = vpack.c.bf16 0.0, %v596
    %s598 = sshllo.u32 0, %s402
    %s599 = smul.addr 2, 28
    %s600 = scalar_lea.vmem %s1, %s599
    %601 = vst [vmem:[%s600] sm:%s598] %v597
    %s602 = scalar_lea.vmem [#allocation0], 232
    %v603 = vld [vmem:[%s602] sm:%s401]
    %v604 = vpack.c.bf16 0.0, %v603
    %s605 = sshllo.u32 0, %s402
    %s606 = smul.addr 2, 29
    %s607 = scalar_lea.vmem %s1, %s606
    %608 = vst [vmem:[%s607] sm:%s605] %v604
    %s609 = scalar_lea.vmem [#allocation0], 240
    %v610 = vld [vmem:[%s609] sm:%s401]
    %v611 = vpack.c.bf16 0.0, %v610
    %s612 = sshllo.u32 0, %s402
    %s613 = smul.addr 2, 30
    %s614 = scalar_lea.vmem %s1, %s613
    %615 = vst [vmem:[%s614] sm:%s612] %v611
    %s616 = scalar_lea.vmem [#allocation0], 248
    %v617 = vld [vmem:[%s616] sm:%s401]
    %v618 = vpack.c.bf16 0.0, %v617
    %s619 = sshllo.u32 0, %s402
    %s620 = smul.addr 2, 31
    %s621 = scalar_lea.vmem %s1, %s620
    %622 = vst [vmem:[%s621] sm:%s619] %v618

// kernel: darknet_forward.16
$region0: #{darknet_forward.16}
  #allocation0 [shape = 'u32[]', space=smem, size = 0x4, offset = 0x4, fixed_abs, tag = 'smem constant byte address 0x4 - core index']
  #allocation1 [shape = 'u32[144,128]{1,0:T(1,128)}', space=vmem, size = 0x12000, scoped, tag = 'internal scratch']
  %s0 = inlined_call_operand.vmem [shape: f32[4,512], index: 0, kind: input, shape index: {}]
  %s1 = inlined_call_operand.vmem [shape: f32[1,512], index: 1, kind: output, shape index: {}]
  %s2 = sld [smem:[#allocation0]]
  $region14: #{darknet_forward.16} parent=0
    _
  %s4 = ssub.s32 1, %s2
  %s5 = scalar_select 0, %s4, %s2
  // Predicated region
  $region2: #{darknet_forward.16} parent=0 // pred_check
    _
  $region3: #{darknet_forward.16} parent=0 // pred_check_branch
    %7 = sbr.rel (0) target = $region5
  $region4: #{darknet_forward.16} parent=0 // pred_region
    _
  $region5: #{darknet_forward.16} parent=0 // pred_fallthru
    _
  %v8 = vld [vmem:[%s0] sm:$0xff]
  %v9 = vld [vmem:[%s0 + $0x8] sm:$0xff]
  %v12 = vrot.slane %v8, 5
  %v13 = vrot.slane %v12, 4
  %v14 = vrot.slane %v9, 5
  %v15 = vrot.slane %v14, 4
  %v18 = vmax.f32 %v8, %v13
  %v19 = vmax.f32 %v9, %v15
  %v22 = vrot.slane %v18, 6
  %v23 = vrot.slane %v22, 4
  %v24 = vrot.slane %v19, 6
  %v25 = vrot.slane %v24, 4
  %v28 = vmax.f32 %v18, %v23
  %v29 = vmax.f32 %v19, %v25
  %v33 = vunpack.c.l.s4 1966171168
  %v34 = vunpack.c.0.s8 %v33
  %v35 = vlaneseq
  %v36 = vshrl.u32 %v35, 7
  %v37 = vsub.s32 %v34, %v36
  %v38 = vrot.slane %v28, %v37
  %v40 = vunpack.c.l.s4 1966171168
  %v41 = vunpack.c.0.s8 %v40
  %v42 = vlaneseq
  %v43 = vshrl.u32 %v42, 7
  %v44 = vsub.s32 %v41, %v43
  %v45 = vrot.slane %v29, %v44
  %v46 = vcombine.low %v38, %v45
  %v48 = vunpack.c.l.s4 1966171168
  %v49 = vunpack.c.0.s8 %v48
  %v50 = vlaneseq
  %v51 = vshrl.u32 %v50, 7
  %v52 = vsub.s32 %v49, %v51
  %v53 = vrot.slane %v46, %v52
  %v55 = vlaneseq
  %vm56 = vcmp.ge.s32.totalorder %v55, 0
  %vm57 = vcmp.lt.s32.totalorder %v55, 512
  %vm58 = vmand %vm56, %vm57
  %59 = vst.msk [vmem:[%s1] sm:$0xf] %vm58, %v53
  // Predicated region
  $region6: #{darknet_forward.16} parent=0 // pred_check
    _
  $region7: #{darknet_forward.16} parent=0 // pred_check_branch
    %61 = sbr.rel (0) target = $region9
  $region8: #{darknet_forward.16} parent=0 // pred_region
    _
  $region9: #{darknet_forward.16} parent=0 // pred_fallthru
    _
  // Predicated region
  $region10: #{darknet_forward.16} parent=0 // pred_check
    _
  $region11: #{darknet_forward.16} parent=0 // pred_check_branch
    %63 = sbr.rel (0) target = $region13
  $region12: #{darknet_forward.16} parent=0 // pred_region
    _
  $region13: #{darknet_forward.16} parent=0 // pred_fallthru
    _

// kernel: darknet_forward.17
$region0: #{darknet_forward.17}
  #allocation0 [shape = 'u32[]', space=smem, size = 0x4, offset = 0x4, fixed_abs, tag = 'smem constant byte address 0x4 - core index']
  #allocation1 [shape = 'u32[144,128]{1,0:T(1,128)}', space=vmem, size = 0x12000, scoped, tag = 'internal scratch']
  %s0 = inlined_call_operand.vmem [shape: bf16[32,144], index: 0, kind: input, shape index: {}]
  %s1 = inlined_call_operand.vmem [shape: bf16[144,128], index: 1, kind: input, shape index: {}]
  %s2 = inlined_call_operand.vmem [shape: f32[32,1], index: 2, kind: input, shape index: {}]
  %s3 = inlined_call_operand.vmem [shape: f32[32,128], index: 3, kind: output, shape index: {}]
  %s4 = sld [smem:[#allocation0]]
  $region22: #{darknet_forward.17} parent=0
    _
  %s6 = ssub.s32 1, %s4
  %s7 = scalar_select 0, %s6, %s4
  // Predicated region
  $region2: #{darknet_forward.17} parent=0 // pred_check
    _
  $region3: #{darknet_forward.17} parent=0 // pred_check_branch
    %9 = sbr.rel (0) target = $region5
  $region4: #{darknet_forward.17} parent=0 // pred_region
    _
  $region5: #{darknet_forward.17} parent=0 // pred_fallthru
    _
  // Predicated region
  $region6: #{darknet_forward.17} parent=0 // pred_check
    _
  $region7: #{darknet_forward.17} parent=0 // pred_check_branch
    %11 = sbr.rel (0) target = $region9
  $region8: #{darknet_forward.17} parent=0 // pred_region
    _
  $region9: #{darknet_forward.17} parent=0 // pred_fallthru
    _
  // Predicated region
  $region10: #{darknet_forward.17} parent=0 // pred_check
    _
  $region11: #{darknet_forward.17} parent=0 // pred_check_branch
    %13 = sbr.rel (0) target = $region13
  $region12: #{darknet_forward.17} parent=0 // pred_region
    _
  $region13: #{darknet_forward.17} parent=0 // pred_fallthru
    _
  %v15 = vld [vmem:[%s0] sm:$0xff]
  %v16 = vld [vmem:[%s0 + $0x8] sm:$0xff]
  %v17 = vld [vmem:[%s0 + $0x10] sm:$0xff]
  %v18 = vld [vmem:[%s0 + $0x18] sm:$0xff]
  %v19 = vld [vmem:[%s1] sm:$0xf]
  %v20 = vld [vmem:[%s1 + $0x4] sm:$0xf]
  %v21 = vld [vmem:[%s1 + $0x8] sm:$0xf]
  %v22 = vld [vmem:[%s1 + $0xc] sm:$0xf]
  %v23 = vld [vmem:[%s1 + $0x10] sm:$0xf]
  %v24 = vld [vmem:[%s1 + $0x14] sm:$0xf]
  %v25 = vld [vmem:[%s1 + $0x18] sm:$0xf]
  %v26 = vld [vmem:[%s1 + $0x1c] sm:$0xf]
  %v27 = vld [vmem:[%s1 + $0x20] sm:$0xf]
  %v28 = vld [vmem:[%s1 + $0x24] sm:$0xf]
  %v29 = vld [vmem:[%s1 + $0x28] sm:$0xf]
  %v30 = vld [vmem:[%s1 + $0x2c] sm:$0xf]
  %v31 = vld [vmem:[%s1 + $0x30] sm:$0xf]
  %v32 = vld [vmem:[%s1 + $0x34] sm:$0xf]
  %v33 = vld [vmem:[%s1 + $0x38] sm:$0xf]
  %v34 = vld [vmem:[%s1 + $0x3c] sm:$0xf]
  %v35 = vld [vmem:[%s1 + $0x40] sm:$0xf]
  %v36 = vld [vmem:[%s1 + $0x44] sm:$0xf]
  %v37 = vld [vmem:[%s2] sm:$0xff]
  %v38 = vld [vmem:[%s2 + $0x8] sm:$0xff]
  %v39 = vld [vmem:[%s2 + $0x10] sm:$0xff]
  %v40 = vld [vmem:[%s2 + $0x18] sm:$0xff]
  %42 = vset.pattern.permute.xlu0 0
  %43 = vperm.xlu0 %42, %v37
  %v44 = vpop.permute.xlu0 %43
  %47 = vset.pattern.permute.xlu0 0
  %48 = vperm.xlu0 %47, %v38
  %v49 = vpop.permute.xlu0 %48
  %52 = vset.pattern.permute.xlu0 0
  %53 = vperm.xlu0 %52, %v39
  %v54 = vpop.permute.xlu0 %53
  %57 = vset.pattern.permute.xlu0 0
  %58 = vperm.xlu0 %57, %v40
  %v59 = vpop.permute.xlu0 %58
  %v65 = vunpack.c.l.b16 %v15
  %v66 = vunpack.c.h.b16 %v15
  %v67 = vunpack.c.l.b16 %v16
  %v68 = vunpack.c.h.b16 %v16
  %v69 = vunpack.c.l.b16 %v17
  %v70 = vunpack.c.h.b16 %v17
  %v71 = vunpack.c.l.b16 %v18
  %v72 = vunpack.c.h.b16 %v18
  %v73 = vpack.c.b16 %v67, %v65
  %v74 = vpack.c.b16 %v68, %v66
  %v75 = vpack.c.b16 %v71, %v69
  %v76 = vpack.c.b16 %v72, %v70
  %v97 = vunpack.c.l.b16 %v19
  %v98 = vunpack.c.l.b16 %v20
  %v99 = vunpack.c.l.b16 %v21
  %v100 = vunpack.c.l.b16 %v22
  %v101 = vunpack.c.l.b16 %v23
  %v102 = vunpack.c.l.b16 %v24
  %v103 = vunpack.c.l.b16 %v25
  %v104 = vunpack.c.l.b16 %v26
  %v105 = vunpack.c.l.b16 %v27
  %v106 = vunpack.c.l.b16 %v28
  %v107 = vunpack.c.l.b16 %v29
  %v108 = vunpack.c.l.b16 %v30
  %v109 = vunpack.c.l.b16 %v31
  %v110 = vunpack.c.l.b16 %v32
  %v111 = vunpack.c.l.b16 %v33
  %v112 = vunpack.c.l.b16 %v34
  %v113 = vunpack.c.l.b16 %v35
  %v114 = vunpack.c.l.b16 %v36
  %v115 = vpack.c.b16 %v98, %v97
  %v116 = vpack.c.b16 %v100, %v99
  %v117 = vpack.c.b16 %v102, %v101
  %v118 = vpack.c.b16 %v104, %v103
  %v119 = vpack.c.b16 %v106, %v105
  %v120 = vpack.c.b16 %v108, %v107
  %v121 = vpack.c.b16 %v110, %v109
  %v122 = vpack.c.b16 %v112, %v111
  %v123 = vpack.c.b16 %v114, %v113
  %vm133 = vcmask 130048
  %v135 = vsel %vm133, %v74, 0
  %v138 = vsel %vm133, %v76, 0
  %140 = vmatprep.subr.bf16.mxu0 0
  %141 = vmatpush1.bf16.msra.mxu0 %v115
  %142 = vmatprep.subr.bf16.mxu0 0
  %143 = vmatpush1.bf16.msra.mxu0 %v116
  %144 = vmatprep.subr.bf16.mxu0 0
  %145 = vmatpush1.bf16.msra.mxu0 %v117
  %146 = vmatprep.subr.bf16.mxu0 0
  %147 = vmatpush1.bf16.msra.mxu0 %v118
  %148 = vmatprep.subr.bf16.mxu0 0
  %149 = vmatpush1.bf16.msra.mxu0 %v119
  %150 = vmatprep.subr.bf16.mxu0 0
  %151 = vmatpush1.bf16.msra.mxu0 %v120
  %152 = vmatprep.subr.bf16.mxu0 0
  %153 = vmatpush1.bf16.msra.mxu0 %v121
  %154 = vmatprep.subr.bf16.mxu0 0
  %155 = vmatpush1.bf16.msra.mxu0 %v122
  %156 = vmatprep.subr.bf16.mxu0 0
  %157 = vmatpush1.bf16.msra.mxu0 %v123
  %158 = vmatprep.subr.bf16.mxu0 0
  %159 = vmatpush1.bf16.msra.mxu0 0
  %160 = vmatprep.subr.bf16.mxu0 0
  %161 = vmatpush1.bf16.msra.mxu0 0
  %162 = vmatprep.subr.bf16.mxu0 0
  %163 = vmatpush1.bf16.msra.mxu0 0
  %164 = vmatprep.subr.bf16.mxu0 0
  %165 = vmatpush1.bf16.msra.mxu0 0
  %166 = vmatprep.subr.bf16.mxu0 0
  %167 = vmatpush1.bf16.msra.mxu0 0
  %168 = vmatprep.subr.bf16.mxu0 0
  %169 = vmatpush1.bf16.msra.mxu0 0
  %170 = vmatprep.subr.bf16.mxu0 0
  %171 = vmatpush1.bf16.msra.mxu0 0
  %172 = vmatprep.mubr.bf16.mxu0 %v135
  %173 = vmatmul.mubr.bf16.gmra.mrb[0].mxu0 %v73
  %v174 = vpop.f32.mrb[0].mxu0
  %v175 = vadd.f32 %v44, %v174
  %v176 = vpop.f32.mrb[0].mxu0
  %v177 = vpop.f32.mrb[0].mxu0
  %v178 = vadd.f32 %v49, %v177
  %v179 = vpop.f32.mrb[0].mxu0
  %180 = vmatprep.mubr.bf16.mxu0 %v138
  %181 = vmatmul.mubr.bf16.gmra.mrb[0].mxu0 %v75
  %v182 = vpop.f32.mrb[0].mxu0
  %v183 = vadd.f32 %v54, %v182
  %v184 = vpop.f32.mrb[0].mxu0
  %v185 = vpop.f32.mrb[0].mxu0
  %v186 = vadd.f32 %v59, %v185
  %v187 = vpop.f32.mrb[0].mxu0
  %188 = vdwg.mxu0
  %vm189 = vcmp.gt.f32.partialorder %v175, 0.0
  %vm190 = vcmp.gt.f32.partialorder %v178, 0.0
  %vm191 = vcmp.gt.f32.partialorder %v183, 0.0
  %vm192 = vcmp.gt.f32.partialorder %v186, 0.0
  %v193 = vmul.f32 %v175, 0.1
  %v194 = vmul.f32 %v178, 0.1
  %v195 = vmul.f32 %v183, 0.1
  %v196 = vmul.f32 %v186, 0.1
  %v197 = vsel %vm189, %v175, %v193
  %v198 = vsel %vm190, %v178, %v194
  %v199 = vsel %vm191, %v183, %v195
  %v200 = vsel %vm192, %v186, %v196
  %201 = vst [vmem:[%s3] sm:$0xff] %v197
  %202 = vst [vmem:[%s3 + $0x8] sm:$0xff] %v198
  %203 = vst [vmem:[%s3 + $0x10] sm:$0xff] %v199
  %204 = vst [vmem:[%s3 + $0x18] sm:$0xff] %v200
  // Predicated region
  $region14: #{darknet_forward.17} parent=0 // pred_check
    _
  $region15: #{darknet_forward.17} parent=0 // pred_check_branch
    %206 = sbr.rel (0) target = $region17
  $region16: #{darknet_forward.17} parent=0 // pred_region
    _
  $region17: #{darknet_forward.17} parent=0 // pred_fallthru
    _
  // Predicated region
  $region18: #{darknet_forward.17} parent=0 // pred_check
    _
  $region19: #{darknet_forward.17} parent=0 // pred_check_branch
    %208 = sbr.rel (0) target = $region21
  $region20: #{darknet_forward.17} parent=0 // pred_region
    _
  $region21: #{darknet_forward.17} parent=0 // pred_fallthru
    _

// kernel: darknet_forward.18
$region0: #{darknet_forward.18}
  #allocation0 [shape = 'u32[]', space=smem, size = 0x4, offset = 0x4, fixed_abs, tag = 'smem constant byte address 0x4 - core index']
  #allocation1 [shape = 'u32[144,128]{1,0:T(1,128)}', space=vmem, size = 0x12000, scoped, tag = 'internal scratch']
  %s0 = inlined_call_operand.vmem [shape: bf16[21,32], index: 0, kind: input, shape index: {}]
  %s1 = inlined_call_operand.vmem [shape: bf16[32,128], index: 1, kind: input, shape index: {}]
  %s2 = inlined_call_operand.vmem [shape: f32[21,1], index: 2, kind: input, shape index: {}]
  %s3 = inlined_call_operand.vmem [shape: f32[21,128], index: 3, kind: output, shape index: {}]
  %s4 = sld [smem:[#allocation0]]
  $region22: #{darknet_forward.18} parent=0
    _
  %s6 = ssub.s32 1, %s4
  %s7 = scalar_select 0, %s6, %s4
  // Predicated region
  $region2: #{darknet_forward.18} parent=0 // pred_check
    _
  $region3: #{darknet_forward.18} parent=0 // pred_check_branch
    %9 = sbr.rel (0) target = $region5
  $region4: #{darknet_forward.18} parent=0 // pred_region
    _
  $region5: #{darknet_forward.18} parent=0 // pred_fallthru
    _
  // Predicated region
  $region6: #{darknet_forward.18} parent=0 // pred_check
    _
  $region7: #{darknet_forward.18} parent=0 // pred_check_branch
    %11 = sbr.rel (0) target = $region9
  $region8: #{darknet_forward.18} parent=0 // pred_region
    _
  $region9: #{darknet_forward.18} parent=0 // pred_fallthru
    _
  // Predicated region
  $region10: #{darknet_forward.18} parent=0 // pred_check
    _
  $region11: #{darknet_forward.18} parent=0 // pred_check_branch
    %13 = sbr.rel (0) target = $region13
  $region12: #{darknet_forward.18} parent=0 // pred_region
    _
  $region13: #{darknet_forward.18} parent=0 // pred_fallthru
    _
  %v15 = vld [vmem:[%s0] sm:$0xf]
  %v16 = vld [vmem:[%s0 + $0x4] sm:$0xf]
  %v17 = vld [vmem:[%s0 + $0x8] sm:$0x7]
  %v18 = vld [vmem:[%s1] sm:$0xf]
  %v19 = vld [vmem:[%s1 + $0x4] sm:$0xf]
  %v20 = vld [vmem:[%s1 + $0x8] sm:$0xf]
  %v21 = vld [vmem:[%s1 + $0xc] sm:$0xf]
  %v22 = vld [vmem:[%s2] sm:$0xff]
  %v23 = vld [vmem:[%s2 + $0x8] sm:$0xff]
  %v24 = vld [vmem:[%s2 + $0x10] sm:$0x1f]
  %26 = vset.pattern.permute.xlu0 0
  %27 = vperm.xlu0 %26, %v22
  %v28 = vpop.permute.xlu0 %27
  %31 = vset.pattern.permute.xlu0 0
  %32 = vperm.xlu0 %31, %v23
  %v33 = vpop.permute.xlu0 %32
  %36 = vset.pattern.permute.xlu0 0
  %37 = vperm.xlu0 %36, %v24
  %v38 = vpop.permute.xlu0 %37
  %v43 = vunpack.c.l.b16 %v15
  %v44 = vunpack.c.l.b16 %v16
  %v45 = vunpack.c.l.b16 %v17
  %v46 = vpack.c.b16 %v44, %v43
  %v47 = vpack.c.b16 %v45, %v45
  %v52 = vunpack.c.l.b16 %v18
  %v53 = vunpack.c.l.b16 %v19
  %v54 = vunpack.c.l.b16 %v20
  %v55 = vunpack.c.l.b16 %v21
  %v56 = vpack.c.b16 %v53, %v52
  %v57 = vpack.c.b16 %v55, %v54
  %vm60 = vcmask 261120
  %v62 = vsel %vm60, %v46, 0
  %v65 = vsel %vm60, %v47, 0
  %67 = vmatprep.subr.bf16.mxu0 0
  %68 = vmatpush1.bf16.msra.mxu0 %v56
  %69 = vmatprep.subr.bf16.mxu0 0
  %70 = vmatpush1.bf16.msra.mxu0 %v57
  %71 = vmatprep.subr.bf16.mxu0 0
  %72 = vmatpush1.bf16.msra.mxu0 0
  %73 = vmatprep.subr.bf16.mxu0 0
  %74 = vmatpush1.bf16.msra.mxu0 0
  %75 = vmatprep.subr.bf16.mxu0 0
  %76 = vmatpush1.bf16.msra.mxu0 0
  %77 = vmatprep.subr.bf16.mxu0 0
  %78 = vmatpush1.bf16.msra.mxu0 0
  %79 = vmatprep.subr.bf16.mxu0 0
  %80 = vmatpush1.bf16.msra.mxu0 0
  %81 = vmatprep.subr.bf16.mxu0 0
  %82 = vmatpush1.bf16.msra.mxu0 0
  %83 = vmatprep.subr.bf16.mxu0 0
  %84 = vmatpush1.bf16.msra.mxu0 0
  %85 = vmatprep.subr.bf16.mxu0 0
  %86 = vmatpush1.bf16.msra.mxu0 0
  %87 = vmatprep.subr.bf16.mxu0 0
  %88 = vmatpush1.bf16.msra.mxu0 0
  %89 = vmatprep.subr.bf16.mxu0 0
  %90 = vmatpush1.bf16.msra.mxu0 0
  %91 = vmatprep.subr.bf16.mxu0 0
  %92 = vmatpush1.bf16.msra.mxu0 0
  %93 = vmatprep.subr.bf16.mxu0 0
  %94 = vmatpush1.bf16.msra.mxu0 0
  %95 = vmatprep.subr.bf16.mxu0 0
  %96 = vmatpush1.bf16.msra.mxu0 0
  %97 = vmatprep.subr.bf16.mxu0 0
  %98 = vmatpush1.bf16.msra.mxu0 0
  %99 = vmatprep.mubr.bf16.mxu0 0
  %100 = vmatmul.mubr.bf16.gmra.mrb[0].mxu0 %v62
  %v101 = vpop.f32.mrb[0].mxu0
  %v102 = vadd.f32 %v28, %v101
  %v103 = vpop.f32.mrb[0].mxu0
  %v104 = vpop.f32.mrb[0].mxu0
  %v105 = vadd.f32 %v33, %v104
  %v106 = vpop.f32.mrb[0].mxu0
  %107 = vmatprep.mubr.bf16.mxu0 0
  %108 = vmatmul.mubr.bf16.gmra.mrb[0].mxu0 %v65
  %v109 = vpop.f32.mrb[0].mxu0
  %v110 = vadd.f32 %v38, %v109
  %v111 = vpop.f32.mrb[0].mxu0
  %v112 = vpop.f32.mrb[0].mxu0
  %v113 = vpop.f32.mrb[0].mxu0
  %114 = vdwg.mxu0
  %115 = vst [vmem:[%s3] sm:$0xff] %v102
  %116 = vst [vmem:[%s3 + $0x8] sm:$0xff] %v105
  %117 = vst [vmem:[%s3 + $0x10] sm:$0x1f] %v110
  // Predicated region
  $region14: #{darknet_forward.18} parent=0 // pred_check
    _
  $region15: #{darknet_forward.18} parent=0 // pred_check_branch
    %119 = sbr.rel (0) target = $region17
  $region16: #{darknet_forward.18} parent=0 // pred_region
    _
  $region17: #{darknet_forward.18} parent=0 // pred_fallthru
    _
  // Predicated region
  $region18: #{darknet_forward.18} parent=0 // pred_check
    _
  $region19: #{darknet_forward.18} parent=0 // pred_check_branch
    %121 = sbr.rel (0) target = $region21
  $region20: #{darknet_forward.18} parent=0 // pred_region
    _
  $region21: #{darknet_forward.18} parent=0 // pred_fallthru
    _

// kernel: squeeze.0
$region0: #{squeeze.0}
  %s0 = inlined_call_operand.vmem [shape: bf16[512], index: 0, kind: input, shape index: {}]
  %s1 = inlined_call_operand.vmem [shape: bf16[16,32], index: 1, kind: output, shape index: {}]
  $region1: #{squeeze.0} parent=0
    #allocation0 [shape = 'u8[8192]{0}', space=vmem, size = 0x2000, scoped, tag = 'scoped mem for output reshape']
    #allocation1 [shape = 'u8[4096]{0}', space=vmem, size = 0x1000, scoped, tag = 'scoped mem for input reshape']
    %s3 = smul.u32 2, 2
    %s4 = sshllo.u32 0, %s3
    %s5 = sshrl.u32 %s4, 1
    %s6 = sor.u32 %s4, %s5
    %s7 = sand.u32 %s6, 85
    %s8 = sshrl.u32 %s7, 1
    %s9 = sor.u32 %s7, %s8
    %s10 = sand.u32 51, %s9
    %s11 = sshrl.u32 %s10, 2
    %s12 = sor.u32 %s10, %s11
    %s13 = sand.u32 15, %s12
    %v14 = vld [vmem:[%s0] sm:%s13]
    %v15 = vunpack.c.l.bf16 %v14
    %v16 = vunpack.c.h.bf16 %v14
    %17 = vst [vmem:[#allocation1] sm:%s4] %v15
    %v18 = vld [vmem:[#allocation1] sm:$0xf]
    %vm19 = vcmask 261120
    %20 = vst.msk [vmem:[#allocation0] ss:$4 sm:$0xf] %vm19, %v18
    %v21 = vld [vmem:[#allocation1] sm:$0xf]
    %22 = vrot.lane.b32.xlu0 %v21, 96
    %v23 = vpop.permute.xlu0 %22
    %vm24 = vcmask 261120
    %s25 = scalar_lea.vmem [#allocation0], 1
    %26 = vst.msk [vmem:[%s25] ss:$4 sm:$0xf] %vm24, %v23
    %v27 = vld [vmem:[#allocation1] sm:$0xf]
    %28 = vrot.lane.b32.xlu0 %v27, 64
    %v29 = vpop.permute.xlu0 %28
    %vm30 = vcmask 261120
    %s31 = scalar_lea.vmem [#allocation0], 2
    %32 = vst.msk [vmem:[%s31] ss:$4 sm:$0xf] %vm30, %v29
    %v33 = vld [vmem:[#allocation1] sm:$0xf]
    %34 = vrot.lane.b32.xlu0 %v33, 32
    %v35 = vpop.permute.xlu0 %34
    %vm36 = vcmask 261120
    %s37 = scalar_lea.vmem [#allocation0], 3
    %38 = vst.msk [vmem:[%s37] ss:$4 sm:$0xf] %vm36, %v35
    %s40 = smul.u32 4, 2
    %s41 = sshllo.u32 0, %s40
    %s42 = sshrl.u32 %s40, 1
    %v43 = vld [vmem:[#allocation0] sm:%s41]
    %v44 = vpack.c.bf16 0.0, %v43
    %s45 = sshllo.u32 0, %s42
    %46 = vst [vmem:[%s1] sm:%s45] %v44
    %s47 = scalar_lea.vmem [#allocation0], 8
    %v48 = vld [vmem:[%s47] sm:%s41]
    %v49 = vpack.c.bf16 0.0, %v48
    %s50 = sshllo.u32 0, %s42
    %s51 = scalar_lea.vmem %s1, 4
    %52 = vst [vmem:[%s51] sm:%s50] %v49

// kernel: darknet_forward.19
$region0: #{darknet_forward.19}
  #allocation0 [shape = 'u32[]', space=smem, size = 0x4, offset = 0x4, fixed_abs, tag = 'smem constant byte address 0x4 - core index']
  #allocation1 [shape = 'u32[144,128]{1,0:T(1,128)}', space=vmem, size = 0x12000, scoped, tag = 'internal scratch']
  %s0 = inlined_call_operand.vmem [shape: f32[7,128], index: 0, kind: input, shape index: {}]
  %s1 = inlined_call_operand.vmem [shape: f32[4,128], index: 1, kind: input, shape index: {}]
  %s2 = inlined_call_operand.vmem [shape: f32[7,128], index: 2, kind: output, shape index: {}]
  %s3 = sld [smem:[#allocation0]]
  $region18: #{darknet_forward.19} parent=0
    _
  %s5 = ssub.s32 1, %s3
  %s6 = scalar_select 0, %s5, %s3
  // Predicated region
  $region2: #{darknet_forward.19} parent=0 // pred_check
    _
  $region3: #{darknet_forward.19} parent=0 // pred_check_branch
    %8 = sbr.rel (0) target = $region5
  $region4: #{darknet_forward.19} parent=0 // pred_region
    _
  $region5: #{darknet_forward.19} parent=0 // pred_fallthru
    _
  // Predicated region
  $region6: #{darknet_forward.19} parent=0 // pred_check
    _
  $region7: #{darknet_forward.19} parent=0 // pred_check_branch
    %10 = sbr.rel (0) target = $region9
  $region8: #{darknet_forward.19} parent=0 // pred_region
    _
  $region9: #{darknet_forward.19} parent=0 // pred_fallthru
    _
  %v11 = vld [vmem:[%s0] sm:$0x3]
  %v12 = vxor.u32 %v11, 2147483648
  %v13 = vmul.f32 %v12, 1.442695
  %v14 = vpow.pop %v13
  %v15 = vadd.f32 %v14, 1.0
  %v16 = vrcp.pop %v15
  %v17 = vmul.f32 1.0, %v16
  %v18 = vld [vmem:[%s1] sm:$0x3]
  %v19 = vadd.f32 %v17, %v18
  %v20 = vmul.f32 %v19, 4.0
  %21 = vst [vmem:[%s2] sm:$0x3] %v20
  %v22 = vld [vmem:[%s0 + $0x2] sm:$0x3]
  %v23 = vmul.f32 %v22, 1.442695
  %v24 = vpow.pop %v23
  %v25 = vld [vmem:[%s1 + $0x2] sm:$0x3]
  %v26 = vmul.f32 %v24, %v25
  %v27 = vmul.f32 %v26, 4.0
  %28 = vst [vmem:[%s2 + $0x2] sm:$0x3] %v27
  %v29 = vld [vmem:[%s0 + $0x4] sm:$0x7]
  %v30 = vxor.u32 %v29, 2147483648
  %v31 = vmul.f32 %v30, 1.442695
  %v32 = vpow.pop %v31
  %v33 = vadd.f32 %v32, 1.0
  %v34 = vrcp.pop %v33
  %v35 = vmul.f32 1.0, %v34
  %36 = vst [vmem:[%s2 + $0x4] sm:$0x7] %v35
  // Predicated region
  $region10: #{darknet_forward.19} parent=0 // pred_check
    _
  $region11: #{darknet_forward.19} parent=0 // pred_check_branch
    %38 = sbr.rel (0) target = $region13
  $region12: #{darknet_forward.19} parent=0 // pred_region
    _
  $region13: #{darknet_forward.19} parent=0 // pred_fallthru
    _
  // Predicated region
  $region14: #{darknet_forward.19} parent=0 // pred_check
    _
  $region15: #{darknet_forward.19} parent=0 // pred_check_branch
    %40 = sbr.rel (0) target = $region17
  $region16: #{darknet_forward.19} parent=0 // pred_region
    _
  $region17: #{darknet_forward.19} parent=0 // pred_fallthru
    _

// kernel: darknet_forward.21
$region0: #{darknet_forward.21}
  #allocation0 [shape = 'u32[]', space=smem, size = 0x4, offset = 0x4, fixed_abs, tag = 'smem constant byte address 0x4 - core index']
  #allocation1 [shape = 'u32[144,128]{1,0:T(1,128)}', space=vmem, size = 0x12000, scoped, tag = 'internal scratch']
  %s0 = inlined_call_operand.vmem [shape: bf16[16,216], index: 0, kind: input, shape index: {}]
  %s1 = inlined_call_operand.vmem [shape: bf16[216,128], index: 1, kind: input, shape index: {}]
  %s2 = inlined_call_operand.vmem [shape: f32[16,1], index: 2, kind: input, shape index: {}]
  %s3 = inlined_call_operand.vmem [shape: f32[16,128], index: 3, kind: output, shape index: {}]
  %s4 = sld [smem:[#allocation0]]
  $region22: #{darknet_forward.21} parent=0
    _
  %s6 = ssub.s32 1, %s4
  %s7 = scalar_select 0, %s6, %s4
  // Predicated region
  $region2: #{darknet_forward.21} parent=0 // pred_check
    _
  $region3: #{darknet_forward.21} parent=0 // pred_check_branch
    %9 = sbr.rel (0) target = $region5
  $region4: #{darknet_forward.21} parent=0 // pred_region
    _
  $region5: #{darknet_forward.21} parent=0 // pred_fallthru
    _
  // Predicated region
  $region6: #{darknet_forward.21} parent=0 // pred_check
    _
  $region7: #{darknet_forward.21} parent=0 // pred_check_branch
    %11 = sbr.rel (0) target = $region9
  $region8: #{darknet_forward.21} parent=0 // pred_region
    _
  $region9: #{darknet_forward.21} parent=0 // pred_fallthru
    _
  // Predicated region
  $region10: #{darknet_forward.21} parent=0 // pred_check
    _
  $region11: #{darknet_forward.21} parent=0 // pred_check_branch
    %13 = sbr.rel (0) target = $region13
  $region12: #{darknet_forward.21} parent=0 // pred_region
    _
  $region13: #{darknet_forward.21} parent=0 // pred_fallthru
    _
  %v15 = vld [vmem:[%s0] sm:$0xff]
  %v16 = vld [vmem:[%s0 + $0x8] sm:$0xff]
  %v17 = vld [vmem:[%s1] sm:$0xf]
  %v18 = vld [vmem:[%s1 + $0x4] sm:$0xf]
  %v19 = vld [vmem:[%s1 + $0x8] sm:$0xf]
  %v20 = vld [vmem:[%s1 + $0xc] sm:$0xf]
  %v21 = vld [vmem:[%s1 + $0x10] sm:$0xf]
  %v22 = vld [vmem:[%s1 + $0x14] sm:$0xf]
  %v23 = vld [vmem:[%s1 + $0x18] sm:$0xf]
  %v24 = vld [vmem:[%s1 + $0x1c] sm:$0xf]
  %v25 = vld [vmem:[%s1 + $0x20] sm:$0xf]
  %v26 = vld [vmem:[%s1 + $0x24] sm:$0xf]
  %v27 = vld [vmem:[%s1 + $0x28] sm:$0xf]
  %v28 = vld [vmem:[%s1 + $0x2c] sm:$0xf]
  %v29 = vld [vmem:[%s1 + $0x30] sm:$0xf]
  %v30 = vld [vmem:[%s1 + $0x34] sm:$0xf]
  %v31 = vld [vmem:[%s1 + $0x38] sm:$0xf]
  %v32 = vld [vmem:[%s1 + $0x3c] sm:$0xf]
  %v33 = vld [vmem:[%s1 + $0x40] sm:$0xf]
  %v34 = vld [vmem:[%s1 + $0x44] sm:$0xf]
  %v35 = vld [vmem:[%s1 + $0x48] sm:$0xf]
  %v36 = vld [vmem:[%s1 + $0x4c] sm:$0xf]
  %v37 = vld [vmem:[%s1 + $0x50] sm:$0xf]
  %v38 = vld [vmem:[%s1 + $0x54] sm:$0xf]
  %v39 = vld [vmem:[%s1 + $0x58] sm:$0xf]
  %v40 = vld [vmem:[%s1 + $0x5c] sm:$0xf]
  %v41 = vld [vmem:[%s1 + $0x60] sm:$0xf]
  %v42 = vld [vmem:[%s1 + $0x64] sm:$0xf]
  %v43 = vld [vmem:[%s1 + $0x68] sm:$0xf]
  %v44 = vld [vmem:[%s2] sm:$0xff]
  %v45 = vld [vmem:[%s2 + $0x8] sm:$0xff]
  %47 = vset.pattern.permute.xlu0 0
  %48 = vperm.xlu0 %47, %v44
  %v49 = vpop.permute.xlu0 %48
  %52 = vset.pattern.permute.xlu0 0
  %53 = vperm.xlu0 %52, %v45
  %v54 = vpop.permute.xlu0 %53
  %v58 = vunpack.c.l.b16 %v15
  %v59 = vunpack.c.h.b16 %v15
  %v60 = vunpack.c.l.b16 %v16
  %v61 = vunpack.c.h.b16 %v16
  %v62 = vpack.c.b16 %v60, %v58
  %v63 = vpack.c.b16 %v61, %v59
  %v92 = vunpack.c.l.b16 %v17
  %v93 = vunpack.c.l.b16 %v18
  %v94 = vunpack.c.l.b16 %v19
  %v95 = vunpack.c.l.b16 %v20
  %v96 = vunpack.c.l.b16 %v21
  %v97 = vunpack.c.l.b16 %v22
  %v98 = vunpack.c.l.b16 %v23
  %v99 = vunpack.c.l.b16 %v24
  %v100 = vunpack.c.l.b16 %v25
  %v101 = vunpack.c.l.b16 %v26
  %v102 = vunpack.c.l.b16 %v27
  %v103 = vunpack.c.l.b16 %v28
  %v104 = vunpack.c.l.b16 %v29
  %v105 = vunpack.c.l.b16 %v30
  %v106 = vunpack.c.l.b16 %v31
  %v107 = vunpack.c.l.b16 %v32
  %v108 = vunpack.c.l.b16 %v33
  %v109 = vunpack.c.l.b16 %v34
  %v110 = vunpack.c.l.b16 %v35
  %v111 = vunpack.c.l.b16 %v36
  %v112 = vunpack.c.l.b16 %v37
  %v113 = vunpack.c.l.b16 %v38
  %v114 = vunpack.c.l.b16 %v39
  %v115 = vunpack.c.l.b16 %v40
  %v116 = vunpack.c.l.b16 %v41
  %v117 = vunpack.c.l.b16 %v42
  %v118 = vunpack.c.l.b16 %v43
  %v119 = vpack.c.b16 %v93, %v92
  %v120 = vpack.c.b16 %v95, %v94
  %v121 = vpack.c.b16 %v97, %v96
  %v122 = vpack.c.b16 %v99, %v98
  %v123 = vpack.c.b16 %v101, %v100
  %v124 = vpack.c.b16 %v103, %v102
  %v125 = vpack.c.b16 %v105, %v104
  %v126 = vpack.c.b16 %v107, %v106
  %v127 = vpack.c.b16 %v109, %v108
  %v128 = vpack.c.b16 %v111, %v110
  %v129 = vpack.c.b16 %v113, %v112
  %v130 = vpack.c.b16 %v115, %v114
  %v131 = vpack.c.b16 %v117, %v116
  %v132 = vpack.c.b16 %v118, %v118
  %vm146 = vcmask 719872
  %v148 = vsel %vm146, %v63, 0
  %vm150 = vcmask 1043456
  %v152 = vsel %vm150, %v132, 0
  %154 = vmatprep.subr.bf16.mxu0 0
  %155 = vmatpush1.bf16.msra.mxu0 %v119
  %156 = vmatprep.subr.bf16.mxu0 0
  %157 = vmatpush1.bf16.msra.mxu0 %v120
  %158 = vmatprep.subr.bf16.mxu0 0
  %159 = vmatpush1.bf16.msra.mxu0 %v121
  %160 = vmatprep.subr.bf16.mxu0 0
  %161 = vmatpush1.bf16.msra.mxu0 %v122
  %162 = vmatprep.subr.bf16.mxu0 0
  %163 = vmatpush1.bf16.msra.mxu0 %v123
  %164 = vmatprep.subr.bf16.mxu0 0
  %165 = vmatpush1.bf16.msra.mxu0 %v124
  %166 = vmatprep.subr.bf16.mxu0 0
  %167 = vmatpush1.bf16.msra.mxu0 %v125
  %168 = vmatprep.subr.bf16.mxu0 0
  %169 = vmatpush1.bf16.msra.mxu0 %v126
  %170 = vmatprep.subr.bf16.mxu0 0
  %171 = vmatpush1.bf16.msra.mxu0 %v127
  %172 = vmatprep.subr.bf16.mxu0 0
  %173 = vmatpush1.bf16.msra.mxu0 %v128
  %174 = vmatprep.subr.bf16.mxu0 0
  %175 = vmatpush1.bf16.msra.mxu0 %v129
  %176 = vmatprep.subr.bf16.mxu0 0
  %177 = vmatpush1.bf16.msra.mxu0 %v130
  %178 = vmatprep.subr.bf16.mxu0 0
  %179 = vmatpush1.bf16.msra.mxu0 %v131
  %180 = vmatprep.subr.bf16.mxu0 0
  %181 = vmatpush1.bf16.msra.mxu0 %v152
  %182 = vmatprep.subr.bf16.mxu0 0
  %183 = vmatpush1.bf16.msra.mxu0 0
  %184 = vmatprep.subr.bf16.mxu0 0
  %185 = vmatpush1.bf16.msra.mxu0 0
  %186 = vmatprep.mubr.bf16.mxu0 %v148
  %187 = vmatmul.mubr.bf16.gmra.mrb[0].mxu0 %v62
  %v188 = vpop.f32.mrb[0].mxu0
  %v189 = vadd.f32 %v49, %v188
  %v190 = vpop.f32.mrb[0].mxu0
  %v191 = vpop.f32.mrb[0].mxu0
  %v192 = vadd.f32 %v54, %v191
  %v193 = vpop.f32.mrb[0].mxu0
  %194 = vdwg.mxu0
  %vm195 = vcmp.gt.f32.partialorder %v189, 0.0
  %vm196 = vcmp.gt.f32.partialorder %v192, 0.0
  %v197 = vmul.f32 %v189, 0.1
  %v198 = vmul.f32 %v192, 0.1
  %v199 = vsel %vm195, %v189, %v197
  %v200 = vsel %vm196, %v192, %v198
  %201 = vst [vmem:[%s3] sm:$0xff] %v199
  %202 = vst [vmem:[%s3 + $0x8] sm:$0xff] %v200
  // Predicated region
  $region14: #{darknet_forward.21} parent=0 // pred_check
    _
  $region15: #{darknet_forward.21} parent=0 // pred_check_branch
    %204 = sbr.rel (0) target = $region17
  $region16: #{darknet_forward.21} parent=0 // pred_region
    _
  $region17: #{darknet_forward.21} parent=0 // pred_fallthru
    _
  // Predicated region
  $region18: #{darknet_forward.21} parent=0 // pred_check
    _
  $region19: #{darknet_forward.21} parent=0 // pred_check_branch
    %206 = sbr.rel (0) target = $region21
  $region20: #{darknet_forward.21} parent=0 // pred_region
    _
  $region21: #{darknet_forward.21} parent=0 // pred_fallthru
    _

// kernel: darknet_forward.22
$region0: #{darknet_forward.22}
  #allocation0 [shape = 'u32[]', space=smem, size = 0x4, offset = 0x4, fixed_abs, tag = 'smem constant byte address 0x4 - core index']
  #allocation1 [shape = 'u32[144,128]{1,0:T(1,128)}', space=vmem, size = 0x12000, scoped, tag = 'internal scratch']
  %s0 = inlined_call_operand.vmem [shape: bf16[21,16], index: 0, kind: input, shape index: {}]
  %s1 = inlined_call_operand.vmem [shape: bf16[16,128], index: 1, kind: input, shape index: {}]
  %s2 = inlined_call_operand.vmem [shape: f32[21,1], index: 2, kind: input, shape index: {}]
  %s3 = inlined_call_operand.vmem [shape: f32[21,128], index: 3, kind: output, shape index: {}]
  %s4 = sld [smem:[#allocation0]]
  $region22: #{darknet_forward.22} parent=0
    _
  %s6 = ssub.s32 1, %s4
  %s7 = scalar_select 0, %s6, %s4
  // Predicated region
  $region2: #{darknet_forward.22} parent=0 // pred_check
    _
  $region3: #{darknet_forward.22} parent=0 // pred_check_branch
    %9 = sbr.rel (0) target = $region5
  $region4: #{darknet_forward.22} parent=0 // pred_region
    _
  $region5: #{darknet_forward.22} parent=0 // pred_fallthru
    _
  // Predicated region
  $region6: #{darknet_forward.22} parent=0 // pred_check
    _
  $region7: #{darknet_forward.22} parent=0 // pred_check_branch
    %11 = sbr.rel (0) target = $region9
  $region8: #{darknet_forward.22} parent=0 // pred_region
    _
  $region9: #{darknet_forward.22} parent=0 // pred_fallthru
    _
  // Predicated region
  $region10: #{darknet_forward.22} parent=0 // pred_check
    _
  $region11: #{darknet_forward.22} parent=0 // pred_check_branch
    %13 = sbr.rel (0) target = $region13
  $region12: #{darknet_forward.22} parent=0 // pred_region
    _
  $region13: #{darknet_forward.22} parent=0 // pred_fallthru
    _
  %v15 = vld [vmem:[%s0] sm:$0xf]
  %v16 = vld [vmem:[%s0 + $0x4] sm:$0xf]
  %v17 = vld [vmem:[%s0 + $0x8] sm:$0x7]
  %v18 = vld [vmem:[%s1] sm:$0xf]
  %v19 = vld [vmem:[%s1 + $0x4] sm:$0xf]
  %v20 = vld [vmem:[%s2] sm:$0xff]
  %v21 = vld [vmem:[%s2 + $0x8] sm:$0xff]
  %v22 = vld [vmem:[%s2 + $0x10] sm:$0x1f]
  %24 = vset.pattern.permute.xlu0 0
  %25 = vperm.xlu0 %24, %v20
  %v26 = vpop.permute.xlu0 %25
  %29 = vset.pattern.permute.xlu0 0
  %30 = vperm.xlu0 %29, %v21
  %v31 = vpop.permute.xlu0 %30
  %34 = vset.pattern.permute.xlu0 0
  %35 = vperm.xlu0 %34, %v22
  %v36 = vpop.permute.xlu0 %35
  %v41 = vunpack.c.l.b16 %v15
  %v42 = vunpack.c.l.b16 %v16
  %v43 = vunpack.c.l.b16 %v17
  %v44 = vpack.c.b16 %v42, %v41
  %v45 = vpack.c.b16 %v43, %v43
  %v48 = vunpack.c.l.b16 %v18
  %v49 = vunpack.c.l.b16 %v19
  %v50 = vpack.c.b16 %v49, %v48
  %vm52 = vcmask 130048
  %v54 = vsel %vm52, %v44, 0
  %v57 = vsel %vm52, %v45, 0
  %59 = vmatprep.subr.bf16.mxu0 0
  %60 = vmatpush1.bf16.msra.mxu0 %v50
  %61 = vmatprep.subr.bf16.mxu0 0
  %62 = vmatpush1.bf16.msra.mxu0 0
  %63 = vmatprep.subr.bf16.mxu0 0
  %64 = vmatpush1.bf16.msra.mxu0 0
  %65 = vmatprep.subr.bf16.mxu0 0
  %66 = vmatpush1.bf16.msra.mxu0 0
  %67 = vmatprep.subr.bf16.mxu0 0
  %68 = vmatpush1.bf16.msra.mxu0 0
  %69 = vmatprep.subr.bf16.mxu0 0
  %70 = vmatpush1.bf16.msra.mxu0 0
  %71 = vmatprep.subr.bf16.mxu0 0
  %72 = vmatpush1.bf16.msra.mxu0 0
  %73 = vmatprep.subr.bf16.mxu0 0
  %74 = vmatpush1.bf16.msra.mxu0 0
  %75 = vmatprep.subr.bf16.mxu0 0
  %76 = vmatpush1.bf16.msra.mxu0 0
  %77 = vmatprep.subr.bf16.mxu0 0
  %78 = vmatpush1.bf16.msra.mxu0 0
  %79 = vmatprep.subr.bf16.mxu0 0
  %80 = vmatpush1.bf16.msra.mxu0 0
  %81 = vmatprep.subr.bf16.mxu0 0
  %82 = vmatpush1.bf16.msra.mxu0 0
  %83 = vmatprep.subr.bf16.mxu0 0
  %84 = vmatpush1.bf16.msra.mxu0 0
  %85 = vmatprep.subr.bf16.mxu0 0
  %86 = vmatpush1.bf16.msra.mxu0 0
  %87 = vmatprep.subr.bf16.mxu0 0
  %88 = vmatpush1.bf16.msra.mxu0 0
  %89 = vmatprep.subr.bf16.mxu0 0
  %90 = vmatpush1.bf16.msra.mxu0 0
  %91 = vmatprep.mubr.bf16.mxu0 0
  %92 = vmatmul.mubr.bf16.gmra.mrb[0].mxu0 %v54
  %v93 = vpop.f32.mrb[0].mxu0
  %v94 = vadd.f32 %v26, %v93
  %v95 = vpop.f32.mrb[0].mxu0
  %v96 = vpop.f32.mrb[0].mxu0
  %v97 = vadd.f32 %v31, %v96
  %v98 = vpop.f32.mrb[0].mxu0
  %99 = vmatprep.mubr.bf16.mxu0 0
  %100 = vmatmul.mubr.bf16.gmra.mrb[0].mxu0 %v57
  %v101 = vpop.f32.mrb[0].mxu0
  %v102 = vadd.f32 %v36, %v101
  %v103 = vpop.f32.mrb[0].mxu0
  %v104 = vpop.f32.mrb[0].mxu0
  %v105 = vpop.f32.mrb[0].mxu0
  %106 = vdwg.mxu0
  %107 = vst [vmem:[%s3] sm:$0xff] %v94
  %108 = vst [vmem:[%s3 + $0x8] sm:$0xff] %v97
  %109 = vst [vmem:[%s3 + $0x10] sm:$0x1f] %v102
  // Predicated region
  $region14: #{darknet_forward.22} parent=0 // pred_check
    _
  $region15: #{darknet_forward.22} parent=0 // pred_check_branch
    %111 = sbr.rel (0) target = $region17
  $region16: #{darknet_forward.22} parent=0 // pred_region
    _
  $region17: #{darknet_forward.22} parent=0 // pred_fallthru
    _
  // Predicated region
  $region18: #{darknet_forward.22} parent=0 // pred_check
    _
  $region19: #{darknet_forward.22} parent=0 // pred_check_branch
    %113 = sbr.rel (0) target = $region21
  $region20: #{darknet_forward.22} parent=0 // pred_region
    _
  $region21: #{darknet_forward.22} parent=0 // pred_fallthru
    _

// kernel: darknet_forward.23
$region0: #{darknet_forward.23}
  #allocation0 [shape = 'u32[]', space=smem, size = 0x4, offset = 0x4, fixed_abs, tag = 'smem constant byte address 0x4 - core index']
  #allocation1 [shape = 'u32[144,128]{1,0:T(1,128)}', space=vmem, size = 0x12000, scoped, tag = 'internal scratch']
  %s0 = inlined_call_operand.vmem [shape: f32[7,384], index: 0, kind: input, shape index: {}]
  %s1 = inlined_call_operand.vmem [shape: f32[4,384], index: 1, kind: input, shape index: {}]
  %s2 = inlined_call_operand.vmem [shape: f32[7,384], index: 2, kind: output, shape index: {}]
  %s3 = sld [smem:[#allocation0]]
  $region18: #{darknet_forward.23} parent=0
    _
  %s5 = ssub.s32 1, %s3
  %s6 = scalar_select 0, %s5, %s3
  // Predicated region
  $region2: #{darknet_forward.23} parent=0 // pred_check
    _
  $region3: #{darknet_forward.23} parent=0 // pred_check_branch
    %8 = sbr.rel (0) target = $region5
  $region4: #{darknet_forward.23} parent=0 // pred_region
    _
  $region5: #{darknet_forward.23} parent=0 // pred_fallthru
    _
  // Predicated region
  $region6: #{darknet_forward.23} parent=0 // pred_check
    _
  $region7: #{darknet_forward.23} parent=0 // pred_check_branch
    %10 = sbr.rel (0) target = $region9
  $region8: #{darknet_forward.23} parent=0 // pred_region
    _
  $region9: #{darknet_forward.23} parent=0 // pred_fallthru
    _
  %v11 = vld [vmem:[%s0] sm:$0x3]
  %v12 = vld [vmem:[%s0 + $0x8] sm:$0x3]
  %v13 = vld [vmem:[%s0 + $0x10] sm:$0x3]
  %v14 = vxor.u32 %v11, 2147483648
  %v15 = vxor.u32 %v12, 2147483648
  %v16 = vxor.u32 %v13, 2147483648
  %v17 = vmul.f32 %v14, 1.442695
  %v18 = vpow.pop %v17
  %v19 = vmul.f32 %v15, 1.442695
  %v20 = vpow.pop %v19
  %v21 = vmul.f32 %v16, 1.442695
  %v22 = vpow.pop %v21
  %v23 = vadd.f32 %v18, 1.0
  %v24 = vadd.f32 %v20, 1.0
  %v25 = vadd.f32 %v22, 1.0
  %v26 = vrcp.pop %v23
  %v27 = vmul.f32 1.0, %v26
  %v28 = vrcp.pop %v24
  %v29 = vmul.f32 1.0, %v28
  %v30 = vrcp.pop %v25
  %v31 = vmul.f32 1.0, %v30
  %v32 = vld [vmem:[%s1] sm:$0x33]
  %v33 = vld [vmem:[%s1 + $0x8] sm:$0x3]
  %v35 = vcombine.high %v32, %v32
  %v37 = vadd.f32 %v27, %v32
  %v38 = vadd.f32 %v29, %v35
  %v39 = vadd.f32 %v31, %v33
  %v40 = vmul.f32 %v37, 2.0
  %v41 = vmul.f32 %v38, 2.0
  %v42 = vmul.f32 %v39, 2.0
  %43 = vst [vmem:[%s2] sm:$0x3] %v40
  %44 = vst [vmem:[%s2 + $0x8] sm:$0x3] %v41
  %45 = vst [vmem:[%s2 + $0x10] sm:$0x3] %v42
  %v46 = vld [vmem:[%s0] sm:$0xc]
  %v47 = vld [vmem:[%s0 + $0x8] sm:$0xc]
  %v48 = vld [vmem:[%s0 + $0x10] sm:$0xc]
  %v49 = vmul.f32 %v46, 1.442695
  %v50 = vpow.pop %v49
  %v51 = vmul.f32 %v47, 1.442695
  %v52 = vpow.pop %v51
  %v53 = vmul.f32 %v48, 1.442695
  %v54 = vpow.pop %v53
  %v55 = vld [vmem:[%s1] sm:$0xcc]
  %v56 = vld [vmem:[%s1 + $0x8] sm:$0xc]
  %v58 = vcombine.high %v55, %v55
  %v60 = vmul.f32 %v50, %v55
  %v61 = vmul.f32 %v52, %v58
  %v62 = vmul.f32 %v54, %v56
  %v63 = vmul.f32 %v60, 2.0
  %v64 = vmul.f32 %v61, 2.0
  %v65 = vmul.f32 %v62, 2.0
  %66 = vst [vmem:[%s2] sm:$0xc] %v63
  %67 = vst [vmem:[%s2 + $0x8] sm:$0xc] %v64
  %68 = vst [vmem:[%s2 + $0x10] sm:$0xc] %v65
  %v69 = vld [vmem:[%s0] sm:$0x70]
  %v70 = vld [vmem:[%s0 + $0x8] sm:$0x70]
  %v71 = vld [vmem:[%s0 + $0x10] sm:$0x70]
  %v72 = vxor.u32 %v69, 2147483648
  %v73 = vxor.u32 %v70, 2147483648
  %v74 = vxor.u32 %v71, 2147483648
  %v75 = vmul.f32 %v72, 1.442695
  %v76 = vpow.pop %v75
  %v77 = vmul.f32 %v73, 1.442695
  %v78 = vpow.pop %v77
  %v79 = vmul.f32 %v74, 1.442695
  %v80 = vpow.pop %v79
  %v81 = vadd.f32 %v76, 1.0
  %v82 = vadd.f32 %v78, 1.0
  %v83 = vadd.f32 %v80, 1.0
  %v84 = vrcp.pop %v81
  %v85 = vmul.f32 1.0, %v84
  %v86 = vrcp.pop %v82
  %v87 = vmul.f32 1.0, %v86
  %v88 = vrcp.pop %v83
  %v89 = vmul.f32 1.0, %v88
  %90 = vst [vmem:[%s2] sm:$0x70] %v85
  %91 = vst [vmem:[%s2 + $0x8] sm:$0x70] %v87
  %92 = vst [vmem:[%s2 + $0x10] sm:$0x70] %v89
  // Predicated region
  $region10: #{darknet_forward.23} parent=0 // pred_check
    _
  $region11: #{darknet_forward.23} parent=0 // pred_check_branch
    %94 = sbr.rel (0) target = $region13
  $region12: #{darknet_forward.23} parent=0 // pred_region
    _
  $region13: #{darknet_forward.23} parent=0 // pred_fallthru
    _
  // Predicated region
  $region14: #{darknet_forward.23} parent=0 // pred_check
    _
  $region15: #{darknet_forward.23} parent=0 // pred_check_branch
    %96 = sbr.rel (0) target = $region17
  $region16: #{darknet_forward.23} parent=0 // pred_region
    _
  $region17: #{darknet_forward.23} parent=0 // pred_fallthru
    _

</llo_original>
